<compile_context>
chip_gen: v7x
topology: tpu7x:2x2x1
jax: 0.10.0
libtpu: 0.0.40
codegen_flags: <defaults>
</compile_context>

<pallas_src>
import math
import functools

import jax
import jax.numpy as jnp
from jax.experimental import pallas as pl
from jax.experimental.pallas import tpu as pltpu


# ----------------------------------------------------------------------------
# Kernel
# ----------------------------------------------------------------------------
def _decoder_block_kernel(
    # scalar prefetch
    src_len_ref,                       # SMEM (B,) int32
    # tensor inputs
    x_ref, enc_ref,                    # (S_tgt, D), (S_src, D)  f32
    # self-attention (fused QKV) weights
    sqkv_w, sqkv_b, so_w, so_b,
    # cross-attention weights (Q separate, fused KV)
    cq_w, cq_b, ckv_w, ckv_b, co_w, co_b,
    # feed-forward
    f1_w, f1_b, f2_w, f2_b,
    # layer norms
    ln0_a, ln0_b, ln1_a, ln1_b, ln2_a, ln2_b,
    # output
    out_ref,
    *, num_heads, eps, compute_dtype, ff_chunk):
  b = pl.program_id(0)

  x = x_ref[...]                       # (S_tgt, D) f32
  enc = enc_ref[...]                   # (S_src, D) f32
  s_tgt, d_model = x.shape
  s_src = enc.shape[0]
  d_k = d_model // num_heads
  scale = 1.0 / math.sqrt(d_k)

  # ---- masks built in-kernel (no HBM traffic) -------------------------------
  row = jax.lax.broadcasted_iota(jnp.int32, (s_tgt, s_tgt), 0)
  col = jax.lax.broadcasted_iota(jnp.int32, (s_tgt, s_tgt), 1)
  tgt_keep = row >= col                                   # causal (S_tgt,S_tgt)
  src_pos = jax.lax.broadcasted_iota(jnp.int32, (1, s_src), 1)
  src_keep = src_pos < src_len_ref[b]                     # padding (1,S_src)

  # ---- building blocks ------------------------------------------------------
  def layernorm(v, a_ref, b_ref):
    # Matches the reference LayerNormalization:
    #   alpha * (x - mean) / (std + eps) + bias   (unbiased std, n-1)
    mean = jnp.mean(v, axis=-1, keepdims=True)
    var = jnp.sum((v - mean) ** 2, axis=-1, keepdims=True) / (v.shape[-1] - 1)
    inv = pl.reciprocal(jnp.sqrt(var) + eps, approx=True)
    return a_ref[...] * (v - mean) * inv + b_ref[...]

  def split_heads(m, seq):
    # (seq, D) -> (H, seq, d_k)
    return jnp.transpose(m.reshape(seq, num_heads, d_k), (1, 0, 2))

  def attention(q, k, v, keep, s_q, s_kv):
    # q:(s_q,D)  k,v:(s_kv,D)  keep broadcastable to (H, s_q, s_kv)
    qh = split_heads(q, s_q).astype(compute_dtype)
    kh = split_heads(k, s_kv).astype(compute_dtype)
    vh = split_heads(v, s_kv).astype(compute_dtype)
    s = jnp.einsum("hqd,hkd->hqk", qh, kh,
                   preferred_element_type=jnp.float32) * scale
    s = jnp.where(keep, s, -1e9)
    m = jnp.max(s, axis=-1, keepdims=True)
    e = jnp.exp(s - m)
    denom = jnp.sum(e, axis=-1, keepdims=True)
    p = e * pl.reciprocal(denom, approx=True)
    # TODO(synk): attention dropout omitted (eval mode / p = 0.0)
    ctx = jnp.einsum("hqk,hkd->hqd", p.astype(compute_dtype), vh,
                     preferred_element_type=jnp.float32)    # (H, s_q, d_k)
    return jnp.transpose(ctx, (1, 0, 2)).reshape(s_q, d_model)

  def self_attn(v_in):
    qkv = jnp.dot(v_in.astype(compute_dtype), sqkv_w[...],
                  preferred_element_type=jnp.float32) + sqkv_b[...]
    q = qkv[:, :d_model]
    k = qkv[:, d_model:2 * d_model]
    v = qkv[:, 2 * d_model:]
    ctx = attention(q, k, v, tgt_keep, s_tgt, s_tgt)
    return jnp.dot(ctx.astype(compute_dtype), so_w[...],
                   preferred_element_type=jnp.float32) + so_b[...]

  def cross_attn(v_in):
    q = jnp.dot(v_in.astype(compute_dtype), cq_w[...],
                preferred_element_type=jnp.float32) + cq_b[...]
    kv = jnp.dot(enc.astype(compute_dtype), ckv_w[...],
                 preferred_element_type=jnp.float32) + ckv_b[...]
    k = kv[:, :d_model]
    v = kv[:, d_model:]
    ctx = attention(q, k, v, src_keep, s_tgt, s_src)
    return jnp.dot(ctx.astype(compute_dtype), co_w[...],
                   preferred_element_type=jnp.float32) + co_b[...]

  def ffn(v_in):
    # chunk over d_ff so the (S, d_ff) hidden never lives in VMEM all at once
    v_c = v_in.astype(compute_dtype)
    d_ff = f1_w.shape[1]
    acc = jnp.zeros((s_tgt, d_model), jnp.float32)
    for c0 in range(0, d_ff, ff_chunk):
      h = jnp.dot(v_c, f1_w[:, c0:c0 + ff_chunk],
                  preferred_element_type=jnp.float32) + f1_b[:, c0:c0 + ff_chunk]
      h = jnp.maximum(h, 0.0)
      # TODO(synk): FFN dropout omitted (eval mode / p = 0.0)
      acc = acc + jnp.dot(h.astype(compute_dtype), f2_w[c0:c0 + ff_chunk, :],
                          preferred_element_type=jnp.float32)
    return acc + f2_b[...]

  # ---- three pre-norm residual connections ----------------------------------
  x = x + self_attn(layernorm(x, ln0_a, ln0_b))
  x = x + cross_attn(layernorm(x, ln1_a, ln1_b))
  x = x + ffn(layernorm(x, ln2_a, ln2_b))

  out_ref[...] = x.astype(out_ref.dtype)


# ----------------------------------------------------------------------------
# Wrapper
# ----------------------------------------------------------------------------
def decoder_block(x, enc, src_lens, params, *, num_heads, eps=1e-6,
                  compute_dtype=jnp.bfloat16, ff_chunk=512):
  """DecoderBlock forward. Causal target mask and source padding mask
  (from `src_lens`) are generated inside the kernel."""
  B, S_tgt, D = x.shape
  S_src = enc.shape[1]
  d_ff = params["f1_w"].shape[1]

  assert D % num_heads == 0
  assert D % 128 == 0, "d_model must be a multiple of 128 (lane-dense layout)"
  assert d_ff % 128 == 0, "d_ff must be a multiple of 128"
  ff_chunk = min(ff_chunk, d_ff)
  assert d_ff % ff_chunk == 0 and ff_chunk % 128 == 0

  cd = compute_dtype
  # Fuse projections outside the kernel (one-time cost).
  sqkv_w = jnp.concatenate(
      [params["sq_w"], params["sk_w"], params["sv_w"]], axis=1).astype(cd)
  sqkv_b = jnp.concatenate(
      [params["sq_b"], params["sk_b"], params["sv_b"]], axis=1)          # f32
  ckv_w = jnp.concatenate([params["ck_w"], params["cv_w"]], axis=1).astype(cd)
  ckv_b = jnp.concatenate([params["ck_b"], params["cv_b"]], axis=1)      # f32

  weight_list = [
      sqkv_w, sqkv_b, params["so_w"].astype(cd), params["so_b"],
      params["cq_w"].astype(cd), params["cq_b"], ckv_w, ckv_b,
      params["co_w"].astype(cd), params["co_b"],
      params["f1_w"].astype(cd), params["f1_b"],
      params["f2_w"].astype(cd), params["f2_b"],
      params["ln0_a"], params["ln0_b"],
      params["ln1_a"], params["ln1_b"],
      params["ln2_a"], params["ln2_b"],
  ]

  def batch_spec(seq, feat):
    # leading batch dim squeezed away -> kernel sees a 2-D ref
    return pl.BlockSpec((None, seq, feat), lambda b, lens: (b, 0, 0))

  def weight_spec(shape):
    return pl.BlockSpec(shape, lambda b, lens: (0, 0))

  in_specs = ([batch_spec(S_tgt, D), batch_spec(S_src, D)]
              + [weight_spec(w.shape) for w in weight_list])
  out_spec = pl.BlockSpec((None, S_tgt, D), lambda b, lens: (b, 0, 0))

  kernel = functools.partial(
      _decoder_block_kernel, num_heads=num_heads, eps=eps,
      compute_dtype=compute_dtype, ff_chunk=ff_chunk)

  return pl.pallas_call(
      kernel,
      out_shape=jax.ShapeDtypeStruct((B, S_tgt, D), x.dtype),
      grid_spec=pltpu.PrefetchScalarGridSpec(
          num_scalar_prefetch=1,            # src_lens -> SMEM
          grid=(B,),
          in_specs=in_specs,
          out_specs=out_spec,
      ),
      compiler_params=pltpu.CompilerParams(
          dimension_semantics=("parallel",),
          vmem_limit_bytes=32 * 1024 * 1024),
  )(src_lens.astype(jnp.int32), x, enc, *weight_list)


# ----------------------------------------------------------------------------
# Deterministic parameter init (shapes follow the PyTorch module)
# ----------------------------------------------------------------------------
def init_params(key, d_model, d_ff):
  keys = jax.random.split(key, 32)
  ki = iter(range(32))

  def lin_w(k, din, dout):
    return jax.random.normal(k, (din, dout), jnp.float32) / math.sqrt(din)

  def lin_b(k, dout):
    return jax.random.normal(k, (1, dout), jnp.float32) * 0.02

  p = {}
  for name in ["sq", "sk", "sv", "so", "cq", "ck", "cv", "co"]:
    p[name + "_w"] = lin_w(keys[next(ki)], d_model, d_model)
    p[name + "_b"] = lin_b(keys[next(ki)], d_model)
  p["f1_w"] = lin_w(keys[next(ki)], d_model, d_ff)
  p["f1_b"] = lin_b(keys[next(ki)], d_ff)
  p["f2_w"] = lin_w(keys[next(ki)], d_ff, d_model)
  p["f2_b"] = lin_b(keys[next(ki)], d_model)
  for i in range(3):
    p[f"ln{i}_a"] = (jnp.ones((1, d_model), jnp.float32)
                     + jax.random.normal(keys[next(ki)], (1, d_model)) * 0.02)
    p[f"ln{i}_b"] = jax.random.normal(keys[next(ki)], (1, d_model)) * 0.02
  return p


# ----------------------------------------------------------------------------
# Pure-JAX reference (unfused weights, f32 HIGHEST) for correctness check
# ----------------------------------------------------------------------------
def ref_decoder_block(x, enc, src_mask, tgt_mask, p, num_heads, eps=1e-6):
  hi = jax.lax.Precision.HIGHEST

  def layernorm(v, a, b):
    mean = jnp.mean(v, axis=-1, keepdims=True)
    var = jnp.sum((v - mean) ** 2, axis=-1, keepdims=True) / (v.shape[-1] - 1)
    return a[0] * (v - mean) / (jnp.sqrt(var) + eps) + b[0]

  def mha(q_in, kv_in, mask, pre):
    B, Sq, D = q_in.shape
    Skv = kv_in.shape[1]
    dk = D // num_heads
    q = jnp.einsum("bsd,de->bse", q_in, p[pre + "q_w"], precision=hi) + p[pre + "q_b"][0]
    k = jnp.einsum("bsd,de->bse", kv_in, p[pre + "k_w"], precision=hi) + p[pre + "k_b"][0]
    v = jnp.einsum("bsd,de->bse", kv_in, p[pre + "v_w"], precision=hi) + p[pre + "v_b"][0]
    q = q.reshape(B, Sq, num_heads, dk).transpose(0, 2, 1, 3)
    k = k.reshape(B, Skv, num_heads, dk).transpose(0, 2, 1, 3)
    v = v.reshape(B, Skv, num_heads, dk).transpose(0, 2, 1, 3)
    scores = jnp.einsum("bhqd,bhkd->bhqk", q, k, precision=hi) / math.sqrt(dk)
    scores = jnp.where(mask == 0, -1e9, scores)
    attn = jax.nn.softmax(scores, axis=-1)
    ctx = jnp.einsum("bhqk,bhkd->bhqd", attn, v, precision=hi)
    ctx = ctx.transpose(0, 2, 1, 3).reshape(B, Sq, D)
    return jnp.einsum("bsd,de->bse", ctx, p[pre + "o_w"], precision=hi) + p[pre + "o_b"][0]

  def ffn(v):
    h = jnp.einsum("bsd,df->bsf", v, p["f1_w"], precision=hi) + p["f1_b"][0]
    h = jnp.maximum(h, 0.0)
    return jnp.einsum("bsf,fd->bsd", h, p["f2_w"], precision=hi) + p["f2_b"][0]

  x = x + mha(layernorm(x, p["ln0_a"], p["ln0_b"]),
              layernorm(x, p["ln0_a"], p["ln0_b"]), tgt_mask, "s")
  x = x + mha(layernorm(x, p["ln1_a"], p["ln1_b"]), enc, src_mask, "c")
  x = x + ffn(layernorm(x, p["ln2_a"], p["ln2_b"]))
  return x


# ----------------------------------------------------------------------------
if __name__ == "__main__":
  B, S_tgt, S_src, D, H, D_FF = 2, 16, 16, 128, 4, 256

  key = jax.random.PRNGKey(0)
  kx, ke, kp = jax.random.split(key, 3)
  x = jax.random.normal(kx, (B, S_tgt, D), jnp.float32)
  enc = jax.random.normal(ke, (B, S_src, D), jnp.float32)

  # per-batch source lengths; masks below are only for the pure-JAX reference
  src_lens = jnp.array([S_src, S_src - 5], jnp.int32)
  causal = jnp.tril(jnp.ones((S_tgt, S_tgt), jnp.int32))
  tgt_mask = jnp.tile(causal[None, None], (B, 1, 1, 1))            # (B,1,St,St)
  src_mask = (jnp.arange(S_src)[None, :] < src_lens[:, None]).astype(jnp.int32)
  src_mask = src_mask[:, None, None, :]                            # (B,1,1,Ss)

  params = init_params(kp, D, D_FF)
  ref = ref_decoder_block(x, enc, src_mask, tgt_mask, params, H)

  # f32 MXU path: tight check of kernel semantics
  out_f32 = decoder_block(x, enc, src_lens, params, num_heads=H,
                          compute_dtype=jnp.float32, ff_chunk=128)
  out_f32 = jax.block_until_ready(out_f32)
  assert out_f32.shape == (B, S_tgt, D), out_f32.shape
  err_f32 = float(jnp.max(jnp.abs(out_f32 - ref)))
  assert err_f32 < 5e-2, f"f32 max abs error too large: {err_f32}"

  # bf16-MXU path (default performance config): f32 accumulation keeps error small
  out_bf16 = decoder_block(x, enc, src_lens, params, num_heads=H,
                           compute_dtype=jnp.bfloat16, ff_chunk=128)
  out_bf16 = jax.block_until_ready(out_bf16)
  err_bf16 = float(jnp.max(jnp.abs(out_bf16 - ref)))
  assert err_bf16 < 1.5e-1, f"bf16 max abs error too large: {err_bf16}"

  print("KERNEL_OK")
</pallas_src>

<mosaic_0001>
module attributes {stable_mosaic.version = 11 : i64} {
  func.func @_decoder_block_kernel(%arg0: i32, %arg1: memref<2xi32, #tpu.memory_space<smem>>, %arg2: memref<1x16x128xf32, #tpu.memory_space<vmem>>, %arg3: memref<1x16x128xf32, #tpu.memory_space<vmem>>, %arg4: memref<128x384xf32, #tpu.memory_space<vmem>>, %arg5: memref<1x384xf32, #tpu.memory_space<vmem>>, %arg6: memref<128x128xf32, #tpu.memory_space<vmem>>, %arg7: memref<1x128xf32, #tpu.memory_space<vmem>>, %arg8: memref<128x128xf32, #tpu.memory_space<vmem>>, %arg9: memref<1x128xf32, #tpu.memory_space<vmem>>, %arg10: memref<128x256xf32, #tpu.memory_space<vmem>>, %arg11: memref<1x256xf32, #tpu.memory_space<vmem>>, %arg12: memref<128x128xf32, #tpu.memory_space<vmem>>, %arg13: memref<1x128xf32, #tpu.memory_space<vmem>>, %arg14: memref<128x256xf32, #tpu.memory_space<vmem>>, %arg15: memref<1x256xf32, #tpu.memory_space<vmem>>, %arg16: memref<256x128xf32, #tpu.memory_space<vmem>>, %arg17: memref<1x128xf32, #tpu.memory_space<vmem>>, %arg18: memref<1x128xf32, #tpu.memory_space<vmem>>, %arg19: memref<1x128xf32, #tpu.memory_space<vmem>>, %arg20: memref<1x128xf32, #tpu.memory_space<vmem>>, %arg21: memref<1x128xf32, #tpu.memory_space<vmem>>, %arg22: memref<1x128xf32, #tpu.memory_space<vmem>>, %arg23: memref<1x128xf32, #tpu.memory_space<vmem>>, %arg24: memref<1x16x128xf32, #tpu.memory_space<vmem>>) attributes {dimension_semantics = [#tpu.dimension_semantics<parallel>], iteration_bounds = array<i64: 2>, scalar_prefetch = 1 : i64, scratch_operands = 0 : i64, tpu.core_type = #tpu.core_type<tc>, window_params = [{transform_indices = @transform_0, window_bounds = array<i64: 1, 16, 128>}, {transform_indices = @transform_1, window_bounds = array<i64: 1, 16, 128>}, {pipeline_mode = #tpu.pipeline_mode<synchronous>, transform_indices = @transform_2, window_bounds = array<i64: 128, 384>}, {pipeline_mode = #tpu.pipeline_mode<synchronous>, transform_indices = @transform_3, window_bounds = array<i64: 1, 384>}, {pipeline_mode = #tpu.pipeline_mode<synchronous>, transform_indices = @transform_4, window_bounds = array<i64: 128, 128>}, {pipeline_mode = #tpu.pipeline_mode<synchronous>, transform_indices = @transform_5, window_bounds = array<i64: 1, 128>}, {pipeline_mode = #tpu.pipeline_mode<synchronous>, transform_indices = @transform_6, window_bounds = array<i64: 128, 128>}, {pipeline_mode = #tpu.pipeline_mode<synchronous>, transform_indices = @transform_7, window_bounds = array<i64: 1, 128>}, {pipeline_mode = #tpu.pipeline_mode<synchronous>, transform_indices = @transform_8, window_bounds = array<i64: 128, 256>}, {pipeline_mode = #tpu.pipeline_mode<synchronous>, transform_indices = @transform_9, window_bounds = array<i64: 1, 256>}, {pipeline_mode = #tpu.pipeline_mode<synchronous>, transform_indices = @transform_10, window_bounds = array<i64: 128, 128>}, {pipeline_mode = #tpu.pipeline_mode<synchronous>, transform_indices = @transform_11, window_bounds = array<i64: 1, 128>}, {pipeline_mode = #tpu.pipeline_mode<synchronous>, transform_indices = @transform_12, window_bounds = array<i64: 128, 256>}, {pipeline_mode = #tpu.pipeline_mode<synchronous>, transform_indices = @transform_13, window_bounds = array<i64: 1, 256>}, {pipeline_mode = #tpu.pipeline_mode<synchronous>, transform_indices = @transform_14, window_bounds = array<i64: 256, 128>}, {pipeline_mode = #tpu.pipeline_mode<synchronous>, transform_indices = @transform_15, window_bounds = array<i64: 1, 128>}, {pipeline_mode = #tpu.pipeline_mode<synchronous>, transform_indices = @transform_16, window_bounds = array<i64: 1, 128>}, {pipeline_mode = #tpu.pipeline_mode<synchronous>, transform_indices = @transform_17, window_bounds = array<i64: 1, 128>}, {pipeline_mode = #tpu.pipeline_mode<synchronous>, transform_indices = @transform_18, window_bounds = array<i64: 1, 128>}, {pipeline_mode = #tpu.pipeline_mode<synchronous>, transform_indices = @transform_19, window_bounds = array<i64: 1, 128>}, {pipeline_mode = #tpu.pipeline_mode<synchronous>, transform_indices = @transform_20, window_bounds = array<i64: 1, 128>}, {pipeline_mode = #tpu.pipeline_mode<synchronous>, transform_indices = @transform_21, window_bounds = array<i64: 1, 128>}, {transform_indices = @transform_22, window_bounds = array<i64: 1, 16, 128>}]} {
    %c0 = arith.constant 0 : index
    %c0_0 = arith.constant 0 : index
    %c0_1 = arith.constant 0 : index
    %0 = vector.load %arg2[%c0, %c0_0, %c0_1] : memref<1x16x128xf32, #tpu.memory_space<vmem>>, vector<1x16x128xf32>
    %1 = vector.shape_cast %0 : vector<1x16x128xf32> to vector<16x128xf32>
    %c0_2 = arith.constant 0 : index
    %c0_3 = arith.constant 0 : index
    %c0_4 = arith.constant 0 : index
    %2 = vector.load %arg3[%c0_2, %c0_3, %c0_4] : memref<1x16x128xf32, #tpu.memory_space<vmem>>, vector<1x16x128xf32>
    %3 = vector.shape_cast %2 : vector<1x16x128xf32> to vector<16x128xf32>
    %4 = tpu.iota {dimensions = array<i32: 0>} : vector<16x16xi32>
    %5 = tpu.iota {dimensions = array<i32: 1>} : vector<16x16xi32>
    %6 = arith.cmpi sge, %4, %5 : vector<16x16xi32>
    %7 = tpu.iota {dimensions = array<i32: 1>} : vector<1x16xi32>
    %8 = arith.index_cast %arg0 : i32 to index
    %9 = memref.load %arg1[%8] : memref<2xi32, #tpu.memory_space<smem>>
    %10 = vector.broadcast %9 : i32 to vector<1x16xi32>
    %11 = arith.cmpi slt, %7, %10 : vector<1x16xi32>
    %cst = arith.constant dense<0.000000e+00> : vector<16xf32>
    %12 = vector.multi_reduction <add>, %1, %cst [1] : vector<16x128xf32> to vector<16xf32>
    %13 = vector.shape_cast %12 : vector<16xf32> to vector<16x1xf32>
    %cst_5 = arith.constant 1.280000e+02 : f32
    %14 = vector.broadcast %cst_5 : f32 to vector<16x1xf32>
    %15 = arith.divf %13, %14 : vector<16x1xf32>
    %16 = vector.broadcast %15 : vector<16x1xf32> to vector<16x128xf32>
    %17 = arith.subf %1, %16 : vector<16x128xf32>
    %18 = arith.mulf %17, %17 : vector<16x128xf32>
    %cst_6 = arith.constant dense<0.000000e+00> : vector<16xf32>
    %19 = vector.multi_reduction <add>, %18, %cst_6 [1] : vector<16x128xf32> to vector<16xf32>
    %20 = vector.shape_cast %19 : vector<16xf32> to vector<16x1xf32>
    %cst_7 = arith.constant 1.270000e+02 : f32
    %21 = vector.broadcast %cst_7 : f32 to vector<16x1xf32>
    %22 = arith.divf %20, %21 : vector<16x1xf32>
    %23 = math.sqrt %22 : vector<16x1xf32>
    %cst_8 = arith.constant 9.99999997E-7 : f32
    %24 = vector.broadcast %cst_8 : f32 to vector<16x1xf32>
    %25 = arith.addf %23, %24 : vector<16x1xf32>
    %26 = tpu.reciprocal %25 {approx = true} : vector<16x1xf32> -> vector<16x1xf32>
    %c0_9 = arith.constant 0 : index
    %c0_10 = arith.constant 0 : index
    %27 = vector.load %arg18[%c0_9, %c0_10] : memref<1x128xf32, #tpu.memory_space<vmem>>, vector<1x128xf32>
    %28 = vector.broadcast %15 : vector<16x1xf32> to vector<16x128xf32>
    %29 = arith.subf %1, %28 : vector<16x128xf32>
    %30 = vector.broadcast %27 : vector<1x128xf32> to vector<16x128xf32>
    %31 = arith.mulf %30, %29 : vector<16x128xf32>
    %32 = vector.broadcast %26 : vector<16x1xf32> to vector<16x128xf32>
    %33 = arith.mulf %31, %32 : vector<16x128xf32>
    %c0_11 = arith.constant 0 : index
    %c0_12 = arith.constant 0 : index
    %34 = vector.load %arg19[%c0_11, %c0_12] : memref<1x128xf32, #tpu.memory_space<vmem>>, vector<1x128xf32>
    %35 = vector.broadcast %34 : vector<1x128xf32> to vector<16x128xf32>
    %36 = arith.addf %33, %35 : vector<16x128xf32>
    %c0_13 = arith.constant 0 : index
    %c0_14 = arith.constant 0 : index
    %37 = vector.load %arg4[%c0_13, %c0_14] : memref<128x384xf32, #tpu.memory_space<vmem>>, vector<128x384xf32>
    %cst_15 = arith.constant dense<0.000000e+00> : vector<16x384xf32>
    %38 = tpu.matmul %36, %37, %cst_15 {dimension_numbers = #tpu.dot_dimension_numbers<[1], [0], [0], [1], [0, 0, 1, 1], [], []>} : vector<16x128xf32>, vector<128x384xf32>, vector<16x384xf32> -> vector<16x384xf32>
    %c0_16 = arith.constant 0 : index
    %c0_17 = arith.constant 0 : index
    %39 = vector.load %arg5[%c0_16, %c0_17] : memref<1x384xf32, #tpu.memory_space<vmem>>, vector<1x384xf32>
    %40 = vector.broadcast %39 : vector<1x384xf32> to vector<16x384xf32>
    %41 = arith.addf %38, %40 : vector<16x384xf32>
    %42 = vector.extract_strided_slice %41 {offsets = [0, 0], sizes = [16, 128], strides = [1, 1]} : vector<16x384xf32> to vector<16x128xf32>
    %43 = vector.extract_strided_slice %41 {offsets = [0, 128], sizes = [16, 128], strides = [1, 1]} : vector<16x384xf32> to vector<16x128xf32>
    %44 = vector.extract_strided_slice %41 {offsets = [0, 256], sizes = [16, 128], strides = [1, 1]} : vector<16x384xf32> to vector<16x128xf32>
    %45 = vector.shape_cast %42 : vector<16x128xf32> to vector<16x4x32xf32>
    %46 = tpu.transpose %45, [1, 0, 2] : vector<16x4x32xf32> -> vector<4x16x32xf32>
    %47 = vector.shape_cast %43 : vector<16x128xf32> to vector<16x4x32xf32>
    %48 = tpu.transpose %47, [1, 0, 2] : vector<16x4x32xf32> -> vector<4x16x32xf32>
    %49 = vector.shape_cast %44 : vector<16x128xf32> to vector<16x4x32xf32>
    %50 = tpu.transpose %49, [1, 0, 2] : vector<16x4x32xf32> -> vector<4x16x32xf32>
    "tpu.trace_start"() <{level = 10 : i32, message = "hqd,hkd->hqk"}> : () -> ()
    %cst_18 = arith.constant dense<0.000000e+00> : vector<4x16x16xf32>
    %51 = tpu.matmul %46, %48, %cst_18 {dimension_numbers = #tpu.dot_dimension_numbers<[2], [2], [1], [1], [0, 0, 0, 1, 1, 1], [0], [0]>} : vector<4x16x32xf32>, vector<4x16x32xf32>, vector<4x16x16xf32> -> vector<4x16x16xf32>
    "tpu.trace_stop"() : () -> ()
    %cst_19 = arith.constant 0.176776692 : f32
    %52 = vector.broadcast %cst_19 : f32 to vector<4x16x16xf32>
    %53 = arith.mulf %51, %52 : vector<4x16x16xf32>
    %cst_20 = arith.constant -1.000000e+09 : f32
    %54 = vector.shape_cast %6 : vector<16x16xi1> to vector<1x16x16xi1>
    %55 = vector.broadcast %54 : vector<1x16x16xi1> to vector<4x16x16xi1>
    %56 = vector.broadcast %cst_20 : f32 to vector<4x16x16xf32>
    %57 = arith.select %55, %53, %56 : vector<4x16x16xi1>, vector<4x16x16xf32>
    %cst_21 = arith.constant dense<0xFF800000> : vector<4x16xf32>
    %58 = vector.multi_reduction <maximumf>, %57, %cst_21 [2] : vector<4x16x16xf32> to vector<4x16xf32>
    %59 = vector.shape_cast %58 : vector<4x16xf32> to vector<4x16x1xf32>
    %60 = vector.broadcast %59 : vector<4x16x1xf32> to vector<4x16x16xf32>
    %61 = arith.subf %57, %60 : vector<4x16x16xf32>
    %62 = math.exp %61 : vector<4x16x16xf32>
    %cst_22 = arith.constant dense<0.000000e+00> : vector<4x16xf32>
    %63 = vector.multi_reduction <add>, %62, %cst_22 [2] : vector<4x16x16xf32> to vector<4x16xf32>
    %64 = vector.shape_cast %63 : vector<4x16xf32> to vector<4x16x1xf32>
    %65 = tpu.reciprocal %64 {approx = true} : vector<4x16x1xf32> -> vector<4x16x1xf32>
    %66 = vector.broadcast %65 : vector<4x16x1xf32> to vector<4x16x16xf32>
    %67 = arith.mulf %62, %66 : vector<4x16x16xf32>
    "tpu.trace_start"() <{level = 10 : i32, message = "hqk,hkd->hqd"}> : () -> ()
    %cst_23 = arith.constant dense<0.000000e+00> : vector<4x16x32xf32>
    %68 = tpu.matmul %67, %50, %cst_23 {dimension_numbers = #tpu.dot_dimension_numbers<[2], [1], [1], [2], [0, 0, 0, 1, 1, 2], [0], [0]>} : vector<4x16x16xf32>, vector<4x16x32xf32>, vector<4x16x32xf32> -> vector<4x16x32xf32>
    "tpu.trace_stop"() : () -> ()
    %69 = tpu.transpose %68, [1, 0, 2] : vector<4x16x32xf32> -> vector<16x4x32xf32>
    %70 = vector.shape_cast %69 : vector<16x4x32xf32> to vector<16x128xf32>
    %c0_24 = arith.constant 0 : index
    %c0_25 = arith.constant 0 : index
    %71 = vector.load %arg6[%c0_24, %c0_25] : memref<128x128xf32, #tpu.memory_space<vmem>>, vector<128x128xf32>
    %cst_26 = arith.constant dense<0.000000e+00> : vector<16x128xf32>
    %72 = tpu.matmul %70, %71, %cst_26 {dimension_numbers = #tpu.dot_dimension_numbers<[1], [0], [0], [1], [0, 0, 1, 1], [], []>} : vector<16x128xf32>, vector<128x128xf32>, vector<16x128xf32> -> vector<16x128xf32>
    %c0_27 = arith.constant 0 : index
    %c0_28 = arith.constant 0 : index
    %73 = vector.load %arg7[%c0_27, %c0_28] : memref<1x128xf32, #tpu.memory_space<vmem>>, vector<1x128xf32>
    %74 = vector.broadcast %73 : vector<1x128xf32> to vector<16x128xf32>
    %75 = arith.addf %72, %74 : vector<16x128xf32>
    %76 = arith.addf %1, %75 : vector<16x128xf32>
    %cst_29 = arith.constant dense<0.000000e+00> : vector<16xf32>
    %77 = vector.multi_reduction <add>, %76, %cst_29 [1] : vector<16x128xf32> to vector<16xf32>
    %78 = vector.shape_cast %77 : vector<16xf32> to vector<16x1xf32>
    %cst_30 = arith.constant 1.280000e+02 : f32
    %79 = vector.broadcast %cst_30 : f32 to vector<16x1xf32>
    %80 = arith.divf %78, %79 : vector<16x1xf32>
    %81 = vector.broadcast %80 : vector<16x1xf32> to vector<16x128xf32>
    %82 = arith.subf %76, %81 : vector<16x128xf32>
    %83 = arith.mulf %82, %82 : vector<16x128xf32>
    %cst_31 = arith.constant dense<0.000000e+00> : vector<16xf32>
    %84 = vector.multi_reduction <add>, %83, %cst_31 [1] : vector<16x128xf32> to vector<16xf32>
    %85 = vector.shape_cast %84 : vector<16xf32> to vector<16x1xf32>
    %cst_32 = arith.constant 1.270000e+02 : f32
    %86 = vector.broadcast %cst_32 : f32 to vector<16x1xf32>
    %87 = arith.divf %85, %86 : vector<16x1xf32>
    %88 = math.sqrt %87 : vector<16x1xf32>
    %cst_33 = arith.constant 9.99999997E-7 : f32
    %89 = vector.broadcast %cst_33 : f32 to vector<16x1xf32>
    %90 = arith.addf %88, %89 : vector<16x1xf32>
    %91 = tpu.reciprocal %90 {approx = true} : vector<16x1xf32> -> vector<16x1xf32>
    %c0_34 = arith.constant 0 : index
    %c0_35 = arith.constant 0 : index
    %92 = vector.load %arg20[%c0_34, %c0_35] : memref<1x128xf32, #tpu.memory_space<vmem>>, vector<1x128xf32>
    %93 = vector.broadcast %80 : vector<16x1xf32> to vector<16x128xf32>
    %94 = arith.subf %76, %93 : vector<16x128xf32>
    %95 = vector.broadcast %92 : vector<1x128xf32> to vector<16x128xf32>
    %96 = arith.mulf %95, %94 : vector<16x128xf32>
    %97 = vector.broadcast %91 : vector<16x1xf32> to vector<16x128xf32>
    %98 = arith.mulf %96, %97 : vector<16x128xf32>
    %c0_36 = arith.constant 0 : index
    %c0_37 = arith.constant 0 : index
    %99 = vector.load %arg21[%c0_36, %c0_37] : memref<1x128xf32, #tpu.memory_space<vmem>>, vector<1x128xf32>
    %100 = vector.broadcast %99 : vector<1x128xf32> to vector<16x128xf32>
    %101 = arith.addf %98, %100 : vector<16x128xf32>
    %c0_38 = arith.constant 0 : index
    %c0_39 = arith.constant 0 : index
    %102 = vector.load %arg8[%c0_38, %c0_39] : memref<128x128xf32, #tpu.memory_space<vmem>>, vector<128x128xf32>
    %cst_40 = arith.constant dense<0.000000e+00> : vector<16x128xf32>
    %103 = tpu.matmul %101, %102, %cst_40 {dimension_numbers = #tpu.dot_dimension_numbers<[1], [0], [0], [1], [0, 0, 1, 1], [], []>} : vector<16x128xf32>, vector<128x128xf32>, vector<16x128xf32> -> vector<16x128xf32>
    %c0_41 = arith.constant 0 : index
    %c0_42 = arith.constant 0 : index
    %104 = vector.load %arg9[%c0_41, %c0_42] : memref<1x128xf32, #tpu.memory_space<vmem>>, vector<1x128xf32>
    %105 = vector.broadcast %104 : vector<1x128xf32> to vector<16x128xf32>
    %106 = arith.addf %103, %105 : vector<16x128xf32>
    %c0_43 = arith.constant 0 : index
    %c0_44 = arith.constant 0 : index
    %107 = vector.load %arg10[%c0_43, %c0_44] : memref<128x256xf32, #tpu.memory_space<vmem>>, vector<128x256xf32>
    %cst_45 = arith.constant dense<0.000000e+00> : vector<16x256xf32>
    %108 = tpu.matmul %3, %107, %cst_45 {dimension_numbers = #tpu.dot_dimension_numbers<[1], [0], [0], [1], [0, 0, 1, 1], [], []>} : vector<16x128xf32>, vector<128x256xf32>, vector<16x256xf32> -> vector<16x256xf32>
    %c0_46 = arith.constant 0 : index
    %c0_47 = arith.constant 0 : index
    %109 = vector.load %arg11[%c0_46, %c0_47] : memref<1x256xf32, #tpu.memory_space<vmem>>, vector<1x256xf32>
    %110 = vector.broadcast %109 : vector<1x256xf32> to vector<16x256xf32>
    %111 = arith.addf %108, %110 : vector<16x256xf32>
    %112 = vector.extract_strided_slice %111 {offsets = [0, 0], sizes = [16, 128], strides = [1, 1]} : vector<16x256xf32> to vector<16x128xf32>
    %113 = vector.extract_strided_slice %111 {offsets = [0, 128], sizes = [16, 128], strides = [1, 1]} : vector<16x256xf32> to vector<16x128xf32>
    %114 = vector.shape_cast %106 : vector<16x128xf32> to vector<16x4x32xf32>
    %115 = tpu.transpose %114, [1, 0, 2] : vector<16x4x32xf32> -> vector<4x16x32xf32>
    %116 = vector.shape_cast %112 : vector<16x128xf32> to vector<16x4x32xf32>
    %117 = tpu.transpose %116, [1, 0, 2] : vector<16x4x32xf32> -> vector<4x16x32xf32>
    %118 = vector.shape_cast %113 : vector<16x128xf32> to vector<16x4x32xf32>
    %119 = tpu.transpose %118, [1, 0, 2] : vector<16x4x32xf32> -> vector<4x16x32xf32>
    "tpu.trace_start"() <{level = 10 : i32, message = "hqd,hkd->hqk"}> : () -> ()
    %cst_48 = arith.constant dense<0.000000e+00> : vector<4x16x16xf32>
    %120 = tpu.matmul %115, %117, %cst_48 {dimension_numbers = #tpu.dot_dimension_numbers<[2], [2], [1], [1], [0, 0, 0, 1, 1, 1], [0], [0]>} : vector<4x16x32xf32>, vector<4x16x32xf32>, vector<4x16x16xf32> -> vector<4x16x16xf32>
    "tpu.trace_stop"() : () -> ()
    %cst_49 = arith.constant 0.176776692 : f32
    %121 = vector.broadcast %cst_49 : f32 to vector<4x16x16xf32>
    %122 = arith.mulf %120, %121 : vector<4x16x16xf32>
    %cst_50 = arith.constant -1.000000e+09 : f32
    %123 = vector.shape_cast %11 : vector<1x16xi1> to vector<1x1x16xi1>
    %124 = vector.broadcast %123 : vector<1x1x16xi1> to vector<4x16x16xi1>
    %125 = vector.broadcast %cst_50 : f32 to vector<4x16x16xf32>
    %126 = arith.select %124, %122, %125 : vector<4x16x16xi1>, vector<4x16x16xf32>
    %cst_51 = arith.constant dense<0xFF800000> : vector<4x16xf32>
    %127 = vector.multi_reduction <maximumf>, %126, %cst_51 [2] : vector<4x16x16xf32> to vector<4x16xf32>
    %128 = vector.shape_cast %127 : vector<4x16xf32> to vector<4x16x1xf32>
    %129 = vector.broadcast %128 : vector<4x16x1xf32> to vector<4x16x16xf32>
    %130 = arith.subf %126, %129 : vector<4x16x16xf32>
    %131 = math.exp %130 : vector<4x16x16xf32>
    %cst_52 = arith.constant dense<0.000000e+00> : vector<4x16xf32>
    %132 = vector.multi_reduction <add>, %131, %cst_52 [2] : vector<4x16x16xf32> to vector<4x16xf32>
    %133 = vector.shape_cast %132 : vector<4x16xf32> to vector<4x16x1xf32>
    %134 = tpu.reciprocal %133 {approx = true} : vector<4x16x1xf32> -> vector<4x16x1xf32>
    %135 = vector.broadcast %134 : vector<4x16x1xf32> to vector<4x16x16xf32>
    %136 = arith.mulf %131, %135 : vector<4x16x16xf32>
    "tpu.trace_start"() <{level = 10 : i32, message = "hqk,hkd->hqd"}> : () -> ()
    %cst_53 = arith.constant dense<0.000000e+00> : vector<4x16x32xf32>
    %137 = tpu.matmul %136, %119, %cst_53 {dimension_numbers = #tpu.dot_dimension_numbers<[2], [1], [1], [2], [0, 0, 0, 1, 1, 2], [0], [0]>} : vector<4x16x16xf32>, vector<4x16x32xf32>, vector<4x16x32xf32> -> vector<4x16x32xf32>
    "tpu.trace_stop"() : () -> ()
    %138 = tpu.transpose %137, [1, 0, 2] : vector<4x16x32xf32> -> vector<16x4x32xf32>
    %139 = vector.shape_cast %138 : vector<16x4x32xf32> to vector<16x128xf32>
    %c0_54 = arith.constant 0 : index
    %c0_55 = arith.constant 0 : index
    %140 = vector.load %arg12[%c0_54, %c0_55] : memref<128x128xf32, #tpu.memory_space<vmem>>, vector<128x128xf32>
    %cst_56 = arith.constant dense<0.000000e+00> : vector<16x128xf32>
    %141 = tpu.matmul %139, %140, %cst_56 {dimension_numbers = #tpu.dot_dimension_numbers<[1], [0], [0], [1], [0, 0, 1, 1], [], []>} : vector<16x128xf32>, vector<128x128xf32>, vector<16x128xf32> -> vector<16x128xf32>
    %c0_57 = arith.constant 0 : index
    %c0_58 = arith.constant 0 : index
    %142 = vector.load %arg13[%c0_57, %c0_58] : memref<1x128xf32, #tpu.memory_space<vmem>>, vector<1x128xf32>
    %143 = vector.broadcast %142 : vector<1x128xf32> to vector<16x128xf32>
    %144 = arith.addf %141, %143 : vector<16x128xf32>
    %145 = arith.addf %76, %144 : vector<16x128xf32>
    %cst_59 = arith.constant dense<0.000000e+00> : vector<16xf32>
    %146 = vector.multi_reduction <add>, %145, %cst_59 [1] : vector<16x128xf32> to vector<16xf32>
    %147 = vector.shape_cast %146 : vector<16xf32> to vector<16x1xf32>
    %cst_60 = arith.constant 1.280000e+02 : f32
    %148 = vector.broadcast %cst_60 : f32 to vector<16x1xf32>
    %149 = arith.divf %147, %148 : vector<16x1xf32>
    %150 = vector.broadcast %149 : vector<16x1xf32> to vector<16x128xf32>
    %151 = arith.subf %145, %150 : vector<16x128xf32>
    %152 = arith.mulf %151, %151 : vector<16x128xf32>
    %cst_61 = arith.constant dense<0.000000e+00> : vector<16xf32>
    %153 = vector.multi_reduction <add>, %152, %cst_61 [1] : vector<16x128xf32> to vector<16xf32>
    %154 = vector.shape_cast %153 : vector<16xf32> to vector<16x1xf32>
    %cst_62 = arith.constant 1.270000e+02 : f32
    %155 = vector.broadcast %cst_62 : f32 to vector<16x1xf32>
    %156 = arith.divf %154, %155 : vector<16x1xf32>
    %157 = math.sqrt %156 : vector<16x1xf32>
    %cst_63 = arith.constant 9.99999997E-7 : f32
    %158 = vector.broadcast %cst_63 : f32 to vector<16x1xf32>
    %159 = arith.addf %157, %158 : vector<16x1xf32>
    %160 = tpu.reciprocal %159 {approx = true} : vector<16x1xf32> -> vector<16x1xf32>
    %c0_64 = arith.constant 0 : index
    %c0_65 = arith.constant 0 : index
    %161 = vector.load %arg22[%c0_64, %c0_65] : memref<1x128xf32, #tpu.memory_space<vmem>>, vector<1x128xf32>
    %162 = vector.broadcast %149 : vector<16x1xf32> to vector<16x128xf32>
    %163 = arith.subf %145, %162 : vector<16x128xf32>
    %164 = vector.broadcast %161 : vector<1x128xf32> to vector<16x128xf32>
    %165 = arith.mulf %164, %163 : vector<16x128xf32>
    %166 = vector.broadcast %160 : vector<16x1xf32> to vector<16x128xf32>
    %167 = arith.mulf %165, %166 : vector<16x128xf32>
    %c0_66 = arith.constant 0 : index
    %c0_67 = arith.constant 0 : index
    %168 = vector.load %arg23[%c0_66, %c0_67] : memref<1x128xf32, #tpu.memory_space<vmem>>, vector<1x128xf32>
    %169 = vector.broadcast %168 : vector<1x128xf32> to vector<16x128xf32>
    %170 = arith.addf %167, %169 : vector<16x128xf32>
    %cst_68 = arith.constant 0.000000e+00 : f32
    %171 = vector.broadcast %cst_68 : f32 to vector<16x128xf32>
    %c0_69 = arith.constant 0 : index
    %c0_70 = arith.constant 0 : index
    %172 = vector.load %arg14[%c0_69, %c0_70] : memref<128x256xf32, #tpu.memory_space<vmem>>, vector<128x128xf32>
    %cst_71 = arith.constant dense<0.000000e+00> : vector<16x128xf32>
    %173 = tpu.matmul %170, %172, %cst_71 {dimension_numbers = #tpu.dot_dimension_numbers<[1], [0], [0], [1], [0, 0, 1, 1], [], []>} : vector<16x128xf32>, vector<128x128xf32>, vector<16x128xf32> -> vector<16x128xf32>
    %c0_72 = arith.constant 0 : index
    %c0_73 = arith.constant 0 : index
    %174 = vector.load %arg15[%c0_72, %c0_73] : memref<1x256xf32, #tpu.memory_space<vmem>>, vector<1x128xf32>
    %175 = vector.broadcast %174 : vector<1x128xf32> to vector<16x128xf32>
    %176 = arith.addf %173, %175 : vector<16x128xf32>
    %cst_74 = arith.constant 0.000000e+00 : f32
    %177 = vector.broadcast %cst_74 : f32 to vector<16x128xf32>
    %178 = arith.maximumf %176, %177 : vector<16x128xf32>
    %c0_75 = arith.constant 0 : index
    %c0_76 = arith.constant 0 : index
    %179 = vector.load %arg16[%c0_75, %c0_76] : memref<256x128xf32, #tpu.memory_space<vmem>>, vector<128x128xf32>
    %cst_77 = arith.constant dense<0.000000e+00> : vector<16x128xf32>
    %180 = tpu.matmul %178, %179, %cst_77 {dimension_numbers = #tpu.dot_dimension_numbers<[1], [0], [0], [1], [0, 0, 1, 1], [], []>} : vector<16x128xf32>, vector<128x128xf32>, vector<16x128xf32> -> vector<16x128xf32>
    %181 = arith.addf %171, %180 : vector<16x128xf32>
    %c0_78 = arith.constant 0 : index
    %c128 = arith.constant 128 : index
    %182 = vector.load %arg14[%c0_78, %c128] : memref<128x256xf32, #tpu.memory_space<vmem>>, vector<128x128xf32>
    %cst_79 = arith.constant dense<0.000000e+00> : vector<16x128xf32>
    %183 = tpu.matmul %170, %182, %cst_79 {dimension_numbers = #tpu.dot_dimension_numbers<[1], [0], [0], [1], [0, 0, 1, 1], [], []>} : vector<16x128xf32>, vector<128x128xf32>, vector<16x128xf32> -> vector<16x128xf32>
    %c0_80 = arith.constant 0 : index
    %c128_81 = arith.constant 128 : index
    %184 = vector.load %arg15[%c0_80, %c128_81] : memref<1x256xf32, #tpu.memory_space<vmem>>, vector<1x128xf32>
    %185 = vector.broadcast %184 : vector<1x128xf32> to vector<16x128xf32>
    %186 = arith.addf %183, %185 : vector<16x128xf32>
    %cst_82 = arith.constant 0.000000e+00 : f32
    %187 = vector.broadcast %cst_82 : f32 to vector<16x128xf32>
    %188 = arith.maximumf %186, %187 : vector<16x128xf32>
    %c128_83 = arith.constant 128 : index
    %c0_84 = arith.constant 0 : index
    %189 = vector.load %arg16[%c128_83, %c0_84] : memref<256x128xf32, #tpu.memory_space<vmem>>, vector<128x128xf32>
    %cst_85 = arith.constant dense<0.000000e+00> : vector<16x128xf32>
    %190 = tpu.matmul %188, %189, %cst_85 {dimension_numbers = #tpu.dot_dimension_numbers<[1], [0], [0], [1], [0, 0, 1, 1], [], []>} : vector<16x128xf32>, vector<128x128xf32>, vector<16x128xf32> -> vector<16x128xf32>
    %191 = arith.addf %181, %190 : vector<16x128xf32>
    %c0_86 = arith.constant 0 : index
    %c0_87 = arith.constant 0 : index
    %192 = vector.load %arg17[%c0_86, %c0_87] : memref<1x128xf32, #tpu.memory_space<vmem>>, vector<1x128xf32>
    %193 = vector.broadcast %192 : vector<1x128xf32> to vector<16x128xf32>
    %194 = arith.addf %191, %193 : vector<16x128xf32>
    %195 = arith.addf %145, %194 : vector<16x128xf32>
    %c0_88 = arith.constant 0 : index
    %c0_89 = arith.constant 0 : index
    %c0_90 = arith.constant 0 : index
    %196 = vector.load %arg24[%c0_88, %c0_89, %c0_90] : memref<1x16x128xf32, #tpu.memory_space<vmem>>, vector<1x16x128xf32>
    %197 = vector.shape_cast %196 : vector<1x16x128xf32> to vector<16x128xf32>
    %198 = vector.shape_cast %195 : vector<16x128xf32> to vector<1x16x128xf32>
    tpu.vector_store %arg24[%c0_88, %c0_89, %c0_90], %198 {strides = array<i32>} : memref<1x16x128xf32, #tpu.memory_space<vmem>>, vector<1x16x128xf32>,
    return
  }
  func.func @transform_0(%arg0: i32, %arg1: memref<2xi32, #tpu.memory_space<smem>>) -> (i32, i32, i32) {
    %c0_i32 = arith.constant 0 : i32
    %c0_i32_0 = arith.constant 0 : i32
    %c0_i32_1 = arith.constant 0 : i32
    return %arg0, %c0_i32, %c0_i32_0 : i32, i32, i32
  }
  func.func @transform_1(%arg0: i32, %arg1: memref<2xi32, #tpu.memory_space<smem>>) -> (i32, i32, i32) {
    %c0_i32 = arith.constant 0 : i32
    %c0_i32_0 = arith.constant 0 : i32
    %c0_i32_1 = arith.constant 0 : i32
    return %arg0, %c0_i32, %c0_i32_0 : i32, i32, i32
  }
  func.func @transform_2(%arg0: i32, %arg1: memref<2xi32, #tpu.memory_space<smem>>) -> (i32, i32) {
    %c0_i32 = arith.constant 0 : i32
    %c0_i32_0 = arith.constant 0 : i32
    %c0_i32_1 = arith.constant 0 : i32
    return %c0_i32, %c0_i32_0 : i32, i32
  }
  func.func @transform_3(%arg0: i32, %arg1: memref<2xi32, #tpu.memory_space<smem>>) -> (i32, i32) {
    %c0_i32 = arith.constant 0 : i32
    %c0_i32_0 = arith.constant 0 : i32
    %c0_i32_1 = arith.constant 0 : i32
    return %c0_i32, %c0_i32_0 : i32, i32
  }
  func.func @transform_4(%arg0: i32, %arg1: memref<2xi32, #tpu.memory_space<smem>>) -> (i32, i32) {
    %c0_i32 = arith.constant 0 : i32
    %c0_i32_0 = arith.constant 0 : i32
    %c0_i32_1 = arith.constant 0 : i32
    return %c0_i32, %c0_i32_0 : i32, i32
  }
  func.func @transform_5(%arg0: i32, %arg1: memref<2xi32, #tpu.memory_space<smem>>) -> (i32, i32) {
    %c0_i32 = arith.constant 0 : i32
    %c0_i32_0 = arith.constant 0 : i32
    %c0_i32_1 = arith.constant 0 : i32
    return %c0_i32, %c0_i32_0 : i32, i32
  }
  func.func @transform_6(%arg0: i32, %arg1: memref<2xi32, #tpu.memory_space<smem>>) -> (i32, i32) {
    %c0_i32 = arith.constant 0 : i32
    %c0_i32_0 = arith.constant 0 : i32
    %c0_i32_1 = arith.constant 0 : i32
    return %c0_i32, %c0_i32_0 : i32, i32
  }
  func.func @transform_7(%arg0: i32, %arg1: memref<2xi32, #tpu.memory_space<smem>>) -> (i32, i32) {
    %c0_i32 = arith.constant 0 : i32
    %c0_i32_0 = arith.constant 0 : i32
    %c0_i32_1 = arith.constant 0 : i32
    return %c0_i32, %c0_i32_0 : i32, i32
  }
  func.func @transform_8(%arg0: i32, %arg1: memref<2xi32, #tpu.memory_space<smem>>) -> (i32, i32) {
    %c0_i32 = arith.constant 0 : i32
    %c0_i32_0 = arith.constant 0 : i32
    %c0_i32_1 = arith.constant 0 : i32
    return %c0_i32, %c0_i32_0 : i32, i32
  }
  func.func @transform_9(%arg0: i32, %arg1: memref<2xi32, #tpu.memory_space<smem>>) -> (i32, i32) {
    %c0_i32 = arith.constant 0 : i32
    %c0_i32_0 = arith.constant 0 : i32
    %c0_i32_1 = arith.constant 0 : i32
    return %c0_i32, %c0_i32_0 : i32, i32
  }
  func.func @transform_10(%arg0: i32, %arg1: memref<2xi32, #tpu.memory_space<smem>>) -> (i32, i32) {
    %c0_i32 = arith.constant 0 : i32
    %c0_i32_0 = arith.constant 0 : i32
    %c0_i32_1 = arith.constant 0 : i32
    return %c0_i32, %c0_i32_0 : i32, i32
  }
  func.func @transform_11(%arg0: i32, %arg1: memref<2xi32, #tpu.memory_space<smem>>) -> (i32, i32) {
    %c0_i32 = arith.constant 0 : i32
    %c0_i32_0 = arith.constant 0 : i32
    %c0_i32_1 = arith.constant 0 : i32
    return %c0_i32, %c0_i32_0 : i32, i32
  }
  func.func @transform_12(%arg0: i32, %arg1: memref<2xi32, #tpu.memory_space<smem>>) -> (i32, i32) {
    %c0_i32 = arith.constant 0 : i32
    %c0_i32_0 = arith.constant 0 : i32
    %c0_i32_1 = arith.constant 0 : i32
    return %c0_i32, %c0_i32_0 : i32, i32
  }
  func.func @transform_13(%arg0: i32, %arg1: memref<2xi32, #tpu.memory_space<smem>>) -> (i32, i32) {
    %c0_i32 = arith.constant 0 : i32
    %c0_i32_0 = arith.constant 0 : i32
    %c0_i32_1 = arith.constant 0 : i32
    return %c0_i32, %c0_i32_0 : i32, i32
  }
  func.func @transform_14(%arg0: i32, %arg1: memref<2xi32, #tpu.memory_space<smem>>) -> (i32, i32) {
    %c0_i32 = arith.constant 0 : i32
    %c0_i32_0 = arith.constant 0 : i32
    %c0_i32_1 = arith.constant 0 : i32
    return %c0_i32, %c0_i32_0 : i32, i32
  }
  func.func @transform_15(%arg0: i32, %arg1: memref<2xi32, #tpu.memory_space<smem>>) -> (i32, i32) {
    %c0_i32 = arith.constant 0 : i32
    %c0_i32_0 = arith.constant 0 : i32
    %c0_i32_1 = arith.constant 0 : i32
    return %c0_i32, %c0_i32_0 : i32, i32
  }
  func.func @transform_16(%arg0: i32, %arg1: memref<2xi32, #tpu.memory_space<smem>>) -> (i32, i32) {
    %c0_i32 = arith.constant 0 : i32
    %c0_i32_0 = arith.constant 0 : i32
    %c0_i32_1 = arith.constant 0 : i32
    return %c0_i32, %c0_i32_0 : i32, i32
  }
  func.func @transform_17(%arg0: i32, %arg1: memref<2xi32, #tpu.memory_space<smem>>) -> (i32, i32) {
    %c0_i32 = arith.constant 0 : i32
    %c0_i32_0 = arith.constant 0 : i32
    %c0_i32_1 = arith.constant 0 : i32
    return %c0_i32, %c0_i32_0 : i32, i32
  }
  func.func @transform_18(%arg0: i32, %arg1: memref<2xi32, #tpu.memory_space<smem>>) -> (i32, i32) {
    %c0_i32 = arith.constant 0 : i32
    %c0_i32_0 = arith.constant 0 : i32
    %c0_i32_1 = arith.constant 0 : i32
    return %c0_i32, %c0_i32_0 : i32, i32
  }
  func.func @transform_19(%arg0: i32, %arg1: memref<2xi32, #tpu.memory_space<smem>>) -> (i32, i32) {
    %c0_i32 = arith.constant 0 : i32
    %c0_i32_0 = arith.constant 0 : i32
    %c0_i32_1 = arith.constant 0 : i32
    return %c0_i32, %c0_i32_0 : i32, i32
  }
  func.func @transform_20(%arg0: i32, %arg1: memref<2xi32, #tpu.memory_space<smem>>) -> (i32, i32) {
    %c0_i32 = arith.constant 0 : i32
    %c0_i32_0 = arith.constant 0 : i32
    %c0_i32_1 = arith.constant 0 : i32
    return %c0_i32, %c0_i32_0 : i32, i32
  }
  func.func @transform_21(%arg0: i32, %arg1: memref<2xi32, #tpu.memory_space<smem>>) -> (i32, i32) {
    %c0_i32 = arith.constant 0 : i32
    %c0_i32_0 = arith.constant 0 : i32
    %c0_i32_1 = arith.constant 0 : i32
    return %c0_i32, %c0_i32_0 : i32, i32
  }
  func.func @transform_22(%arg0: i32, %arg1: memref<2xi32, #tpu.memory_space<smem>>) -> (i32, i32, i32) {
    %c0_i32 = arith.constant 0 : i32
    %c0_i32_0 = arith.constant 0 : i32
    %c0_i32_1 = arith.constant 0 : i32
    return %arg0, %c0_i32, %c0_i32_0 : i32, i32, i32
  }
}

</mosaic_0001>

<llo_original>
// kernel: tpu_custom_call.1
$region0: #{tpu_custom_call.1}
  #allocation0 [shape = 'u32[]', space=smem, size = 0x4, offset = 0x4, fixed_abs, tag = 'smem constant byte address 0x4 - core index']
  #allocation1 [shape = 'u32[144,128]{1,0:T(1,128)}', space=vmem, size = 0x12000, scoped, tag = 'internal scratch']
  #allocation2 [shape = 's32[1]{0}', space=sflag, size = 0x4, scoped, tag = 'scoped memory for tpu_custom_call.1']
  #allocation3 [shape = 'u8[512]{0}', space=smem, size = 0x200, scoped, tag = 'prefetched SMEM operand 0']
  %s0 = inlined_call_operand.hbm [shape: s32[2], index: 0, kind: input, shape index: {}]
  %s1 = inlined_call_operand.hbm [shape: f32[2,16,128], index: 1, kind: input, shape index: {}]
  %s2 = inlined_call_operand.hbm [shape: f32[2,16,128], index: 2, kind: input, shape index: {}]
  %s3 = inlined_call_operand.hbm [shape: f32[128,384], index: 3, kind: input, shape index: {}]
  %s4 = inlined_call_operand.vmem [shape: f32[1,384], index: 4, kind: input, shape index: {}]
  %s5 = inlined_call_operand.hbm [shape: f32[128,128], index: 5, kind: input, shape index: {}]
  %s6 = inlined_call_operand.vmem [shape: f32[1,128], index: 6, kind: input, shape index: {}]
  %s7 = inlined_call_operand.hbm [shape: f32[128,128], index: 7, kind: input, shape index: {}]
  %s8 = inlined_call_operand.vmem [shape: f32[1,128], index: 8, kind: input, shape index: {}]
  %s9 = inlined_call_operand.hbm [shape: f32[128,256], index: 9, kind: input, shape index: {}]
  %s10 = inlined_call_operand.vmem [shape: f32[1,256], index: 10, kind: input, shape index: {}]
  %s11 = inlined_call_operand.hbm [shape: f32[128,128], index: 11, kind: input, shape index: {}]
  %s12 = inlined_call_operand.vmem [shape: f32[1,128], index: 12, kind: input, shape index: {}]
  %s13 = inlined_call_operand.hbm [shape: f32[128,256], index: 13, kind: input, shape index: {}]
  %s14 = inlined_call_operand.vmem [shape: f32[1,256], index: 14, kind: input, shape index: {}]
  %s15 = inlined_call_operand.hbm [shape: f32[256,128], index: 15, kind: input, shape index: {}]
  %s16 = inlined_call_operand.vmem [shape: f32[1,128], index: 16, kind: input, shape index: {}]
  %s17 = inlined_call_operand.vmem [shape: f32[1,128], index: 17, kind: input, shape index: {}]
  %s18 = inlined_call_operand.vmem [shape: f32[1,128], index: 18, kind: input, shape index: {}]
  %s19 = inlined_call_operand.vmem [shape: f32[1,128], index: 19, kind: input, shape index: {}]
  %s20 = inlined_call_operand.vmem [shape: f32[1,128], index: 20, kind: input, shape index: {}]
  %s21 = inlined_call_operand.vmem [shape: f32[1,128], index: 21, kind: input, shape index: {}]
  %s22 = inlined_call_operand.vmem [shape: f32[1,128], index: 22, kind: input, shape index: {}]
  %s23 = inlined_call_operand.hbm [shape: f32[2,16,128], index: 23, kind: output, shape index: {}]
  %s24 = sld [smem:[#allocation0]]
  $region157: #{tpu_custom_call.1} parent=0
    _
  %s26 = ssub.s32 1, %s24
  %s27 = scalar_select 0, %s26, %s24
  %29 = dma.hbm_to_smem %s0, 16, [#allocation3], [#allocation2]
  %30 = dma.done [#allocation2], 16
  %31 = sfence
  $region1: #{tpu_custom_call.1} parent=0
    #allocation4 [shape = 'u8[16384]{0}', space=vmem, size = 0x4000, scoped, tag = 'input window, operand 1']
    #allocation5 [shape = 's32[2]{0}', space=sflag, size = 0x8, scoped, tag = 'scoped memory for tpu_custom_call.1']
    #allocation6 [shape = 's32[2]{0}', space=sflag, size = 0x8, scoped, tag = 'scoped memory for tpu_custom_call.1']
    #allocation7 [shape = 'u8[16384]{0}', space=vmem, size = 0x4000, scoped, tag = 'input window, operand 2']
    #allocation8 [shape = 's32[2]{0}', space=sflag, size = 0x8, scoped, tag = 'scoped memory for tpu_custom_call.1']
    #allocation9 [shape = 'u8[196608]{0}', space=vmem, size = 0x30000, scoped, tag = 'input window, operand 3, single buffered']
    #allocation10 [shape = 'u8[65536]{0}', space=vmem, size = 0x10000, scoped, tag = 'input window, operand 5, single buffered']
    #allocation11 [shape = 's32[1]{0}', space=sflag, size = 0x4, scoped, tag = 'scoped memory for tpu_custom_call.1']
    #allocation12 [shape = 'u8[65536]{0}', space=vmem, size = 0x10000, scoped, tag = 'input window, operand 7, single buffered']
    #allocation13 [shape = 'u8[131072]{0}', space=vmem, size = 0x20000, scoped, tag = 'input window, operand 9, single buffered']
    #allocation14 [shape = 's32[1]{0}', space=sflag, size = 0x4, scoped, tag = 'scoped memory for tpu_custom_call.1']
    #allocation15 [shape = 'u8[65536]{0}', space=vmem, size = 0x10000, scoped, tag = 'input window, operand 11, single buffered']
    #allocation16 [shape = 'u8[131072]{0}', space=vmem, size = 0x20000, scoped, tag = 'input window, operand 13, single buffered']
    #allocation17 [shape = 's32[1]{0}', space=sflag, size = 0x4, scoped, tag = 'scoped memory for tpu_custom_call.1']
    #allocation18 [shape = 'u8[131072]{0}', space=vmem, size = 0x20000, scoped, tag = 'input window, operand 15, single buffered']
    #allocation19 [shape = 'u8[16384]{0}', space=vmem, size = 0x4000, scoped, tag = 'output window, operand 0']
    %32 = vsyncpa [#allocation5], 0
    %s33 = scalar_lea.sflag [#allocation5], 1
    %34 = vsyncpa %s33, 0
    %35 = vsyncpa [#allocation8], 0
    %s36 = scalar_lea.sflag [#allocation8], 1
    %37 = vsyncpa %s36, 0
    %38 = vsyncpa [#allocation11], 0
    %39 = vsyncpa [#allocation14], 0
    %40 = vsyncpa [#allocation17], 0
    %41 = vsyncpa [#allocation6], 0
    %s42 = scalar_lea.sflag [#allocation6], 1
    %43 = vsyncpa %s42, 0
    loop: start=0, step=1, limit=4
    $region2: #{tpu_custom_call.1} parent=1 // loop_pre_header
      _
    $region3: #{tpu_custom_call.1} parent=1 // loop_header
      %s45 = sphi 0, %s49
      %p46 = scmp.ge.s32.totalorder %s45, 4
      %s55 = sphi 0, %s57
      %s58 = sphi 0, %s55
      %s59 = sphi 0, %s58
      %s75 = sphi 0, %s59
      %s81 = sphi 0, %s83
      %s84 = sphi 0, %s81
      %s85 = sphi 0, %s84
      %s101 = sphi 0, %s85
      %s105 = sphi 0, %s105
      %s107 = sphi 0, %s105
      %s108 = sphi 0, %s107
      %s122 = sphi 0, %s108
      %s126 = sphi 0, %s126
      %s128 = sphi 0, %s126
      %s129 = sphi 0, %s128
      %s143 = sphi 0, %s129
      %s147 = sphi 0, %s147
      %s149 = sphi 0, %s147
      %s150 = sphi 0, %s149
      %s164 = sphi 0, %s150
      %s168 = sphi 0, %s168
      %s170 = sphi 0, %s168
      %s171 = sphi 0, %s170
      %s185 = sphi 0, %s171
      %s189 = sphi 0, %s189
      %s191 = sphi 0, %s189
      %s192 = sphi 0, %s191
      %s206 = sphi 0, %s192
      %s210 = sphi 0, %s210
      %s212 = sphi 0, %s210
      %s213 = sphi 0, %s212
      %s227 = sphi 0, %s213
      %s231 = sphi 0, %s231
      %s233 = sphi 0, %s231
      %s234 = sphi 0, %s233
      %s248 = sphi 0, %s234
      %s252 = sphi 0, %s252
      %s254 = sphi 0, %s252
      %s255 = sphi 0, %s254
      %s269 = sphi 0, %s255
      %s273 = sphi 0, %s273
      %s275 = sphi 0, %s273
      %s276 = sphi 0, %s275
      %s290 = sphi 0, %s276
      %s294 = sphi 0, %s294
      %s296 = sphi 0, %s294
      %s297 = sphi 0, %s296
      %s311 = sphi 0, %s297
      %s315 = sphi 0, %s315
      %s317 = sphi 0, %s315
      %s318 = sphi 0, %s317
      %s332 = sphi 0, %s318
      %s336 = sphi 0, %s336
      %s338 = sphi 0, %s336
      %s339 = sphi 0, %s338
      %s353 = sphi 0, %s339
      %s357 = sphi 0, %s357
      %s359 = sphi 0, %s357
      %s360 = sphi 0, %s359
      %s374 = sphi 0, %s360
      %s378 = sphi 0, %s378
      %s380 = sphi 0, %s378
      %s381 = sphi 0, %s380
      %s395 = sphi 0, %s381
      %s399 = sphi 0, %s399
      %s401 = sphi 0, %s399
      %s402 = sphi 0, %s401
      %s416 = sphi 0, %s402
      %s420 = sphi 0, %s420
      %s422 = sphi 0, %s420
      %s423 = sphi 0, %s422
      %s437 = sphi 0, %s423
      %s441 = sphi 0, %s441
      %s443 = sphi 0, %s441
      %s444 = sphi 0, %s443
      %s458 = sphi 0, %s444
      %s462 = sphi 0, %s462
      %s464 = sphi 0, %s462
      %s465 = sphi 0, %s464
      %s479 = sphi 0, %s465
      %s483 = sphi 0, %s483
      %s485 = sphi 0, %s483
      %s486 = sphi 0, %s485
      %s500 = sphi 0, %s486
      %s504 = sphi 0, %s504
      %s506 = sphi 0, %s504
      %s507 = sphi 0, %s506
      %s521 = sphi 0, %s507
      %s527 = sphi 0, %s529
      %s530 = sphi 0, %s527
      %s531 = sphi 0, %s530
      %s547 = sphi 0, %s531
    $region4: #{tpu_custom_call.1} parent=1 // loop_header_branch
      %48 = sbr.rel (%p46) target = $region8
    $region5: #{tpu_custom_call.1} parent=1 // loop_body
      %s50 = ssub.s32 %s45, 1
      %s51 = ssub.s32 %s45, 2
      %s52 = sadd.s32 %s45, 1
      %s53 = ssub.s32 %s45, %s52
      %p54 = scmp.eq.s32.totalorder %s53, 0
      %s56 = sadd.s32 %s55, 1
      %s57 = scalar_select %p54, %s55, %s56
      %p60 = pneg %p54
      %p61 = scmp.eq.s32.totalorder %s45, 1
      %p62 = por %p60, %p61
      %p63 = scmp.ne.s32.totalorder %s55, %s58
      %p64 = scmp.eq.s32.totalorder %s45, 0
      %p65 = por %p63, %p64
      %p66 = scmp.ne.s32.totalorder %s55, %s58
      %p67 = scmp.eq.s32.totalorder %s50, 1
      %p68 = por %p66, %p67
      %p69 = scmp.ne.s32.totalorder %s58, %s59
      %p70 = scmp.eq.s32.totalorder %s50, 0
      %p71 = por %p69, %p70
      %p72 = scmp.ne.s32.totalorder %s58, %s59
      %p73 = scmp.eq.s32.totalorder %s51, 1
      %p74 = por %p72, %p73
      %p76 = scmp.ne.s32.totalorder %s59, %s75
      %p77 = scmp.eq.s32.totalorder %s51, 0
      %p78 = por %p76, %p77
      %s79 = ssub.s32 %s45, %s52
      %p80 = scmp.eq.s32.totalorder %s79, 0
      %s82 = sadd.s32 %s81, 1
      %s83 = scalar_select %p80, %s81, %s82
      %p86 = pneg %p80
      %p87 = scmp.eq.s32.totalorder %s45, 1
      %p88 = por %p86, %p87
      %p89 = scmp.ne.s32.totalorder %s81, %s84
      %p90 = scmp.eq.s32.totalorder %s45, 0
      %p91 = por %p89, %p90
      %p92 = scmp.ne.s32.totalorder %s81, %s84
      %p93 = scmp.eq.s32.totalorder %s50, 1
      %p94 = por %p92, %p93
      %p95 = scmp.ne.s32.totalorder %s84, %s85
      %p96 = scmp.eq.s32.totalorder %s50, 0
      %p97 = por %p95, %p96
      %p98 = scmp.ne.s32.totalorder %s84, %s85
      %p99 = scmp.eq.s32.totalorder %s51, 1
      %p100 = por %p98, %p99
      %p102 = scmp.ne.s32.totalorder %s85, %s101
      %p103 = scmp.eq.s32.totalorder %s51, 0
      %p104 = por %p102, %p103
      %s106 = sadd.s32 %s105, 1
      %p109 = scmp.eq.s32.totalorder %s45, 1
      %p110 = scmp.ne.s32.totalorder %s105, %s107
      %p111 = scmp.eq.s32.totalorder %s45, 0
      %p112 = por %p110, %p111
      %p113 = scmp.ne.s32.totalorder %s105, %s107
      %p114 = scmp.eq.s32.totalorder %s50, 1
      %p115 = por %p113, %p114
      %p116 = scmp.ne.s32.totalorder %s107, %s108
      %p117 = scmp.eq.s32.totalorder %s50, 0
      %p118 = por %p116, %p117
      %p119 = scmp.ne.s32.totalorder %s107, %s108
      %p120 = scmp.eq.s32.totalorder %s51, 1
      %p121 = por %p119, %p120
      %p123 = scmp.ne.s32.totalorder %s108, %s122
      %p124 = scmp.eq.s32.totalorder %s51, 0
      %p125 = por %p123, %p124
      %s127 = sadd.s32 %s126, 1
      %p130 = scmp.eq.s32.totalorder %s45, 1
      %p131 = scmp.ne.s32.totalorder %s126, %s128
      %p132 = scmp.eq.s32.totalorder %s45, 0
      %p133 = por %p131, %p132
      %p134 = scmp.ne.s32.totalorder %s126, %s128
      %p135 = scmp.eq.s32.totalorder %s50, 1
      %p136 = por %p134, %p135
      %p137 = scmp.ne.s32.totalorder %s128, %s129
      %p138 = scmp.eq.s32.totalorder %s50, 0
      %p139 = por %p137, %p138
      %p140 = scmp.ne.s32.totalorder %s128, %s129
      %p141 = scmp.eq.s32.totalorder %s51, 1
      %p142 = por %p140, %p141
      %p144 = scmp.ne.s32.totalorder %s129, %s143
      %p145 = scmp.eq.s32.totalorder %s51, 0
      %p146 = por %p144, %p145
      %s148 = sadd.s32 %s147, 1
      %p151 = scmp.eq.s32.totalorder %s45, 1
      %p152 = scmp.ne.s32.totalorder %s147, %s149
      %p153 = scmp.eq.s32.totalorder %s45, 0
      %p154 = por %p152, %p153
      %p155 = scmp.ne.s32.totalorder %s147, %s149
      %p156 = scmp.eq.s32.totalorder %s50, 1
      %p157 = por %p155, %p156
      %p158 = scmp.ne.s32.totalorder %s149, %s150
      %p159 = scmp.eq.s32.totalorder %s50, 0
      %p160 = por %p158, %p159
      %p161 = scmp.ne.s32.totalorder %s149, %s150
      %p162 = scmp.eq.s32.totalorder %s51, 1
      %p163 = por %p161, %p162
      %p165 = scmp.ne.s32.totalorder %s150, %s164
      %p166 = scmp.eq.s32.totalorder %s51, 0
      %p167 = por %p165, %p166
      %s169 = sadd.s32 %s168, 1
      %p172 = scmp.eq.s32.totalorder %s45, 1
      %p173 = scmp.ne.s32.totalorder %s168, %s170
      %p174 = scmp.eq.s32.totalorder %s45, 0
      %p175 = por %p173, %p174
      %p176 = scmp.ne.s32.totalorder %s168, %s170
      %p177 = scmp.eq.s32.totalorder %s50, 1
      %p178 = por %p176, %p177
      %p179 = scmp.ne.s32.totalorder %s170, %s171
      %p180 = scmp.eq.s32.totalorder %s50, 0
      %p181 = por %p179, %p180
      %p182 = scmp.ne.s32.totalorder %s170, %s171
      %p183 = scmp.eq.s32.totalorder %s51, 1
      %p184 = por %p182, %p183
      %p186 = scmp.ne.s32.totalorder %s171, %s185
      %p187 = scmp.eq.s32.totalorder %s51, 0
      %p188 = por %p186, %p187
      %s190 = sadd.s32 %s189, 1
      %p193 = scmp.eq.s32.totalorder %s45, 1
      %p194 = scmp.ne.s32.totalorder %s189, %s191
      %p195 = scmp.eq.s32.totalorder %s45, 0
      %p196 = por %p194, %p195
      %p197 = scmp.ne.s32.totalorder %s189, %s191
      %p198 = scmp.eq.s32.totalorder %s50, 1
      %p199 = por %p197, %p198
      %p200 = scmp.ne.s32.totalorder %s191, %s192
      %p201 = scmp.eq.s32.totalorder %s50, 0
      %p202 = por %p200, %p201
      %p203 = scmp.ne.s32.totalorder %s191, %s192
      %p204 = scmp.eq.s32.totalorder %s51, 1
      %p205 = por %p203, %p204
      %p207 = scmp.ne.s32.totalorder %s192, %s206
      %p208 = scmp.eq.s32.totalorder %s51, 0
      %p209 = por %p207, %p208
      %s211 = sadd.s32 %s210, 1
      %p214 = scmp.eq.s32.totalorder %s45, 1
      %p215 = scmp.ne.s32.totalorder %s210, %s212
      %p216 = scmp.eq.s32.totalorder %s45, 0
      %p217 = por %p215, %p216
      %p218 = scmp.ne.s32.totalorder %s210, %s212
      %p219 = scmp.eq.s32.totalorder %s50, 1
      %p220 = por %p218, %p219
      %p221 = scmp.ne.s32.totalorder %s212, %s213
      %p222 = scmp.eq.s32.totalorder %s50, 0
      %p223 = por %p221, %p222
      %p224 = scmp.ne.s32.totalorder %s212, %s213
      %p225 = scmp.eq.s32.totalorder %s51, 1
      %p226 = por %p224, %p225
      %p228 = scmp.ne.s32.totalorder %s213, %s227
      %p229 = scmp.eq.s32.totalorder %s51, 0
      %p230 = por %p228, %p229
      %s232 = sadd.s32 %s231, 1
      %p235 = scmp.eq.s32.totalorder %s45, 1
      %p236 = scmp.ne.s32.totalorder %s231, %s233
      %p237 = scmp.eq.s32.totalorder %s45, 0
      %p238 = por %p236, %p237
      %p239 = scmp.ne.s32.totalorder %s231, %s233
      %p240 = scmp.eq.s32.totalorder %s50, 1
      %p241 = por %p239, %p240
      %p242 = scmp.ne.s32.totalorder %s233, %s234
      %p243 = scmp.eq.s32.totalorder %s50, 0
      %p244 = por %p242, %p243
      %p245 = scmp.ne.s32.totalorder %s233, %s234
      %p246 = scmp.eq.s32.totalorder %s51, 1
      %p247 = por %p245, %p246
      %p249 = scmp.ne.s32.totalorder %s234, %s248
      %p250 = scmp.eq.s32.totalorder %s51, 0
      %p251 = por %p249, %p250
      %s253 = sadd.s32 %s252, 1
      %p256 = scmp.eq.s32.totalorder %s45, 1
      %p257 = scmp.ne.s32.totalorder %s252, %s254
      %p258 = scmp.eq.s32.totalorder %s45, 0
      %p259 = por %p257, %p258
      %p260 = scmp.ne.s32.totalorder %s252, %s254
      %p261 = scmp.eq.s32.totalorder %s50, 1
      %p262 = por %p260, %p261
      %p263 = scmp.ne.s32.totalorder %s254, %s255
      %p264 = scmp.eq.s32.totalorder %s50, 0
      %p265 = por %p263, %p264
      %p266 = scmp.ne.s32.totalorder %s254, %s255
      %p267 = scmp.eq.s32.totalorder %s51, 1
      %p268 = por %p266, %p267
      %p270 = scmp.ne.s32.totalorder %s255, %s269
      %p271 = scmp.eq.s32.totalorder %s51, 0
      %p272 = por %p270, %p271
      %s274 = sadd.s32 %s273, 1
      %p277 = scmp.eq.s32.totalorder %s45, 1
      %p278 = scmp.ne.s32.totalorder %s273, %s275
      %p279 = scmp.eq.s32.totalorder %s45, 0
      %p280 = por %p278, %p279
      %p281 = scmp.ne.s32.totalorder %s273, %s275
      %p282 = scmp.eq.s32.totalorder %s50, 1
      %p283 = por %p281, %p282
      %p284 = scmp.ne.s32.totalorder %s275, %s276
      %p285 = scmp.eq.s32.totalorder %s50, 0
      %p286 = por %p284, %p285
      %p287 = scmp.ne.s32.totalorder %s275, %s276
      %p288 = scmp.eq.s32.totalorder %s51, 1
      %p289 = por %p287, %p288
      %p291 = scmp.ne.s32.totalorder %s276, %s290
      %p292 = scmp.eq.s32.totalorder %s51, 0
      %p293 = por %p291, %p292
      %s295 = sadd.s32 %s294, 1
      %p298 = scmp.eq.s32.totalorder %s45, 1
      %p299 = scmp.ne.s32.totalorder %s294, %s296
      %p300 = scmp.eq.s32.totalorder %s45, 0
      %p301 = por %p299, %p300
      %p302 = scmp.ne.s32.totalorder %s294, %s296
      %p303 = scmp.eq.s32.totalorder %s50, 1
      %p304 = por %p302, %p303
      %p305 = scmp.ne.s32.totalorder %s296, %s297
      %p306 = scmp.eq.s32.totalorder %s50, 0
      %p307 = por %p305, %p306
      %p308 = scmp.ne.s32.totalorder %s296, %s297
      %p309 = scmp.eq.s32.totalorder %s51, 1
      %p310 = por %p308, %p309
      %p312 = scmp.ne.s32.totalorder %s297, %s311
      %p313 = scmp.eq.s32.totalorder %s51, 0
      %p314 = por %p312, %p313
      %s316 = sadd.s32 %s315, 1
      %p319 = scmp.eq.s32.totalorder %s45, 1
      %p320 = scmp.ne.s32.totalorder %s315, %s317
      %p321 = scmp.eq.s32.totalorder %s45, 0
      %p322 = por %p320, %p321
      %p323 = scmp.ne.s32.totalorder %s315, %s317
      %p324 = scmp.eq.s32.totalorder %s50, 1
      %p325 = por %p323, %p324
      %p326 = scmp.ne.s32.totalorder %s317, %s318
      %p327 = scmp.eq.s32.totalorder %s50, 0
      %p328 = por %p326, %p327
      %p329 = scmp.ne.s32.totalorder %s317, %s318
      %p330 = scmp.eq.s32.totalorder %s51, 1
      %p331 = por %p329, %p330
      %p333 = scmp.ne.s32.totalorder %s318, %s332
      %p334 = scmp.eq.s32.totalorder %s51, 0
      %p335 = por %p333, %p334
      %s337 = sadd.s32 %s336, 1
      %p340 = scmp.eq.s32.totalorder %s45, 1
      %p341 = scmp.ne.s32.totalorder %s336, %s338
      %p342 = scmp.eq.s32.totalorder %s45, 0
      %p343 = por %p341, %p342
      %p344 = scmp.ne.s32.totalorder %s336, %s338
      %p345 = scmp.eq.s32.totalorder %s50, 1
      %p346 = por %p344, %p345
      %p347 = scmp.ne.s32.totalorder %s338, %s339
      %p348 = scmp.eq.s32.totalorder %s50, 0
      %p349 = por %p347, %p348
      %p350 = scmp.ne.s32.totalorder %s338, %s339
      %p351 = scmp.eq.s32.totalorder %s51, 1
      %p352 = por %p350, %p351
      %p354 = scmp.ne.s32.totalorder %s339, %s353
      %p355 = scmp.eq.s32.totalorder %s51, 0
      %p356 = por %p354, %p355
      %s358 = sadd.s32 %s357, 1
      %p361 = scmp.eq.s32.totalorder %s45, 1
      %p362 = scmp.ne.s32.totalorder %s357, %s359
      %p363 = scmp.eq.s32.totalorder %s45, 0
      %p364 = por %p362, %p363
      %p365 = scmp.ne.s32.totalorder %s357, %s359
      %p366 = scmp.eq.s32.totalorder %s50, 1
      %p367 = por %p365, %p366
      %p368 = scmp.ne.s32.totalorder %s359, %s360
      %p369 = scmp.eq.s32.totalorder %s50, 0
      %p370 = por %p368, %p369
      %p371 = scmp.ne.s32.totalorder %s359, %s360
      %p372 = scmp.eq.s32.totalorder %s51, 1
      %p373 = por %p371, %p372
      %p375 = scmp.ne.s32.totalorder %s360, %s374
      %p376 = scmp.eq.s32.totalorder %s51, 0
      %p377 = por %p375, %p376
      %s379 = sadd.s32 %s378, 1
      %p382 = scmp.eq.s32.totalorder %s45, 1
      %p383 = scmp.ne.s32.totalorder %s378, %s380
      %p384 = scmp.eq.s32.totalorder %s45, 0
      %p385 = por %p383, %p384
      %p386 = scmp.ne.s32.totalorder %s378, %s380
      %p387 = scmp.eq.s32.totalorder %s50, 1
      %p388 = por %p386, %p387
      %p389 = scmp.ne.s32.totalorder %s380, %s381
      %p390 = scmp.eq.s32.totalorder %s50, 0
      %p391 = por %p389, %p390
      %p392 = scmp.ne.s32.totalorder %s380, %s381
      %p393 = scmp.eq.s32.totalorder %s51, 1
      %p394 = por %p392, %p393
      %p396 = scmp.ne.s32.totalorder %s381, %s395
      %p397 = scmp.eq.s32.totalorder %s51, 0
      %p398 = por %p396, %p397
      %s400 = sadd.s32 %s399, 1
      %p403 = scmp.eq.s32.totalorder %s45, 1
      %p404 = scmp.ne.s32.totalorder %s399, %s401
      %p405 = scmp.eq.s32.totalorder %s45, 0
      %p406 = por %p404, %p405
      %p407 = scmp.ne.s32.totalorder %s399, %s401
      %p408 = scmp.eq.s32.totalorder %s50, 1
      %p409 = por %p407, %p408
      %p410 = scmp.ne.s32.totalorder %s401, %s402
      %p411 = scmp.eq.s32.totalorder %s50, 0
      %p412 = por %p410, %p411
      %p413 = scmp.ne.s32.totalorder %s401, %s402
      %p414 = scmp.eq.s32.totalorder %s51, 1
      %p415 = por %p413, %p414
      %p417 = scmp.ne.s32.totalorder %s402, %s416
      %p418 = scmp.eq.s32.totalorder %s51, 0
      %p419 = por %p417, %p418
      %s421 = sadd.s32 %s420, 1
      %p424 = scmp.eq.s32.totalorder %s45, 1
      %p425 = scmp.ne.s32.totalorder %s420, %s422
      %p426 = scmp.eq.s32.totalorder %s45, 0
      %p427 = por %p425, %p426
      %p428 = scmp.ne.s32.totalorder %s420, %s422
      %p429 = scmp.eq.s32.totalorder %s50, 1
      %p430 = por %p428, %p429
      %p431 = scmp.ne.s32.totalorder %s422, %s423
      %p432 = scmp.eq.s32.totalorder %s50, 0
      %p433 = por %p431, %p432
      %p434 = scmp.ne.s32.totalorder %s422, %s423
      %p435 = scmp.eq.s32.totalorder %s51, 1
      %p436 = por %p434, %p435
      %p438 = scmp.ne.s32.totalorder %s423, %s437
      %p439 = scmp.eq.s32.totalorder %s51, 0
      %p440 = por %p438, %p439
      %s442 = sadd.s32 %s441, 1
      %p445 = scmp.eq.s32.totalorder %s45, 1
      %p446 = scmp.ne.s32.totalorder %s441, %s443
      %p447 = scmp.eq.s32.totalorder %s45, 0
      %p448 = por %p446, %p447
      %p449 = scmp.ne.s32.totalorder %s441, %s443
      %p450 = scmp.eq.s32.totalorder %s50, 1
      %p451 = por %p449, %p450
      %p452 = scmp.ne.s32.totalorder %s443, %s444
      %p453 = scmp.eq.s32.totalorder %s50, 0
      %p454 = por %p452, %p453
      %p455 = scmp.ne.s32.totalorder %s443, %s444
      %p456 = scmp.eq.s32.totalorder %s51, 1
      %p457 = por %p455, %p456
      %p459 = scmp.ne.s32.totalorder %s444, %s458
      %p460 = scmp.eq.s32.totalorder %s51, 0
      %p461 = por %p459, %p460
      %s463 = sadd.s32 %s462, 1
      %p466 = scmp.eq.s32.totalorder %s45, 1
      %p467 = scmp.ne.s32.totalorder %s462, %s464
      %p468 = scmp.eq.s32.totalorder %s45, 0
      %p469 = por %p467, %p468
      %p470 = scmp.ne.s32.totalorder %s462, %s464
      %p471 = scmp.eq.s32.totalorder %s50, 1
      %p472 = por %p470, %p471
      %p473 = scmp.ne.s32.totalorder %s464, %s465
      %p474 = scmp.eq.s32.totalorder %s50, 0
      %p475 = por %p473, %p474
      %p476 = scmp.ne.s32.totalorder %s464, %s465
      %p477 = scmp.eq.s32.totalorder %s51, 1
      %p478 = por %p476, %p477
      %p480 = scmp.ne.s32.totalorder %s465, %s479
      %p481 = scmp.eq.s32.totalorder %s51, 0
      %p482 = por %p480, %p481
      %s484 = sadd.s32 %s483, 1
      %p487 = scmp.eq.s32.totalorder %s45, 1
      %p488 = scmp.ne.s32.totalorder %s483, %s485
      %p489 = scmp.eq.s32.totalorder %s45, 0
      %p490 = por %p488, %p489
      %p491 = scmp.ne.s32.totalorder %s483, %s485
      %p492 = scmp.eq.s32.totalorder %s50, 1
      %p493 = por %p491, %p492
      %p494 = scmp.ne.s32.totalorder %s485, %s486
      %p495 = scmp.eq.s32.totalorder %s50, 0
      %p496 = por %p494, %p495
      %p497 = scmp.ne.s32.totalorder %s485, %s486
      %p498 = scmp.eq.s32.totalorder %s51, 1
      %p499 = por %p497, %p498
      %p501 = scmp.ne.s32.totalorder %s486, %s500
      %p502 = scmp.eq.s32.totalorder %s51, 0
      %p503 = por %p501, %p502
      %s505 = sadd.s32 %s504, 1
      %p508 = scmp.eq.s32.totalorder %s45, 1
      %p509 = scmp.ne.s32.totalorder %s504, %s506
      %p510 = scmp.eq.s32.totalorder %s45, 0
      %p511 = por %p509, %p510
      %p512 = scmp.ne.s32.totalorder %s504, %s506
      %p513 = scmp.eq.s32.totalorder %s50, 1
      %p514 = por %p512, %p513
      %p515 = scmp.ne.s32.totalorder %s506, %s507
      %p516 = scmp.eq.s32.totalorder %s50, 0
      %p517 = por %p515, %p516
      %p518 = scmp.ne.s32.totalorder %s506, %s507
      %p519 = scmp.eq.s32.totalorder %s51, 1
      %p520 = por %p518, %p519
      %p522 = scmp.ne.s32.totalorder %s507, %s521
      %p523 = scmp.eq.s32.totalorder %s51, 0
      %p524 = por %p522, %p523
      %s525 = ssub.s32 %s45, %s52
      %p526 = scmp.eq.s32.totalorder %s525, 0
      %s528 = sadd.s32 %s527, 1
      %s529 = scalar_select %p526, %s527, %s528
      %p532 = pneg %p526
      %p533 = scmp.eq.s32.totalorder %s45, 1
      %p534 = por %p532, %p533
      %p535 = scmp.ne.s32.totalorder %s527, %s530
      %p536 = scmp.eq.s32.totalorder %s45, 0
      %p537 = por %p535, %p536
      %p538 = scmp.ne.s32.totalorder %s527, %s530
      %p539 = scmp.eq.s32.totalorder %s50, 1
      %p540 = por %p538, %p539
      %p541 = scmp.ne.s32.totalorder %s530, %s531
      %p542 = scmp.eq.s32.totalorder %s50, 0
      %p543 = por %p541, %p542
      %p544 = scmp.ne.s32.totalorder %s530, %s531
      %p545 = scmp.eq.s32.totalorder %s51, 1
      %p546 = por %p544, %p545
      %p548 = scmp.ne.s32.totalorder %s531, %s547
      %p549 = scmp.eq.s32.totalorder %s51, 0
      %p550 = por %p548, %p549
      %p551 = scmp.le.s32.totalorder 1, %s45
      %p552 = scmp.lt.s32.totalorder %s45, 3
      %p553 = pnand %p551, %p552
      %p554 = pneg %p553
      // Predicated region
      $region9: #{tpu_custom_call.1} parent=5 // pred_check
        _
      $region10: #{tpu_custom_call.1} parent=5 // pred_check_branch
        %556 = sbr.rel (%p553) target = $region12
      $region11: #{tpu_custom_call.1} parent=5 // pred_region
        %s557 = ssub.s32 %s45, 1
        // Predicated region
        $region13: #{tpu_custom_call.1} parent=11 // pred_check
          %p558 = pneg %p118
        $region14: #{tpu_custom_call.1} parent=11 // pred_check_branch
          %560 = sbr.rel (%p558) target = $region16
        $region15: #{tpu_custom_call.1} parent=11 // pred_region
          %s562 = ssub.s32 6144, 6144
          %563 = vsyncadd [#allocation8], %s562
          %s564 = sshll.u32 [#allocation9], 4
          %s565 = int_to_ptr.vmem [resolvable:$true] %s564
          %570 = dma.hbm_to_vmem [thread:$0]  %s3, 6144, %s565, [#allocation8], 384, 384, 24
        $region16: #{tpu_custom_call.1} parent=11 // pred_fallthru
          _
        // Predicated region
        $region17: #{tpu_custom_call.1} parent=11 // pred_check
          %p571 = pneg %p139
        $region18: #{tpu_custom_call.1} parent=11 // pred_check_branch
          %573 = sbr.rel (%p571) target = $region20
        $region19: #{tpu_custom_call.1} parent=11 // pred_region
          _
        $region20: #{tpu_custom_call.1} parent=11 // pred_fallthru
          _
        // Predicated region
        $region21: #{tpu_custom_call.1} parent=11 // pred_check
          %p574 = pneg %p160
        $region22: #{tpu_custom_call.1} parent=11 // pred_check_branch
          %576 = sbr.rel (%p574) target = $region24
        $region23: #{tpu_custom_call.1} parent=11 // pred_region
          %s578 = ssub.s32 2048, 2048
          %579 = vsyncadd [#allocation11], %s578
          %s580 = sshll.u32 [#allocation10], 4
          %s581 = int_to_ptr.vmem [resolvable:$true] %s580
          %586 = dma.hbm_to_vmem [thread:$0]  %s5, 2048, %s581, [#allocation11], 128, 128, 8
        $region24: #{tpu_custom_call.1} parent=11 // pred_fallthru
          _
        // Predicated region
        $region25: #{tpu_custom_call.1} parent=11 // pred_check
          %p587 = pneg %p181
        $region26: #{tpu_custom_call.1} parent=11 // pred_check_branch
          %589 = sbr.rel (%p587) target = $region28
        $region27: #{tpu_custom_call.1} parent=11 // pred_region
          _
        $region28: #{tpu_custom_call.1} parent=11 // pred_fallthru
          _
        // Predicated region
        $region29: #{tpu_custom_call.1} parent=11 // pred_check
          %p590 = pneg %p202
        $region30: #{tpu_custom_call.1} parent=11 // pred_check_branch
          %592 = sbr.rel (%p590) target = $region32
        $region31: #{tpu_custom_call.1} parent=11 // pred_region
          %s594 = ssub.s32 2048, 2048
          %595 = vsyncadd [#allocation11], %s594
          %s596 = sshll.u32 [#allocation12], 4
          %s597 = int_to_ptr.vmem [resolvable:$true] %s596
          %602 = dma.hbm_to_vmem [thread:$0]  %s7, 2048, %s597, [#allocation11], 128, 128, 8
        $region32: #{tpu_custom_call.1} parent=11 // pred_fallthru
          _
        // Predicated region
        $region33: #{tpu_custom_call.1} parent=11 // pred_check
          %p603 = pneg %p223
        $region34: #{tpu_custom_call.1} parent=11 // pred_check_branch
          %605 = sbr.rel (%p603) target = $region36
        $region35: #{tpu_custom_call.1} parent=11 // pred_region
          _
        $region36: #{tpu_custom_call.1} parent=11 // pred_fallthru
          _
        // Predicated region
        $region37: #{tpu_custom_call.1} parent=11 // pred_check
          %p606 = pneg %p244
        $region38: #{tpu_custom_call.1} parent=11 // pred_check_branch
          %608 = sbr.rel (%p606) target = $region40
        $region39: #{tpu_custom_call.1} parent=11 // pred_region
          %s610 = ssub.s32 4096, 4096
          %611 = vsyncadd [#allocation14], %s610
          %s612 = sshll.u32 [#allocation13], 4
          %s613 = int_to_ptr.vmem [resolvable:$true] %s612
          %618 = dma.hbm_to_vmem [thread:$0]  %s9, 4096, %s613, [#allocation14], 256, 256, 16
        $region40: #{tpu_custom_call.1} parent=11 // pred_fallthru
          _
        // Predicated region
        $region41: #{tpu_custom_call.1} parent=11 // pred_check
          %p619 = pneg %p265
        $region42: #{tpu_custom_call.1} parent=11 // pred_check_branch
          %621 = sbr.rel (%p619) target = $region44
        $region43: #{tpu_custom_call.1} parent=11 // pred_region
          _
        $region44: #{tpu_custom_call.1} parent=11 // pred_fallthru
          _
        // Predicated region
        $region45: #{tpu_custom_call.1} parent=11 // pred_check
          %p622 = pneg %p286
        $region46: #{tpu_custom_call.1} parent=11 // pred_check_branch
          %624 = sbr.rel (%p622) target = $region48
        $region47: #{tpu_custom_call.1} parent=11 // pred_region
          %s626 = ssub.s32 2048, 2048
          %627 = vsyncadd [#allocation14], %s626
          %s628 = sshll.u32 [#allocation15], 4
          %s629 = int_to_ptr.vmem [resolvable:$true] %s628
          %634 = dma.hbm_to_vmem [thread:$0]  %s11, 2048, %s629, [#allocation14], 128, 128, 8
        $region48: #{tpu_custom_call.1} parent=11 // pred_fallthru
          _
        // Predicated region
        $region49: #{tpu_custom_call.1} parent=11 // pred_check
          %p635 = pneg %p307
        $region50: #{tpu_custom_call.1} parent=11 // pred_check_branch
          %637 = sbr.rel (%p635) target = $region52
        $region51: #{tpu_custom_call.1} parent=11 // pred_region
          _
        $region52: #{tpu_custom_call.1} parent=11 // pred_fallthru
          _
        // Predicated region
        $region53: #{tpu_custom_call.1} parent=11 // pred_check
          %p638 = pneg %p328
        $region54: #{tpu_custom_call.1} parent=11 // pred_check_branch
          %640 = sbr.rel (%p638) target = $region56
        $region55: #{tpu_custom_call.1} parent=11 // pred_region
          %s642 = ssub.s32 4096, 4096
          %643 = vsyncadd [#allocation17], %s642
          %s644 = sshll.u32 [#allocation16], 4
          %s645 = int_to_ptr.vmem [resolvable:$true] %s644
          %650 = dma.hbm_to_vmem [thread:$0]  %s13, 4096, %s645, [#allocation17], 256, 256, 16
        $region56: #{tpu_custom_call.1} parent=11 // pred_fallthru
          _
        // Predicated region
        $region57: #{tpu_custom_call.1} parent=11 // pred_check
          %p651 = pneg %p349
        $region58: #{tpu_custom_call.1} parent=11 // pred_check_branch
          %653 = sbr.rel (%p651) target = $region60
        $region59: #{tpu_custom_call.1} parent=11 // pred_region
          _
        $region60: #{tpu_custom_call.1} parent=11 // pred_fallthru
          _
        // Predicated region
        $region61: #{tpu_custom_call.1} parent=11 // pred_check
          %p654 = pneg %p370
        $region62: #{tpu_custom_call.1} parent=11 // pred_check_branch
          %656 = sbr.rel (%p654) target = $region64
        $region63: #{tpu_custom_call.1} parent=11 // pred_region
          %s658 = ssub.s32 4096, 4096
          %659 = vsyncadd [#allocation17], %s658
          %s660 = sshll.u32 [#allocation18], 4
          %s661 = int_to_ptr.vmem [resolvable:$true] %s660
          %666 = dma.hbm_to_vmem [thread:$0]  %s15, 4096, %s661, [#allocation17], 128, 128, 8
        $region64: #{tpu_custom_call.1} parent=11 // pred_fallthru
          _
        // Predicated region
        $region65: #{tpu_custom_call.1} parent=11 // pred_check
          %p667 = pneg %p391
        $region66: #{tpu_custom_call.1} parent=11 // pred_check_branch
          %669 = sbr.rel (%p667) target = $region68
        $region67: #{tpu_custom_call.1} parent=11 // pred_region
          _
        $region68: #{tpu_custom_call.1} parent=11 // pred_fallthru
          _
        // Predicated region
        $region69: #{tpu_custom_call.1} parent=11 // pred_check
          %p670 = pneg %p412
        $region70: #{tpu_custom_call.1} parent=11 // pred_check_branch
          %672 = sbr.rel (%p670) target = $region72
        $region71: #{tpu_custom_call.1} parent=11 // pred_region
          _
        $region72: #{tpu_custom_call.1} parent=11 // pred_fallthru
          _
        // Predicated region
        $region73: #{tpu_custom_call.1} parent=11 // pred_check
          %p673 = pneg %p433
        $region74: #{tpu_custom_call.1} parent=11 // pred_check_branch
          %675 = sbr.rel (%p673) target = $region76
        $region75: #{tpu_custom_call.1} parent=11 // pred_region
          _
        $region76: #{tpu_custom_call.1} parent=11 // pred_fallthru
          _
        // Predicated region
        $region77: #{tpu_custom_call.1} parent=11 // pred_check
          %p676 = pneg %p454
        $region78: #{tpu_custom_call.1} parent=11 // pred_check_branch
          %678 = sbr.rel (%p676) target = $region80
        $region79: #{tpu_custom_call.1} parent=11 // pred_region
          _
        $region80: #{tpu_custom_call.1} parent=11 // pred_fallthru
          _
        // Predicated region
        $region81: #{tpu_custom_call.1} parent=11 // pred_check
          %p679 = pneg %p475
        $region82: #{tpu_custom_call.1} parent=11 // pred_check_branch
          %681 = sbr.rel (%p679) target = $region84
        $region83: #{tpu_custom_call.1} parent=11 // pred_region
          _
        $region84: #{tpu_custom_call.1} parent=11 // pred_fallthru
          _
        // Predicated region
        $region85: #{tpu_custom_call.1} parent=11 // pred_check
          %p682 = pneg %p496
        $region86: #{tpu_custom_call.1} parent=11 // pred_check_branch
          %684 = sbr.rel (%p682) target = $region88
        $region87: #{tpu_custom_call.1} parent=11 // pred_region
          _
        $region88: #{tpu_custom_call.1} parent=11 // pred_fallthru
          _
        // Predicated region
        $region89: #{tpu_custom_call.1} parent=11 // pred_check
          %p685 = pneg %p517
        $region90: #{tpu_custom_call.1} parent=11 // pred_check_branch
          %687 = sbr.rel (%p685) target = $region92
        $region91: #{tpu_custom_call.1} parent=11 // pred_region
          _
        $region92: #{tpu_custom_call.1} parent=11 // pred_fallthru
          _
      $region12: #{tpu_custom_call.1} parent=5 // pred_fallthru
        _
      %p688 = scmp.lt.s32.totalorder %s45, 2
      // Predicated region
      $region93: #{tpu_custom_call.1} parent=5 // pred_check
        %p689 = pneg %p688
      $region94: #{tpu_custom_call.1} parent=5 // pred_check_branch
        %691 = sbr.rel (%p689) target = $region96
      $region95: #{tpu_custom_call.1} parent=5 // pred_region
        // Predicated region
        $region97: #{tpu_custom_call.1} parent=95 // pred_check
          %p692 = pneg %p65
        $region98: #{tpu_custom_call.1} parent=95 // pred_check_branch
          %694 = sbr.rel (%p692) target = $region100
        $region99: #{tpu_custom_call.1} parent=95 // pred_region
          %s695 = sand.u32 %s55, 1
          %s696 = scalar_lea.sflag [#allocation5], %s695
          %s697 = sand.u32 %s55, 1
          %s698 = smul.addr %s697, 16
          %s699 = scalar_lea.vmem [#allocation4], %s698
          %s701 = ssub.s32 256, 256
          %702 = vsyncadd %s696, %s701
          %s703 = smul.addr %s45, 2
          %s704 = smul.addr %s703, 128
          %s705 = scalar_lea.hbm %s1, %s704
          %s706 = sshll.u32 %s699, 4
          %s707 = int_to_ptr.vmem [resolvable:$true] %s706
          %712 = dma.hbm_to_vmem [thread:$0]  %s705, 256, %s707, %s696, 128, 128, 8
        $region100: #{tpu_custom_call.1} parent=95 // pred_fallthru
          _
        // Predicated region
        $region101: #{tpu_custom_call.1} parent=95 // pred_check
          %p713 = pneg %p91
        $region102: #{tpu_custom_call.1} parent=95 // pred_check_branch
          %715 = sbr.rel (%p713) target = $region104
        $region103: #{tpu_custom_call.1} parent=95 // pred_region
          %s716 = sand.u32 %s45, 1
          %s717 = scalar_lea.sflag [#allocation8], %s716
          %s718 = sand.u32 %s81, 1
          %s719 = smul.addr %s718, 16
          %s720 = scalar_lea.vmem [#allocation7], %s719
          %s722 = ssub.s32 256, 256
          %723 = vsyncadd %s717, %s722
          %s724 = smul.addr %s45, 2
          %s725 = smul.addr %s724, 128
          %s726 = scalar_lea.hbm %s2, %s725
          %s727 = sshll.u32 %s720, 4
          %s728 = int_to_ptr.vmem [resolvable:$true] %s727
          %733 = dma.hbm_to_vmem [thread:$0]  %s726, 256, %s728, %s717, 128, 128, 8
        $region104: #{tpu_custom_call.1} parent=95 // pred_fallthru
          _
      $region96: #{tpu_custom_call.1} parent=5 // pred_fallthru
        _
      %p734 = scmp.le.s32.totalorder 1, %s45
      %p735 = scmp.lt.s32.totalorder %s45, 3
      %p736 = pnand %p734, %p735
      %p737 = pneg %p736
      // Predicated region
      $region105: #{tpu_custom_call.1} parent=5 // pred_check
        _
      $region106: #{tpu_custom_call.1} parent=5 // pred_check_branch
        %739 = sbr.rel (%p736) target = $region108
      $region107: #{tpu_custom_call.1} parent=5 // pred_region
        %s740 = ssub.s32 %s45, 1
        %s741 = sand.u32 %s58, 1
        %s742 = scalar_lea.sflag [#allocation5], %s741
        %s743 = sand.u32 %s58, 1
        %s744 = smul.addr %s743, 16
        %s745 = scalar_lea.vmem [#allocation4], %s744
        // Predicated region
        $region109: #{tpu_custom_call.1} parent=107 // pred_check
          %p746 = pneg %p71
        $region110: #{tpu_custom_call.1} parent=107 // pred_check_branch
          %748 = sbr.rel (%p746) target = $region112
        $region111: #{tpu_custom_call.1} parent=107 // pred_region
          %749 = dma.done %s742, 256
        $region112: #{tpu_custom_call.1} parent=107 // pred_fallthru
          _
        %s750 = sand.u32 %s50, 1
        %s751 = scalar_lea.sflag [#allocation8], %s750
        %s752 = sand.u32 %s84, 1
        %s753 = smul.addr %s752, 16
        %s754 = scalar_lea.vmem [#allocation7], %s753
        // Predicated region
        $region113: #{tpu_custom_call.1} parent=107 // pred_check
          %p755 = pneg %p97
        $region114: #{tpu_custom_call.1} parent=107 // pred_check_branch
          %757 = sbr.rel (%p755) target = $region116
        $region115: #{tpu_custom_call.1} parent=107 // pred_region
          %758 = dma.done %s751, 256
        $region116: #{tpu_custom_call.1} parent=107 // pred_fallthru
          _
        // Predicated region
        $region117: #{tpu_custom_call.1} parent=107 // pred_check
          %p759 = pneg %p118
        $region118: #{tpu_custom_call.1} parent=107 // pred_check_branch
          %761 = sbr.rel (%p759) target = $region120
        $region119: #{tpu_custom_call.1} parent=107 // pred_region
          %762 = dma.done [#allocation8], 6144
        $region120: #{tpu_custom_call.1} parent=107 // pred_fallthru
          _
        // Predicated region
        $region121: #{tpu_custom_call.1} parent=107 // pred_check
          %p763 = pneg %p160
        $region122: #{tpu_custom_call.1} parent=107 // pred_check_branch
          %765 = sbr.rel (%p763) target = $region124
        $region123: #{tpu_custom_call.1} parent=107 // pred_region
          %766 = dma.done [#allocation11], 2048
        $region124: #{tpu_custom_call.1} parent=107 // pred_fallthru
          _
        // Predicated region
        $region125: #{tpu_custom_call.1} parent=107 // pred_check
          %p767 = pneg %p202
        $region126: #{tpu_custom_call.1} parent=107 // pred_check_branch
          %769 = sbr.rel (%p767) target = $region128
        $region127: #{tpu_custom_call.1} parent=107 // pred_region
          %770 = dma.done [#allocation11], 2048
        $region128: #{tpu_custom_call.1} parent=107 // pred_fallthru
          _
        // Predicated region
        $region129: #{tpu_custom_call.1} parent=107 // pred_check
          %p771 = pneg %p244
        $region130: #{tpu_custom_call.1} parent=107 // pred_check_branch
          %773 = sbr.rel (%p771) target = $region132
        $region131: #{tpu_custom_call.1} parent=107 // pred_region
          %774 = dma.done [#allocation14], 4096
        $region132: #{tpu_custom_call.1} parent=107 // pred_fallthru
          _
        // Predicated region
        $region133: #{tpu_custom_call.1} parent=107 // pred_check
          %p775 = pneg %p286
        $region134: #{tpu_custom_call.1} parent=107 // pred_check_branch
          %777 = sbr.rel (%p775) target = $region136
        $region135: #{tpu_custom_call.1} parent=107 // pred_region
          %778 = dma.done [#allocation14], 2048
        $region136: #{tpu_custom_call.1} parent=107 // pred_fallthru
          _
        // Predicated region
        $region137: #{tpu_custom_call.1} parent=107 // pred_check
          %p779 = pneg %p328
        $region138: #{tpu_custom_call.1} parent=107 // pred_check_branch
          %781 = sbr.rel (%p779) target = $region140
        $region139: #{tpu_custom_call.1} parent=107 // pred_region
          %782 = dma.done [#allocation17], 4096
        $region140: #{tpu_custom_call.1} parent=107 // pred_fallthru
          _
        // Predicated region
        $region141: #{tpu_custom_call.1} parent=107 // pred_check
          %p783 = pneg %p370
        $region142: #{tpu_custom_call.1} parent=107 // pred_check_branch
          %785 = sbr.rel (%p783) target = $region144
        $region143: #{tpu_custom_call.1} parent=107 // pred_region
          %786 = dma.done [#allocation17], 4096
        $region144: #{tpu_custom_call.1} parent=107 // pred_fallthru
          _
        %s787 = sand.u32 %s58, 1
        %s788 = scalar_lea.sflag [#allocation5], %s787
        %s789 = sand.u32 %s58, 1
        %s790 = smul.addr %s789, 16
        %s791 = scalar_lea.vmem [#allocation4], %s790
        %p792 = pneg %p71
        %p793 = pneg %p68
        %s794 = sand.u32 %s50, 1
        %s795 = scalar_lea.sflag [#allocation8], %s794
        %s796 = sand.u32 %s84, 1
        %s797 = smul.addr %s796, 16
        %s798 = scalar_lea.vmem [#allocation7], %s797
        %p799 = pneg %p97
        %p800 = pneg %p94
        %p801 = pneg %p118
        %p802 = pneg %p115
        %p803 = pneg %p139
        %p804 = pneg %p136
        %p805 = pneg %p160
        %p806 = pneg %p157
        %p807 = pneg %p181
        %p808 = pneg %p178
        %p809 = pneg %p202
        %p810 = pneg %p199
        %p811 = pneg %p223
        %p812 = pneg %p220
        %p813 = pneg %p244
        %p814 = pneg %p241
        %p815 = pneg %p265
        %p816 = pneg %p262
        %p817 = pneg %p286
        %p818 = pneg %p283
        %p819 = pneg %p307
        %p820 = pneg %p304
        %p821 = pneg %p328
        %p822 = pneg %p325
        %p823 = pneg %p349
        %p824 = pneg %p346
        %p825 = pneg %p370
        %p826 = pneg %p367
        %p827 = pneg %p391
        %p828 = pneg %p388
        %p829 = pneg %p412
        %p830 = pneg %p409
        %p831 = pneg %p433
        %p832 = pneg %p430
        %p833 = pneg %p454
        %p834 = pneg %p451
        %p835 = pneg %p475
        %p836 = pneg %p472
        %p837 = pneg %p496
        %p838 = pneg %p493
        %p839 = pneg %p517
        %p840 = pneg %p514
        %p841 = pneg %p543
        %p842 = pneg %p540
        %s843 = sand.u32 %s530, 1
        %s844 = scalar_lea.sflag [#allocation6], %s843
        %s845 = sand.u32 %s530, 1
        %s846 = smul.addr %s845, 16
        %s847 = scalar_lea.vmem [#allocation19], %s846
        %v848 = vld [vmem:[%s745] sm:$0xff]
        %v849 = vld [vmem:[%s745 + $0x8] sm:$0xff]
        %v850 = vld [vmem:[%s754] sm:$0xff]
        %v851 = vld [vmem:[%s754 + $0x8] sm:$0xff]
        %v852 = vlaneseq
        %v853 = vshrl.u32 %v852, 7
        %v854 = vadd.s32 %v853, 8
        %v855 = vlaneseq
        %v856 = vand.u32 %v855, 127
        %vm857 = vcmp.ge.s32.totalorder %v853, %v856
        %vm858 = vcmp.ge.s32.totalorder %v854, %v856
        %s859 = sld [smem:[#allocation3 + %s50]]
        %v860 = vstv %s859
        %vm861 = vcmp.lt.s32.totalorder %v856, %v860
        %862 = vadd.xlane.f32.xlu0 %v848
        %v863 = vpop.xlane.xlu0 %862
        %864 = vadd.xlane.f32.xlu0 %v849
        %v865 = vpop.xlane.xlu0 %864
        %v866 = vrcp.pop 128.0
        %v867 = vmul.f32 %v863, %v866
        %v868 = vmul.f32 %v865, %v866
        %v869 = vsub.f32 %v848, %v867
        %v870 = vsub.f32 %v849, %v868
        %v871 = vmul.f32 %v869, %v869
        %v872 = vmul.f32 %v870, %v870
        %873 = vadd.xlane.f32.xlu0 %v871
        %v874 = vpop.xlane.xlu0 %873
        %875 = vadd.xlane.f32.xlu0 %v872
        %v876 = vpop.xlane.xlu0 %875
        %v877 = vrcp.pop 127.0
        %v878 = vmul.f32 %v874, %v877
        %v879 = vmul.f32 %v876, %v877
        %v880 = vrsqrt.pop %v878
        %v881 = vmul.f32 %v878, %v880
        %vm882 = vcmp.eq.f32.partialorder %v878, inf
        %v883 = vsel %vm882, %v878, %v881
        %vm884 = vcmp.eq.f32.partialorder %v878, 0.0
        %v885 = vand.u32 %v878, 2147483648
        %v886 = vsel %vm884, %v885, %v883
        %v887 = vrsqrt.pop %v879
        %v888 = vmul.f32 %v879, %v887
        %vm889 = vcmp.eq.f32.partialorder %v879, inf
        %v890 = vsel %vm889, %v879, %v888
        %vm891 = vcmp.eq.f32.partialorder %v879, 0.0
        %v892 = vand.u32 %v879, 2147483648
        %v893 = vsel %vm891, %v892, %v890
        %v894 = vadd.f32 %v886, 1e-06
        %v895 = vadd.f32 %v893, 1e-06
        %v896 = vrcp.pop %v894
        %v897 = vrcp.pop %v895
        %v898 = vld [vmem:[%s17] sm:$0x1]
        %v900 = vlaneseq
        %v901 = vshrl.u32 %v900, 7
        %v902 = vsub.s32 0, %v901
        %v903 = vrot.slane %v898, %v902
        %v905 = vmul.f32 %v903, %v869
        %v906 = vmul.f32 %v903, %v870
        %v907 = vmul.f32 %v905, %v896
        %v908 = vmul.f32 %v906, %v897
        %v909 = vld [vmem:[%s18] sm:$0x1]
        %v911 = vlaneseq
        %v912 = vshrl.u32 %v911, 7
        %v913 = vsub.s32 0, %v912
        %v914 = vrot.slane %v909, %v913
        %v916 = vadd.f32 %v907, %v914
        %v917 = vadd.f32 %v908, %v914
        %v918 = vld [vmem:[#allocation9] sm:$0xff]
        %v919 = vld [vmem:[#allocation9 + $0x8] sm:$0xff]
        %v920 = vld [vmem:[#allocation9 + $0x10] sm:$0xff]
        %v921 = vld [vmem:[#allocation9 + $0x18] sm:$0xff]
        %v922 = vld [vmem:[#allocation9 + $0x20] sm:$0xff]
        %v923 = vld [vmem:[#allocation9 + $0x28] sm:$0xff]
        %v924 = vld [vmem:[#allocation9 + $0x30] sm:$0xff]
        %v925 = vld [vmem:[#allocation9 + $0x38] sm:$0xff]
        %v926 = vld [vmem:[#allocation9 + $0x40] sm:$0xff]
        %v927 = vld [vmem:[#allocation9 + $0x48] sm:$0xff]
        %v928 = vld [vmem:[#allocation9 + $0x50] sm:$0xff]
        %v929 = vld [vmem:[#allocation9 + $0x58] sm:$0xff]
        %v930 = vld [vmem:[#allocation9 + $0x60] sm:$0xff]
        %v931 = vld [vmem:[#allocation9 + $0x68] sm:$0xff]
        %v932 = vld [vmem:[#allocation9 + $0x70] sm:$0xff]
        %v933 = vld [vmem:[#allocation9 + $0x78] sm:$0xff]
        %v934 = vld [vmem:[#allocation9 + $0x80] sm:$0xff]
        %v935 = vld [vmem:[#allocation9 + $0x88] sm:$0xff]
        %v936 = vld [vmem:[#allocation9 + $0x90] sm:$0xff]
        %v937 = vld [vmem:[#allocation9 + $0x98] sm:$0xff]
        %v938 = vld [vmem:[#allocation9 + $0xa0] sm:$0xff]
        %v939 = vld [vmem:[#allocation9 + $0xa8] sm:$0xff]
        %v940 = vld [vmem:[#allocation9 + $0xb0] sm:$0xff]
        %v941 = vld [vmem:[#allocation9 + $0xb8] sm:$0xff]
        %v942 = vld [vmem:[#allocation9 + $0xc0] sm:$0xff]
        %v943 = vld [vmem:[#allocation9 + $0xc8] sm:$0xff]
        %v944 = vld [vmem:[#allocation9 + $0xd0] sm:$0xff]
        %v945 = vld [vmem:[#allocation9 + $0xd8] sm:$0xff]
        %v946 = vld [vmem:[#allocation9 + $0xe0] sm:$0xff]
        %v947 = vld [vmem:[#allocation9 + $0xe8] sm:$0xff]
        %v948 = vld [vmem:[#allocation9 + $0xf0] sm:$0xff]
        %v949 = vld [vmem:[#allocation9 + $0xf8] sm:$0xff]
        %v950 = vld [vmem:[#allocation9 + $0x100] sm:$0xff]
        %v951 = vld [vmem:[#allocation9 + $0x108] sm:$0xff]
        %v952 = vld [vmem:[#allocation9 + $0x110] sm:$0xff]
        %v953 = vld [vmem:[#allocation9 + $0x118] sm:$0xff]
        %v954 = vld [vmem:[#allocation9 + $0x120] sm:$0xff]
        %v955 = vld [vmem:[#allocation9 + $0x128] sm:$0xff]
        %v956 = vld [vmem:[#allocation9 + $0x130] sm:$0xff]
        %v957 = vld [vmem:[#allocation9 + $0x138] sm:$0xff]
        %v958 = vld [vmem:[#allocation9 + $0x140] sm:$0xff]
        %v959 = vld [vmem:[#allocation9 + $0x148] sm:$0xff]
        %v960 = vld [vmem:[#allocation9 + $0x150] sm:$0xff]
        %v961 = vld [vmem:[#allocation9 + $0x158] sm:$0xff]
        %v962 = vld [vmem:[#allocation9 + $0x160] sm:$0xff]
        %v963 = vld [vmem:[#allocation9 + $0x168] sm:$0xff]
        %v964 = vld [vmem:[#allocation9 + $0x170] sm:$0xff]
        %v965 = vld [vmem:[#allocation9 + $0x178] sm:$0xff]
        %v966 = vld [vmem:[%s4] sm:$0x7]
        %v968 = vlaneseq
        %v969 = vshrl.u32 %v968, 7
        %v970 = vsub.s32 0, %v969
        %v971 = vrot.slane %v966, %v970
        %v972 = vlaneseq
        %v973 = vshrl.u32 %v972, 7
        %v974 = vsub.s32 1, %v973
        %v975 = vrot.slane %v966, %v974
        %v976 = vlaneseq
        %v977 = vshrl.u32 %v976, 7
        %v978 = vsub.s32 2, %v977
        %v979 = vrot.slane %v966, %v978
        %983 = vmatprep.subr.mxu0 %v919
        %984 = vmatpush1.msra.mxu0 %v918
        %985 = vmatprep.subr.mxu0 %v922
        %986 = vmatpush1.msra.mxu0 %v921
        %987 = vmatprep.subr.mxu0 %v925
        %988 = vmatpush1.msra.mxu0 %v924
        %989 = vmatprep.subr.mxu0 %v928
        %990 = vmatpush1.msra.mxu0 %v927
        %991 = vmatprep.subr.mxu0 %v931
        %992 = vmatpush1.msra.mxu0 %v930
        %993 = vmatprep.subr.mxu0 %v934
        %994 = vmatpush1.msra.mxu0 %v933
        %995 = vmatprep.subr.mxu0 %v937
        %996 = vmatpush1.msra.mxu0 %v936
        %997 = vmatprep.subr.mxu0 %v940
        %998 = vmatpush1.msra.mxu0 %v939
        %999 = vmatprep.subr.mxu0 %v943
        %1000 = vmatpush1.msra.mxu0 %v942
        %1001 = vmatprep.subr.mxu0 %v946
        %1002 = vmatpush1.msra.mxu0 %v945
        %1003 = vmatprep.subr.mxu0 %v949
        %1004 = vmatpush1.msra.mxu0 %v948
        %1005 = vmatprep.subr.mxu0 %v952
        %1006 = vmatpush1.msra.mxu0 %v951
        %1007 = vmatprep.subr.mxu0 %v955
        %1008 = vmatpush1.msra.mxu0 %v954
        %1009 = vmatprep.subr.mxu0 %v958
        %1010 = vmatpush1.msra.mxu0 %v957
        %1011 = vmatprep.subr.mxu0 %v961
        %1012 = vmatpush1.msra.mxu0 %v960
        %1013 = vmatprep.subr.mxu0 %v964
        %1014 = vmatpush1.msra.mxu0 %v963
        %1015 = vmatprep.subr.mxu0 0.0
        %1016 = vmatpush1.msra.mxu0 0.0
        %1017 = vmatprep.subr.mxu0 0.0
        %1018 = vmatpush1.msra.mxu0 0.0
        %1019 = vmatprep.subr.mxu0 0.0
        %1020 = vmatpush1.msra.mxu0 0.0
        %1021 = vmatprep.subr.mxu0 0.0
        %1022 = vmatpush1.msra.mxu0 0.0
        %1023 = vmatprep.subr.mxu0 0.0
        %1024 = vmatpush1.msra.mxu0 0.0
        %1025 = vmatprep.subr.mxu0 0.0
        %1026 = vmatpush1.msra.mxu0 0.0
        %1027 = vmatprep.subr.mxu0 0.0
        %1028 = vmatpush1.msra.mxu0 0.0
        %1029 = vmatprep.subr.mxu0 0.0
        %1030 = vmatpush1.msra.mxu0 0.0
        %1031 = vmatprep.subr.mxu0 0.0
        %1032 = vmatpush1.msra.mxu0 0.0
        %1033 = vmatprep.subr.mxu0 0.0
        %1034 = vmatpush1.msra.mxu0 0.0
        %1035 = vmatprep.subr.mxu0 0.0
        %1036 = vmatpush1.msra.mxu0 0.0
        %1037 = vmatprep.subr.mxu0 0.0
        %1038 = vmatpush1.msra.mxu0 0.0
        %1039 = vmatprep.subr.mxu0 0.0
        %1040 = vmatpush1.msra.mxu0 0.0
        %1041 = vmatprep.subr.mxu0 0.0
        %1042 = vmatpush1.msra.mxu0 0.0
        %1043 = vmatprep.subr.mxu0 0.0
        %1044 = vmatpush1.msra.mxu0 0.0
        %1045 = vmatprep.subr.mxu0 0.0
        %1046 = vmatpush1.msra.mxu0 0.0
        %1047 = vmatprep.mubr.f32.mxu0 0.0
        %1048 = vmatmul.mubr.f32.gmra.mrb[0].mxu0 %v916
        %v1049 = vpop.f32.mrb[0].mxu0
        %v1050 = vadd.f32 %v971, %v1049
        %v1051 = vpop.f32.mrb[0].mxu0
        %v1052 = vadd.f32 %v975, %v1051
        %1053 = vmatprep.mubr.f32.mxu0 0.0
        %1054 = vmatmul.mubr.f32.gmra.mrb[0].mxu0 %v917
        %v1055 = vpop.f32.mrb[0].mxu0
        %v1056 = vadd.f32 %v971, %v1055
        %v1057 = vpop.f32.mrb[0].mxu0
        %v1058 = vadd.f32 %v975, %v1057
        %1059 = vdwg.mxu0
        %1060 = vmatprep.subr.mxu0 0.0
        %1061 = vmatpush1.msra.mxu0 %v920
        %1062 = vmatprep.subr.mxu0 0.0
        %1063 = vmatpush1.msra.mxu0 %v923
        %1064 = vmatprep.subr.mxu0 0.0
        %1065 = vmatpush1.msra.mxu0 %v926
        %1066 = vmatprep.subr.mxu0 0.0
        %1067 = vmatpush1.msra.mxu0 %v929
        %1068 = vmatprep.subr.mxu0 0.0
        %1069 = vmatpush1.msra.mxu0 %v932
        %1070 = vmatprep.subr.mxu0 0.0
        %1071 = vmatpush1.msra.mxu0 %v935
        %1072 = vmatprep.subr.mxu0 0.0
        %1073 = vmatpush1.msra.mxu0 %v938
        %1074 = vmatprep.subr.mxu0 0.0
        %1075 = vmatpush1.msra.mxu0 %v941
        %1076 = vmatprep.subr.mxu0 0.0
        %1077 = vmatpush1.msra.mxu0 %v944
        %1078 = vmatprep.subr.mxu0 0.0
        %1079 = vmatpush1.msra.mxu0 %v947
        %1080 = vmatprep.subr.mxu0 0.0
        %1081 = vmatpush1.msra.mxu0 %v950
        %1082 = vmatprep.subr.mxu0 0.0
        %1083 = vmatpush1.msra.mxu0 %v953
        %1084 = vmatprep.subr.mxu0 0.0
        %1085 = vmatpush1.msra.mxu0 %v956
        %1086 = vmatprep.subr.mxu0 0.0
        %1087 = vmatpush1.msra.mxu0 %v959
        %1088 = vmatprep.subr.mxu0 0.0
        %1089 = vmatpush1.msra.mxu0 %v962
        %1090 = vmatprep.subr.mxu0 0.0
        %1091 = vmatpush1.msra.mxu0 %v965
        %1092 = vmatprep.subr.mxu0 0.0
        %1093 = vmatpush1.msra.mxu0 0.0
        %1094 = vmatprep.subr.mxu0 0.0
        %1095 = vmatpush1.msra.mxu0 0.0
        %1096 = vmatprep.subr.mxu0 0.0
        %1097 = vmatpush1.msra.mxu0 0.0
        %1098 = vmatprep.subr.mxu0 0.0
        %1099 = vmatpush1.msra.mxu0 0.0
        %1100 = vmatprep.subr.mxu0 0.0
        %1101 = vmatpush1.msra.mxu0 0.0
        %1102 = vmatprep.subr.mxu0 0.0
        %1103 = vmatpush1.msra.mxu0 0.0
        %1104 = vmatprep.subr.mxu0 0.0
        %1105 = vmatpush1.msra.mxu0 0.0
        %1106 = vmatprep.subr.mxu0 0.0
        %1107 = vmatpush1.msra.mxu0 0.0
        %1108 = vmatprep.subr.mxu0 0.0
        %1109 = vmatpush1.msra.mxu0 0.0
        %1110 = vmatprep.subr.mxu0 0.0
        %1111 = vmatpush1.msra.mxu0 0.0
        %1112 = vmatprep.subr.mxu0 0.0
        %1113 = vmatpush1.msra.mxu0 0.0
        %1114 = vmatprep.subr.mxu0 0.0
        %1115 = vmatpush1.msra.mxu0 0.0
        %1116 = vmatprep.subr.mxu0 0.0
        %1117 = vmatpush1.msra.mxu0 0.0
        %1118 = vmatprep.subr.mxu0 0.0
        %1119 = vmatpush1.msra.mxu0 0.0
        %1120 = vmatprep.subr.mxu0 0.0
        %1121 = vmatpush1.msra.mxu0 0.0
        %1122 = vmatprep.subr.mxu0 0.0
        %1123 = vmatpush1.msra.mxu0 0.0
        %1124 = vmatprep.mubr.f32.mxu0 0.0
        %1125 = vmatmul.mubr.f32.gmra.mrb[0].mxu0 %v916
        %v1126 = vpop.f32.mrb[0].mxu0
        %v1127 = vadd.f32 %v979, %v1126
        %v1128 = vpop.f32.mrb[0].mxu0
        %1129 = vmatprep.mubr.f32.mxu0 0.0
        %1130 = vmatmul.mubr.f32.gmra.mrb[0].mxu0 %v917
        %v1131 = vpop.f32.mrb[0].mxu0
        %v1132 = vadd.f32 %v979, %v1131
        %v1133 = vpop.f32.mrb[0].mxu0
        %1134 = vdwg.mxu0
        %1137 = vrot.lane.b32.xlu0 %v1050, 96
        %v1138 = vpop.permute.xlu0 %1137
        %1139 = vrot.lane.b32.xlu0 %v1056, 96
        %v1140 = vpop.permute.xlu0 %1139
        %1143 = vrot.lane.b32.xlu0 %v1050, 64
        %v1144 = vpop.permute.xlu0 %1143
        %1145 = vrot.lane.b32.xlu0 %v1056, 64
        %v1146 = vpop.permute.xlu0 %1145
        %1149 = vrot.lane.b32.xlu0 %v1050, 32
        %v1150 = vpop.permute.xlu0 %1149
        %1151 = vrot.lane.b32.xlu0 %v1056, 32
        %v1152 = vpop.permute.xlu0 %1151
        %v1155 = vcombine.low %v1050, %v1144
        %v1156 = vcombine.high %v1050, %v1144
        %v1158 = vunpack.c.l.s4 1983009808
        %v1159 = vunpack.c.0.s8 %v1158
        %v1160 = vlaneseq
        %v1161 = vshrl.u32 %v1160, 7
        %v1162 = vsub.s32 %v1159, %v1161
        %v1163 = vrot.slane %v1155, %v1162
        %v1165 = vunpack.c.l.s4 1983009808
        %v1166 = vunpack.c.0.s8 %v1165
        %v1167 = vlaneseq
        %v1168 = vshrl.u32 %v1167, 7
        %v1169 = vsub.s32 %v1166, %v1168
        %v1170 = vrot.slane %v1156, %v1169
        %v1171 = vcombine.low %v1138, %v1150
        %v1172 = vcombine.high %v1138, %v1150
        %v1174 = vunpack.c.l.s4 1983009808
        %v1175 = vunpack.c.0.s8 %v1174
        %v1176 = vlaneseq
        %v1177 = vshrl.u32 %v1176, 7
        %v1178 = vsub.s32 %v1175, %v1177
        %v1179 = vrot.slane %v1171, %v1178
        %v1181 = vunpack.c.l.s4 1983009808
        %v1182 = vunpack.c.0.s8 %v1181
        %v1183 = vlaneseq
        %v1184 = vshrl.u32 %v1183, 7
        %v1185 = vsub.s32 %v1182, %v1184
        %v1186 = vrot.slane %v1172, %v1185
        %v1187 = vcombine.low %v1163, %v1179
        %v1188 = vcombine.high %v1163, %v1179
        %v1190 = vunpack.c.l.s4 1934713408
        %v1191 = vunpack.c.0.s8 %v1190
        %v1192 = vlaneseq
        %v1193 = vshrl.u32 %v1192, 7
        %v1194 = vsub.s32 %v1191, %v1193
        %v1195 = vrot.slane %v1187, %v1194
        %v1197 = vunpack.c.l.s4 1934713408
        %v1198 = vunpack.c.0.s8 %v1197
        %v1199 = vlaneseq
        %v1200 = vshrl.u32 %v1199, 7
        %v1201 = vsub.s32 %v1198, %v1200
        %v1202 = vrot.slane %v1188, %v1201
        %v1203 = vcombine.low %v1170, %v1186
        %v1204 = vcombine.high %v1170, %v1186
        %v1206 = vunpack.c.l.s4 1934713408
        %v1207 = vunpack.c.0.s8 %v1206
        %v1208 = vlaneseq
        %v1209 = vshrl.u32 %v1208, 7
        %v1210 = vsub.s32 %v1207, %v1209
        %v1211 = vrot.slane %v1203, %v1210
        %v1213 = vunpack.c.l.s4 1934713408
        %v1214 = vunpack.c.0.s8 %v1213
        %v1215 = vlaneseq
        %v1216 = vshrl.u32 %v1215, 7
        %v1217 = vsub.s32 %v1214, %v1216
        %v1218 = vrot.slane %v1204, %v1217
        %v1219 = vcombine.high %v1195, 0.0
        %v1220 = vcombine.high %v1202, 0.0
        %v1221 = vcombine.high %v1211, 0.0
        %v1222 = vcombine.high %v1218, 0.0
        %v1223 = vcombine.low %v1056, %v1146
        %v1224 = vcombine.high %v1056, %v1146
        %v1226 = vunpack.c.l.s4 1983009808
        %v1227 = vunpack.c.0.s8 %v1226
        %v1228 = vlaneseq
        %v1229 = vshrl.u32 %v1228, 7
        %v1230 = vsub.s32 %v1227, %v1229
        %v1231 = vrot.slane %v1223, %v1230
        %v1233 = vunpack.c.l.s4 1983009808
        %v1234 = vunpack.c.0.s8 %v1233
        %v1235 = vlaneseq
        %v1236 = vshrl.u32 %v1235, 7
        %v1237 = vsub.s32 %v1234, %v1236
        %v1238 = vrot.slane %v1224, %v1237
        %v1239 = vcombine.low %v1140, %v1152
        %v1240 = vcombine.high %v1140, %v1152
        %v1242 = vunpack.c.l.s4 1983009808
        %v1243 = vunpack.c.0.s8 %v1242
        %v1244 = vlaneseq
        %v1245 = vshrl.u32 %v1244, 7
        %v1246 = vsub.s32 %v1243, %v1245
        %v1247 = vrot.slane %v1239, %v1246
        %v1249 = vunpack.c.l.s4 1983009808
        %v1250 = vunpack.c.0.s8 %v1249
        %v1251 = vlaneseq
        %v1252 = vshrl.u32 %v1251, 7
        %v1253 = vsub.s32 %v1250, %v1252
        %v1254 = vrot.slane %v1240, %v1253
        %v1255 = vcombine.low %v1231, %v1247
        %v1256 = vcombine.high %v1231, %v1247
        %v1258 = vunpack.c.l.s4 1934713408
        %v1259 = vunpack.c.0.s8 %v1258
        %v1260 = vlaneseq
        %v1261 = vshrl.u32 %v1260, 7
        %v1262 = vsub.s32 %v1259, %v1261
        %v1263 = vrot.slane %v1255, %v1262
        %v1265 = vunpack.c.l.s4 1934713408
        %v1266 = vunpack.c.0.s8 %v1265
        %v1267 = vlaneseq
        %v1268 = vshrl.u32 %v1267, 7
        %v1269 = vsub.s32 %v1266, %v1268
        %v1270 = vrot.slane %v1256, %v1269
        %v1271 = vcombine.low %v1238, %v1254
        %v1272 = vcombine.high %v1238, %v1254
        %v1274 = vunpack.c.l.s4 1934713408
        %v1275 = vunpack.c.0.s8 %v1274
        %v1276 = vlaneseq
        %v1277 = vshrl.u32 %v1276, 7
        %v1278 = vsub.s32 %v1275, %v1277
        %v1279 = vrot.slane %v1271, %v1278
        %v1281 = vunpack.c.l.s4 1934713408
        %v1282 = vunpack.c.0.s8 %v1281
        %v1283 = vlaneseq
        %v1284 = vshrl.u32 %v1283, 7
        %v1285 = vsub.s32 %v1282, %v1284
        %v1286 = vrot.slane %v1272, %v1285
        %v1287 = vcombine.high %v1263, 0.0
        %v1288 = vcombine.high %v1270, 0.0
        %v1289 = vcombine.high %v1279, 0.0
        %v1290 = vcombine.high %v1286, 0.0
        %v1291 = vcombine.low %v1195, %v1202
        %v1293 = vunpack.c.l.s4 1983009808
        %v1294 = vunpack.c.0.s8 %v1293
        %v1295 = vlaneseq
        %v1296 = vshrl.u32 %v1295, 7
        %v1297 = vsub.s32 %v1294, %v1296
        %v1298 = vrot.slane %v1291, %v1297
        %v1299 = vcombine.low %v1219, %v1220
        %v1301 = vunpack.c.l.s4 1983009808
        %v1302 = vunpack.c.0.s8 %v1301
        %v1303 = vlaneseq
        %v1304 = vshrl.u32 %v1303, 7
        %v1305 = vsub.s32 %v1302, %v1304
        %v1306 = vrot.slane %v1299, %v1305
        %v1307 = vcombine.low %v1211, %v1218
        %v1309 = vunpack.c.l.s4 1983009808
        %v1310 = vunpack.c.0.s8 %v1309
        %v1311 = vlaneseq
        %v1312 = vshrl.u32 %v1311, 7
        %v1313 = vsub.s32 %v1310, %v1312
        %v1314 = vrot.slane %v1307, %v1313
        %v1315 = vcombine.low %v1221, %v1222
        %v1317 = vunpack.c.l.s4 1983009808
        %v1318 = vunpack.c.0.s8 %v1317
        %v1319 = vlaneseq
        %v1320 = vshrl.u32 %v1319, 7
        %v1321 = vsub.s32 %v1318, %v1320
        %v1322 = vrot.slane %v1315, %v1321
        %v1323 = vcombine.low %v1298, %v1306
        %v1324 = vcombine.high %v1298, %v1306
        %v1326 = vunpack.c.l.s4 1934713408
        %v1327 = vunpack.c.0.s8 %v1326
        %v1328 = vlaneseq
        %v1329 = vshrl.u32 %v1328, 7
        %v1330 = vsub.s32 %v1327, %v1329
        %v1331 = vrot.slane %v1323, %v1330
        %v1333 = vunpack.c.l.s4 1934713408
        %v1334 = vunpack.c.0.s8 %v1333
        %v1335 = vlaneseq
        %v1336 = vshrl.u32 %v1335, 7
        %v1337 = vsub.s32 %v1334, %v1336
        %v1338 = vrot.slane %v1324, %v1337
        %v1339 = vcombine.low %v1314, %v1322
        %v1340 = vcombine.high %v1314, %v1322
        %v1342 = vunpack.c.l.s4 1934713408
        %v1343 = vunpack.c.0.s8 %v1342
        %v1344 = vlaneseq
        %v1345 = vshrl.u32 %v1344, 7
        %v1346 = vsub.s32 %v1343, %v1345
        %v1347 = vrot.slane %v1339, %v1346
        %v1349 = vunpack.c.l.s4 1934713408
        %v1350 = vunpack.c.0.s8 %v1349
        %v1351 = vlaneseq
        %v1352 = vshrl.u32 %v1351, 7
        %v1353 = vsub.s32 %v1350, %v1352
        %v1354 = vrot.slane %v1340, %v1353
        %v1355 = vcombine.low %v1331, %v1347
        %v1356 = vcombine.high %v1331, %v1347
        %v1357 = vcombine.low %v1338, %v1354
        %v1358 = vcombine.high %v1338, %v1354
        %v1359 = vcombine.low %v1263, %v1270
        %v1361 = vunpack.c.l.s4 1983009808
        %v1362 = vunpack.c.0.s8 %v1361
        %v1363 = vlaneseq
        %v1364 = vshrl.u32 %v1363, 7
        %v1365 = vsub.s32 %v1362, %v1364
        %v1366 = vrot.slane %v1359, %v1365
        %v1367 = vcombine.low %v1287, %v1288
        %v1369 = vunpack.c.l.s4 1983009808
        %v1370 = vunpack.c.0.s8 %v1369
        %v1371 = vlaneseq
        %v1372 = vshrl.u32 %v1371, 7
        %v1373 = vsub.s32 %v1370, %v1372
        %v1374 = vrot.slane %v1367, %v1373
        %v1375 = vcombine.low %v1279, %v1286
        %v1377 = vunpack.c.l.s4 1983009808
        %v1378 = vunpack.c.0.s8 %v1377
        %v1379 = vlaneseq
        %v1380 = vshrl.u32 %v1379, 7
        %v1381 = vsub.s32 %v1378, %v1380
        %v1382 = vrot.slane %v1375, %v1381
        %v1383 = vcombine.low %v1289, %v1290
        %v1385 = vunpack.c.l.s4 1983009808
        %v1386 = vunpack.c.0.s8 %v1385
        %v1387 = vlaneseq
        %v1388 = vshrl.u32 %v1387, 7
        %v1389 = vsub.s32 %v1386, %v1388
        %v1390 = vrot.slane %v1383, %v1389
        %v1391 = vcombine.low %v1366, %v1374
        %v1392 = vcombine.high %v1366, %v1374
        %v1394 = vunpack.c.l.s4 1934713408
        %v1395 = vunpack.c.0.s8 %v1394
        %v1396 = vlaneseq
        %v1397 = vshrl.u32 %v1396, 7
        %v1398 = vsub.s32 %v1395, %v1397
        %v1399 = vrot.slane %v1391, %v1398
        %v1401 = vunpack.c.l.s4 1934713408
        %v1402 = vunpack.c.0.s8 %v1401
        %v1403 = vlaneseq
        %v1404 = vshrl.u32 %v1403, 7
        %v1405 = vsub.s32 %v1402, %v1404
        %v1406 = vrot.slane %v1392, %v1405
        %v1407 = vcombine.low %v1382, %v1390
        %v1408 = vcombine.high %v1382, %v1390
        %v1410 = vunpack.c.l.s4 1934713408
        %v1411 = vunpack.c.0.s8 %v1410
        %v1412 = vlaneseq
        %v1413 = vshrl.u32 %v1412, 7
        %v1414 = vsub.s32 %v1411, %v1413
        %v1415 = vrot.slane %v1407, %v1414
        %v1417 = vunpack.c.l.s4 1934713408
        %v1418 = vunpack.c.0.s8 %v1417
        %v1419 = vlaneseq
        %v1420 = vshrl.u32 %v1419, 7
        %v1421 = vsub.s32 %v1418, %v1420
        %v1422 = vrot.slane %v1408, %v1421
        %v1423 = vcombine.low %v1399, %v1415
        %v1424 = vcombine.high %v1399, %v1415
        %v1425 = vcombine.low %v1406, %v1422
        %v1426 = vcombine.high %v1406, %v1422
        %1429 = vrot.lane.b32.xlu0 %v1052, 96
        %v1430 = vpop.permute.xlu0 %1429
        %1431 = vrot.lane.b32.xlu0 %v1058, 96
        %v1432 = vpop.permute.xlu0 %1431
        %1435 = vrot.lane.b32.xlu0 %v1052, 64
        %v1436 = vpop.permute.xlu0 %1435
        %1437 = vrot.lane.b32.xlu0 %v1058, 64
        %v1438 = vpop.permute.xlu0 %1437
        %1441 = vrot.lane.b32.xlu0 %v1052, 32
        %v1442 = vpop.permute.xlu0 %1441
        %1443 = vrot.lane.b32.xlu0 %v1058, 32
        %v1444 = vpop.permute.xlu0 %1443
        %v1447 = vcombine.low %v1052, %v1436
        %v1448 = vcombine.high %v1052, %v1436
        %v1450 = vunpack.c.l.s4 1983009808
        %v1451 = vunpack.c.0.s8 %v1450
        %v1452 = vlaneseq
        %v1453 = vshrl.u32 %v1452, 7
        %v1454 = vsub.s32 %v1451, %v1453
        %v1455 = vrot.slane %v1447, %v1454
        %v1457 = vunpack.c.l.s4 1983009808
        %v1458 = vunpack.c.0.s8 %v1457
        %v1459 = vlaneseq
        %v1460 = vshrl.u32 %v1459, 7
        %v1461 = vsub.s32 %v1458, %v1460
        %v1462 = vrot.slane %v1448, %v1461
        %v1463 = vcombine.low %v1430, %v1442
        %v1464 = vcombine.high %v1430, %v1442
        %v1466 = vunpack.c.l.s4 1983009808
        %v1467 = vunpack.c.0.s8 %v1466
        %v1468 = vlaneseq
        %v1469 = vshrl.u32 %v1468, 7
        %v1470 = vsub.s32 %v1467, %v1469
        %v1471 = vrot.slane %v1463, %v1470
        %v1473 = vunpack.c.l.s4 1983009808
        %v1474 = vunpack.c.0.s8 %v1473
        %v1475 = vlaneseq
        %v1476 = vshrl.u32 %v1475, 7
        %v1477 = vsub.s32 %v1474, %v1476
        %v1478 = vrot.slane %v1464, %v1477
        %v1479 = vcombine.low %v1455, %v1471
        %v1480 = vcombine.high %v1455, %v1471
        %v1482 = vunpack.c.l.s4 1934713408
        %v1483 = vunpack.c.0.s8 %v1482
        %v1484 = vlaneseq
        %v1485 = vshrl.u32 %v1484, 7
        %v1486 = vsub.s32 %v1483, %v1485
        %v1487 = vrot.slane %v1479, %v1486
        %v1489 = vunpack.c.l.s4 1934713408
        %v1490 = vunpack.c.0.s8 %v1489
        %v1491 = vlaneseq
        %v1492 = vshrl.u32 %v1491, 7
        %v1493 = vsub.s32 %v1490, %v1492
        %v1494 = vrot.slane %v1480, %v1493
        %v1495 = vcombine.low %v1462, %v1478
        %v1496 = vcombine.high %v1462, %v1478
        %v1498 = vunpack.c.l.s4 1934713408
        %v1499 = vunpack.c.0.s8 %v1498
        %v1500 = vlaneseq
        %v1501 = vshrl.u32 %v1500, 7
        %v1502 = vsub.s32 %v1499, %v1501
        %v1503 = vrot.slane %v1495, %v1502
        %v1505 = vunpack.c.l.s4 1934713408
        %v1506 = vunpack.c.0.s8 %v1505
        %v1507 = vlaneseq
        %v1508 = vshrl.u32 %v1507, 7
        %v1509 = vsub.s32 %v1506, %v1508
        %v1510 = vrot.slane %v1496, %v1509
        %v1511 = vcombine.high %v1487, 0.0
        %v1512 = vcombine.high %v1494, 0.0
        %v1513 = vcombine.high %v1503, 0.0
        %v1514 = vcombine.high %v1510, 0.0
        %v1515 = vcombine.low %v1058, %v1438
        %v1516 = vcombine.high %v1058, %v1438
        %v1518 = vunpack.c.l.s4 1983009808
        %v1519 = vunpack.c.0.s8 %v1518
        %v1520 = vlaneseq
        %v1521 = vshrl.u32 %v1520, 7
        %v1522 = vsub.s32 %v1519, %v1521
        %v1523 = vrot.slane %v1515, %v1522
        %v1525 = vunpack.c.l.s4 1983009808
        %v1526 = vunpack.c.0.s8 %v1525
        %v1527 = vlaneseq
        %v1528 = vshrl.u32 %v1527, 7
        %v1529 = vsub.s32 %v1526, %v1528
        %v1530 = vrot.slane %v1516, %v1529
        %v1531 = vcombine.low %v1432, %v1444
        %v1532 = vcombine.high %v1432, %v1444
        %v1534 = vunpack.c.l.s4 1983009808
        %v1535 = vunpack.c.0.s8 %v1534
        %v1536 = vlaneseq
        %v1537 = vshrl.u32 %v1536, 7
        %v1538 = vsub.s32 %v1535, %v1537
        %v1539 = vrot.slane %v1531, %v1538
        %v1541 = vunpack.c.l.s4 1983009808
        %v1542 = vunpack.c.0.s8 %v1541
        %v1543 = vlaneseq
        %v1544 = vshrl.u32 %v1543, 7
        %v1545 = vsub.s32 %v1542, %v1544
        %v1546 = vrot.slane %v1532, %v1545
        %v1547 = vcombine.low %v1523, %v1539
        %v1548 = vcombine.high %v1523, %v1539
        %v1550 = vunpack.c.l.s4 1934713408
        %v1551 = vunpack.c.0.s8 %v1550
        %v1552 = vlaneseq
        %v1553 = vshrl.u32 %v1552, 7
        %v1554 = vsub.s32 %v1551, %v1553
        %v1555 = vrot.slane %v1547, %v1554
        %v1557 = vunpack.c.l.s4 1934713408
        %v1558 = vunpack.c.0.s8 %v1557
        %v1559 = vlaneseq
        %v1560 = vshrl.u32 %v1559, 7
        %v1561 = vsub.s32 %v1558, %v1560
        %v1562 = vrot.slane %v1548, %v1561
        %v1563 = vcombine.low %v1530, %v1546
        %v1564 = vcombine.high %v1530, %v1546
        %v1566 = vunpack.c.l.s4 1934713408
        %v1567 = vunpack.c.0.s8 %v1566
        %v1568 = vlaneseq
        %v1569 = vshrl.u32 %v1568, 7
        %v1570 = vsub.s32 %v1567, %v1569
        %v1571 = vrot.slane %v1563, %v1570
        %v1573 = vunpack.c.l.s4 1934713408
        %v1574 = vunpack.c.0.s8 %v1573
        %v1575 = vlaneseq
        %v1576 = vshrl.u32 %v1575, 7
        %v1577 = vsub.s32 %v1574, %v1576
        %v1578 = vrot.slane %v1564, %v1577
        %v1579 = vcombine.high %v1555, 0.0
        %v1580 = vcombine.high %v1562, 0.0
        %v1581 = vcombine.high %v1571, 0.0
        %v1582 = vcombine.high %v1578, 0.0
        %v1583 = vcombine.low %v1487, %v1494
        %v1585 = vunpack.c.l.s4 1983009808
        %v1586 = vunpack.c.0.s8 %v1585
        %v1587 = vlaneseq
        %v1588 = vshrl.u32 %v1587, 7
        %v1589 = vsub.s32 %v1586, %v1588
        %v1590 = vrot.slane %v1583, %v1589
        %v1591 = vcombine.low %v1511, %v1512
        %v1593 = vunpack.c.l.s4 1983009808
        %v1594 = vunpack.c.0.s8 %v1593
        %v1595 = vlaneseq
        %v1596 = vshrl.u32 %v1595, 7
        %v1597 = vsub.s32 %v1594, %v1596
        %v1598 = vrot.slane %v1591, %v1597
        %v1599 = vcombine.low %v1503, %v1510
        %v1601 = vunpack.c.l.s4 1983009808
        %v1602 = vunpack.c.0.s8 %v1601
        %v1603 = vlaneseq
        %v1604 = vshrl.u32 %v1603, 7
        %v1605 = vsub.s32 %v1602, %v1604
        %v1606 = vrot.slane %v1599, %v1605
        %v1607 = vcombine.low %v1513, %v1514
        %v1609 = vunpack.c.l.s4 1983009808
        %v1610 = vunpack.c.0.s8 %v1609
        %v1611 = vlaneseq
        %v1612 = vshrl.u32 %v1611, 7
        %v1613 = vsub.s32 %v1610, %v1612
        %v1614 = vrot.slane %v1607, %v1613
        %v1615 = vcombine.low %v1590, %v1598
        %v1616 = vcombine.high %v1590, %v1598
        %v1618 = vunpack.c.l.s4 1934713408
        %v1619 = vunpack.c.0.s8 %v1618
        %v1620 = vlaneseq
        %v1621 = vshrl.u32 %v1620, 7
        %v1622 = vsub.s32 %v1619, %v1621
        %v1623 = vrot.slane %v1615, %v1622
        %v1625 = vunpack.c.l.s4 1934713408
        %v1626 = vunpack.c.0.s8 %v1625
        %v1627 = vlaneseq
        %v1628 = vshrl.u32 %v1627, 7
        %v1629 = vsub.s32 %v1626, %v1628
        %v1630 = vrot.slane %v1616, %v1629
        %v1631 = vcombine.low %v1606, %v1614
        %v1632 = vcombine.high %v1606, %v1614
        %v1634 = vunpack.c.l.s4 1934713408
        %v1635 = vunpack.c.0.s8 %v1634
        %v1636 = vlaneseq
        %v1637 = vshrl.u32 %v1636, 7
        %v1638 = vsub.s32 %v1635, %v1637
        %v1639 = vrot.slane %v1631, %v1638
        %v1641 = vunpack.c.l.s4 1934713408
        %v1642 = vunpack.c.0.s8 %v1641
        %v1643 = vlaneseq
        %v1644 = vshrl.u32 %v1643, 7
        %v1645 = vsub.s32 %v1642, %v1644
        %v1646 = vrot.slane %v1632, %v1645
        %v1647 = vcombine.low %v1623, %v1639
        %v1648 = vcombine.high %v1623, %v1639
        %v1649 = vcombine.low %v1630, %v1646
        %v1650 = vcombine.high %v1630, %v1646
        %v1651 = vcombine.low %v1555, %v1562
        %v1653 = vunpack.c.l.s4 1983009808
        %v1654 = vunpack.c.0.s8 %v1653
        %v1655 = vlaneseq
        %v1656 = vshrl.u32 %v1655, 7
        %v1657 = vsub.s32 %v1654, %v1656
        %v1658 = vrot.slane %v1651, %v1657
        %v1659 = vcombine.low %v1579, %v1580
        %v1661 = vunpack.c.l.s4 1983009808
        %v1662 = vunpack.c.0.s8 %v1661
        %v1663 = vlaneseq
        %v1664 = vshrl.u32 %v1663, 7
        %v1665 = vsub.s32 %v1662, %v1664
        %v1666 = vrot.slane %v1659, %v1665
        %v1667 = vcombine.low %v1571, %v1578
        %v1669 = vunpack.c.l.s4 1983009808
        %v1670 = vunpack.c.0.s8 %v1669
        %v1671 = vlaneseq
        %v1672 = vshrl.u32 %v1671, 7
        %v1673 = vsub.s32 %v1670, %v1672
        %v1674 = vrot.slane %v1667, %v1673
        %v1675 = vcombine.low %v1581, %v1582
        %v1677 = vunpack.c.l.s4 1983009808
        %v1678 = vunpack.c.0.s8 %v1677
        %v1679 = vlaneseq
        %v1680 = vshrl.u32 %v1679, 7
        %v1681 = vsub.s32 %v1678, %v1680
        %v1682 = vrot.slane %v1675, %v1681
        %v1683 = vcombine.low %v1658, %v1666
        %v1684 = vcombine.high %v1658, %v1666
        %v1686 = vunpack.c.l.s4 1934713408
        %v1687 = vunpack.c.0.s8 %v1686
        %v1688 = vlaneseq
        %v1689 = vshrl.u32 %v1688, 7
        %v1690 = vsub.s32 %v1687, %v1689
        %v1691 = vrot.slane %v1683, %v1690
        %v1693 = vunpack.c.l.s4 1934713408
        %v1694 = vunpack.c.0.s8 %v1693
        %v1695 = vlaneseq
        %v1696 = vshrl.u32 %v1695, 7
        %v1697 = vsub.s32 %v1694, %v1696
        %v1698 = vrot.slane %v1684, %v1697
        %v1699 = vcombine.low %v1674, %v1682
        %v1700 = vcombine.high %v1674, %v1682
        %v1702 = vunpack.c.l.s4 1934713408
        %v1703 = vunpack.c.0.s8 %v1702
        %v1704 = vlaneseq
        %v1705 = vshrl.u32 %v1704, 7
        %v1706 = vsub.s32 %v1703, %v1705
        %v1707 = vrot.slane %v1699, %v1706
        %v1709 = vunpack.c.l.s4 1934713408
        %v1710 = vunpack.c.0.s8 %v1709
        %v1711 = vlaneseq
        %v1712 = vshrl.u32 %v1711, 7
        %v1713 = vsub.s32 %v1710, %v1712
        %v1714 = vrot.slane %v1700, %v1713
        %v1715 = vcombine.low %v1691, %v1707
        %v1716 = vcombine.high %v1691, %v1707
        %v1717 = vcombine.low %v1698, %v1714
        %v1718 = vcombine.high %v1698, %v1714
        %1721 = vrot.lane.b32.xlu0 %v1127, 96
        %v1722 = vpop.permute.xlu0 %1721
        %1723 = vrot.lane.b32.xlu0 %v1132, 96
        %v1724 = vpop.permute.xlu0 %1723
        %1727 = vrot.lane.b32.xlu0 %v1127, 64
        %v1728 = vpop.permute.xlu0 %1727
        %1729 = vrot.lane.b32.xlu0 %v1132, 64
        %v1730 = vpop.permute.xlu0 %1729
        %1733 = vrot.lane.b32.xlu0 %v1127, 32
        %v1734 = vpop.permute.xlu0 %1733
        %1735 = vrot.lane.b32.xlu0 %v1132, 32
        %v1736 = vpop.permute.xlu0 %1735
        %v1739 = vcombine.low %v1127, %v1728
        %v1740 = vcombine.high %v1127, %v1728
        %v1742 = vunpack.c.l.s4 1983009808
        %v1743 = vunpack.c.0.s8 %v1742
        %v1744 = vlaneseq
        %v1745 = vshrl.u32 %v1744, 7
        %v1746 = vsub.s32 %v1743, %v1745
        %v1747 = vrot.slane %v1739, %v1746
        %v1749 = vunpack.c.l.s4 1983009808
        %v1750 = vunpack.c.0.s8 %v1749
        %v1751 = vlaneseq
        %v1752 = vshrl.u32 %v1751, 7
        %v1753 = vsub.s32 %v1750, %v1752
        %v1754 = vrot.slane %v1740, %v1753
        %v1755 = vcombine.low %v1722, %v1734
        %v1756 = vcombine.high %v1722, %v1734
        %v1758 = vunpack.c.l.s4 1983009808
        %v1759 = vunpack.c.0.s8 %v1758
        %v1760 = vlaneseq
        %v1761 = vshrl.u32 %v1760, 7
        %v1762 = vsub.s32 %v1759, %v1761
        %v1763 = vrot.slane %v1755, %v1762
        %v1765 = vunpack.c.l.s4 1983009808
        %v1766 = vunpack.c.0.s8 %v1765
        %v1767 = vlaneseq
        %v1768 = vshrl.u32 %v1767, 7
        %v1769 = vsub.s32 %v1766, %v1768
        %v1770 = vrot.slane %v1756, %v1769
        %v1771 = vcombine.low %v1747, %v1763
        %v1772 = vcombine.high %v1747, %v1763
        %v1774 = vunpack.c.l.s4 1934713408
        %v1775 = vunpack.c.0.s8 %v1774
        %v1776 = vlaneseq
        %v1777 = vshrl.u32 %v1776, 7
        %v1778 = vsub.s32 %v1775, %v1777
        %v1779 = vrot.slane %v1771, %v1778
        %v1781 = vunpack.c.l.s4 1934713408
        %v1782 = vunpack.c.0.s8 %v1781
        %v1783 = vlaneseq
        %v1784 = vshrl.u32 %v1783, 7
        %v1785 = vsub.s32 %v1782, %v1784
        %v1786 = vrot.slane %v1772, %v1785
        %v1787 = vcombine.low %v1754, %v1770
        %v1788 = vcombine.high %v1754, %v1770
        %v1790 = vunpack.c.l.s4 1934713408
        %v1791 = vunpack.c.0.s8 %v1790
        %v1792 = vlaneseq
        %v1793 = vshrl.u32 %v1792, 7
        %v1794 = vsub.s32 %v1791, %v1793
        %v1795 = vrot.slane %v1787, %v1794
        %v1797 = vunpack.c.l.s4 1934713408
        %v1798 = vunpack.c.0.s8 %v1797
        %v1799 = vlaneseq
        %v1800 = vshrl.u32 %v1799, 7
        %v1801 = vsub.s32 %v1798, %v1800
        %v1802 = vrot.slane %v1788, %v1801
        %v1803 = vcombine.high %v1779, 0.0
        %v1804 = vcombine.high %v1786, 0.0
        %v1805 = vcombine.high %v1795, 0.0
        %v1806 = vcombine.high %v1802, 0.0
        %v1807 = vcombine.low %v1132, %v1730
        %v1808 = vcombine.high %v1132, %v1730
        %v1810 = vunpack.c.l.s4 1983009808
        %v1811 = vunpack.c.0.s8 %v1810
        %v1812 = vlaneseq
        %v1813 = vshrl.u32 %v1812, 7
        %v1814 = vsub.s32 %v1811, %v1813
        %v1815 = vrot.slane %v1807, %v1814
        %v1817 = vunpack.c.l.s4 1983009808
        %v1818 = vunpack.c.0.s8 %v1817
        %v1819 = vlaneseq
        %v1820 = vshrl.u32 %v1819, 7
        %v1821 = vsub.s32 %v1818, %v1820
        %v1822 = vrot.slane %v1808, %v1821
        %v1823 = vcombine.low %v1724, %v1736
        %v1824 = vcombine.high %v1724, %v1736
        %v1826 = vunpack.c.l.s4 1983009808
        %v1827 = vunpack.c.0.s8 %v1826
        %v1828 = vlaneseq
        %v1829 = vshrl.u32 %v1828, 7
        %v1830 = vsub.s32 %v1827, %v1829
        %v1831 = vrot.slane %v1823, %v1830
        %v1833 = vunpack.c.l.s4 1983009808
        %v1834 = vunpack.c.0.s8 %v1833
        %v1835 = vlaneseq
        %v1836 = vshrl.u32 %v1835, 7
        %v1837 = vsub.s32 %v1834, %v1836
        %v1838 = vrot.slane %v1824, %v1837
        %v1839 = vcombine.low %v1815, %v1831
        %v1840 = vcombine.high %v1815, %v1831
        %v1842 = vunpack.c.l.s4 1934713408
        %v1843 = vunpack.c.0.s8 %v1842
        %v1844 = vlaneseq
        %v1845 = vshrl.u32 %v1844, 7
        %v1846 = vsub.s32 %v1843, %v1845
        %v1847 = vrot.slane %v1839, %v1846
        %v1849 = vunpack.c.l.s4 1934713408
        %v1850 = vunpack.c.0.s8 %v1849
        %v1851 = vlaneseq
        %v1852 = vshrl.u32 %v1851, 7
        %v1853 = vsub.s32 %v1850, %v1852
        %v1854 = vrot.slane %v1840, %v1853
        %v1855 = vcombine.low %v1822, %v1838
        %v1856 = vcombine.high %v1822, %v1838
        %v1858 = vunpack.c.l.s4 1934713408
        %v1859 = vunpack.c.0.s8 %v1858
        %v1860 = vlaneseq
        %v1861 = vshrl.u32 %v1860, 7
        %v1862 = vsub.s32 %v1859, %v1861
        %v1863 = vrot.slane %v1855, %v1862
        %v1865 = vunpack.c.l.s4 1934713408
        %v1866 = vunpack.c.0.s8 %v1865
        %v1867 = vlaneseq
        %v1868 = vshrl.u32 %v1867, 7
        %v1869 = vsub.s32 %v1866, %v1868
        %v1870 = vrot.slane %v1856, %v1869
        %v1871 = vcombine.high %v1847, 0.0
        %v1872 = vcombine.high %v1854, 0.0
        %v1873 = vcombine.high %v1863, 0.0
        %v1874 = vcombine.high %v1870, 0.0
        %v1875 = vcombine.low %v1779, %v1786
        %v1877 = vunpack.c.l.s4 1983009808
        %v1878 = vunpack.c.0.s8 %v1877
        %v1879 = vlaneseq
        %v1880 = vshrl.u32 %v1879, 7
        %v1881 = vsub.s32 %v1878, %v1880
        %v1882 = vrot.slane %v1875, %v1881
        %v1883 = vcombine.low %v1803, %v1804
        %v1885 = vunpack.c.l.s4 1983009808
        %v1886 = vunpack.c.0.s8 %v1885
        %v1887 = vlaneseq
        %v1888 = vshrl.u32 %v1887, 7
        %v1889 = vsub.s32 %v1886, %v1888
        %v1890 = vrot.slane %v1883, %v1889
        %v1891 = vcombine.low %v1795, %v1802
        %v1893 = vunpack.c.l.s4 1983009808
        %v1894 = vunpack.c.0.s8 %v1893
        %v1895 = vlaneseq
        %v1896 = vshrl.u32 %v1895, 7
        %v1897 = vsub.s32 %v1894, %v1896
        %v1898 = vrot.slane %v1891, %v1897
        %v1899 = vcombine.low %v1805, %v1806
        %v1901 = vunpack.c.l.s4 1983009808
        %v1902 = vunpack.c.0.s8 %v1901
        %v1903 = vlaneseq
        %v1904 = vshrl.u32 %v1903, 7
        %v1905 = vsub.s32 %v1902, %v1904
        %v1906 = vrot.slane %v1899, %v1905
        %v1907 = vcombine.low %v1882, %v1890
        %v1908 = vcombine.high %v1882, %v1890
        %v1910 = vunpack.c.l.s4 1934713408
        %v1911 = vunpack.c.0.s8 %v1910
        %v1912 = vlaneseq
        %v1913 = vshrl.u32 %v1912, 7
        %v1914 = vsub.s32 %v1911, %v1913
        %v1915 = vrot.slane %v1907, %v1914
        %v1917 = vunpack.c.l.s4 1934713408
        %v1918 = vunpack.c.0.s8 %v1917
        %v1919 = vlaneseq
        %v1920 = vshrl.u32 %v1919, 7
        %v1921 = vsub.s32 %v1918, %v1920
        %v1922 = vrot.slane %v1908, %v1921
        %v1923 = vcombine.low %v1898, %v1906
        %v1924 = vcombine.high %v1898, %v1906
        %v1926 = vunpack.c.l.s4 1934713408
        %v1927 = vunpack.c.0.s8 %v1926
        %v1928 = vlaneseq
        %v1929 = vshrl.u32 %v1928, 7
        %v1930 = vsub.s32 %v1927, %v1929
        %v1931 = vrot.slane %v1923, %v1930
        %v1933 = vunpack.c.l.s4 1934713408
        %v1934 = vunpack.c.0.s8 %v1933
        %v1935 = vlaneseq
        %v1936 = vshrl.u32 %v1935, 7
        %v1937 = vsub.s32 %v1934, %v1936
        %v1938 = vrot.slane %v1924, %v1937
        %v1939 = vcombine.low %v1915, %v1931
        %v1940 = vcombine.high %v1915, %v1931
        %v1941 = vcombine.low %v1922, %v1938
        %v1942 = vcombine.high %v1922, %v1938
        %v1943 = vcombine.low %v1847, %v1854
        %v1945 = vunpack.c.l.s4 1983009808
        %v1946 = vunpack.c.0.s8 %v1945
        %v1947 = vlaneseq
        %v1948 = vshrl.u32 %v1947, 7
        %v1949 = vsub.s32 %v1946, %v1948
        %v1950 = vrot.slane %v1943, %v1949
        %v1951 = vcombine.low %v1871, %v1872
        %v1953 = vunpack.c.l.s4 1983009808
        %v1954 = vunpack.c.0.s8 %v1953
        %v1955 = vlaneseq
        %v1956 = vshrl.u32 %v1955, 7
        %v1957 = vsub.s32 %v1954, %v1956
        %v1958 = vrot.slane %v1951, %v1957
        %v1959 = vcombine.low %v1863, %v1870
        %v1961 = vunpack.c.l.s4 1983009808
        %v1962 = vunpack.c.0.s8 %v1961
        %v1963 = vlaneseq
        %v1964 = vshrl.u32 %v1963, 7
        %v1965 = vsub.s32 %v1962, %v1964
        %v1966 = vrot.slane %v1959, %v1965
        %v1967 = vcombine.low %v1873, %v1874
        %v1969 = vunpack.c.l.s4 1983009808
        %v1970 = vunpack.c.0.s8 %v1969
        %v1971 = vlaneseq
        %v1972 = vshrl.u32 %v1971, 7
        %v1973 = vsub.s32 %v1970, %v1972
        %v1974 = vrot.slane %v1967, %v1973
        %v1975 = vcombine.low %v1950, %v1958
        %v1976 = vcombine.high %v1950, %v1958
        %v1978 = vunpack.c.l.s4 1934713408
        %v1979 = vunpack.c.0.s8 %v1978
        %v1980 = vlaneseq
        %v1981 = vshrl.u32 %v1980, 7
        %v1982 = vsub.s32 %v1979, %v1981
        %v1983 = vrot.slane %v1975, %v1982
        %v1985 = vunpack.c.l.s4 1934713408
        %v1986 = vunpack.c.0.s8 %v1985
        %v1987 = vlaneseq
        %v1988 = vshrl.u32 %v1987, 7
        %v1989 = vsub.s32 %v1986, %v1988
        %v1990 = vrot.slane %v1976, %v1989
        %v1991 = vcombine.low %v1966, %v1974
        %v1992 = vcombine.high %v1966, %v1974
        %v1994 = vunpack.c.l.s4 1934713408
        %v1995 = vunpack.c.0.s8 %v1994
        %v1996 = vlaneseq
        %v1997 = vshrl.u32 %v1996, 7
        %v1998 = vsub.s32 %v1995, %v1997
        %v1999 = vrot.slane %v1991, %v1998
        %v2001 = vunpack.c.l.s4 1934713408
        %v2002 = vunpack.c.0.s8 %v2001
        %v2003 = vlaneseq
        %v2004 = vshrl.u32 %v2003, 7
        %v2005 = vsub.s32 %v2002, %v2004
        %v2006 = vrot.slane %v1992, %v2005
        %v2007 = vcombine.low %v1983, %v1999
        %v2008 = vcombine.high %v1983, %v1999
        %v2009 = vcombine.low %v1990, %v2006
        %v2010 = vcombine.high %v1990, %v2006
        %vm2011 = vcmask 261120
        %v2013 = vsel %vm2011, %v1355, 0
        %v2016 = vsel %vm2011, %v1423, 0
        %v2019 = vsel %vm2011, %v1647, 0
        %v2022 = vsel %vm2011, %v1715, 0
        %2024 = vmatprep.subr.mxu0 0.0
        %2025 = vmatpush1.xpose.msra.mxu0 %v2019
        %2026 = vmatprep.subr.mxu0 0.0
        %2027 = vmatpush1.xpose.msra.mxu0 %v2022
        %2028 = vmatprep.subr.mxu0 0.0
        %2029 = vmatpush1.xpose.msra.mxu0 0.0
        %2030 = vmatprep.subr.mxu0 0.0
        %2031 = vmatpush1.xpose.msra.mxu0 0.0
        %2032 = vmatprep.subr.mxu0 0.0
        %2033 = vmatpush1.xpose.msra.mxu0 0.0
        %2034 = vmatprep.subr.mxu0 0.0
        %2035 = vmatpush1.xpose.msra.mxu0 0.0
        %2036 = vmatprep.subr.mxu0 0.0
        %2037 = vmatpush1.xpose.msra.mxu0 0.0
        %2038 = vmatprep.subr.mxu0 0.0
        %2039 = vmatpush1.xpose.msra.mxu0 0.0
        %2040 = vmatprep.subr.mxu0 0.0
        %2041 = vmatpush1.xpose.msra.mxu0 0.0
        %2042 = vmatprep.subr.mxu0 0.0
        %2043 = vmatpush1.xpose.msra.mxu0 0.0
        %2044 = vmatprep.subr.mxu0 0.0
        %2045 = vmatpush1.xpose.msra.mxu0 0.0
        %2046 = vmatprep.subr.mxu0 0.0
        %2047 = vmatpush1.xpose.msra.mxu0 0.0
        %2048 = vmatprep.subr.mxu0 0.0
        %2049 = vmatpush1.xpose.msra.mxu0 0.0
        %2050 = vmatprep.subr.mxu0 0.0
        %2051 = vmatpush1.xpose.msra.mxu0 0.0
        %2052 = vmatprep.subr.mxu0 0.0
        %2053 = vmatpush1.xpose.msra.mxu0 0.0
        %2054 = vmatprep.subr.mxu0 0.0
        %2055 = vmatpush1.xpose.msra.mxu0 0.0
        %2056 = vmatprep.subr.mxu0 0.0
        %2057 = vmatpush1.xpose.msra.mxu0 0.0
        %2058 = vmatprep.subr.mxu0 0.0
        %2059 = vmatpush1.xpose.msra.mxu0 0.0
        %2060 = vmatprep.subr.mxu0 0.0
        %2061 = vmatpush1.xpose.msra.mxu0 0.0
        %2062 = vmatprep.subr.mxu0 0.0
        %2063 = vmatpush1.xpose.msra.mxu0 0.0
        %2064 = vmatprep.subr.mxu0 0.0
        %2065 = vmatpush1.xpose.msra.mxu0 0.0
        %2066 = vmatprep.subr.mxu0 0.0
        %2067 = vmatpush1.xpose.msra.mxu0 0.0
        %2068 = vmatprep.subr.mxu0 0.0
        %2069 = vmatpush1.xpose.msra.mxu0 0.0
        %2070 = vmatprep.subr.mxu0 0.0
        %2071 = vmatpush1.xpose.msra.mxu0 0.0
        %2072 = vmatprep.subr.mxu0 0.0
        %2073 = vmatpush1.xpose.msra.mxu0 0.0
        %2074 = vmatprep.subr.mxu0 0.0
        %2075 = vmatpush1.xpose.msra.mxu0 0.0
        %2076 = vmatprep.subr.mxu0 0.0
        %2077 = vmatpush1.xpose.msra.mxu0 0.0
        %2078 = vmatprep.subr.mxu0 0.0
        %2079 = vmatpush1.xpose.msra.mxu0 0.0
        %2080 = vmatprep.subr.mxu0 0.0
        %2081 = vmatpush1.xpose.msra.mxu0 0.0
        %2082 = vmatprep.subr.mxu0 0.0
        %2083 = vmatpush1.xpose.msra.mxu0 0.0
        %2084 = vmatprep.subr.mxu0 0.0
        %2085 = vmatpush1.xpose.msra.mxu0 0.0
        %2086 = vmatprep.subr.mxu0 0.0
        %2087 = vmatpush1.xpose.msra.mxu0 0.0
        %2088 = vmatprep.mubr.f32.mxu0 0.0
        %2089 = vmatmul.mubr.f32.gmra.mrb[0].mxu0 %v2013
        %v2090 = vpop.f32.mrb[0].mxu0
        %v2091 = vadd.f32 0.0, %v2090
        %v2092 = vpop.f32.mrb[0].mxu0
        %2093 = vmatprep.mubr.f32.mxu0 0.0
        %2094 = vmatmul.mubr.f32.gmra.mrb[0].mxu0 %v2016
        %v2095 = vpop.f32.mrb[0].mxu0
        %v2096 = vadd.f32 0.0, %v2095
        %v2097 = vpop.f32.mrb[0].mxu0
        %2098 = vdwg.mxu0
        %v2100 = vsel %vm2011, %v1356, 0
        %v2103 = vsel %vm2011, %v1424, 0
        %v2106 = vsel %vm2011, %v1648, 0
        %v2109 = vsel %vm2011, %v1716, 0
        %2111 = vmatprep.subr.mxu0 0.0
        %2112 = vmatpush1.xpose.msra.mxu0 %v2106
        %2113 = vmatprep.subr.mxu0 0.0
        %2114 = vmatpush1.xpose.msra.mxu0 %v2109
        %2115 = vmatprep.subr.mxu0 0.0
        %2116 = vmatpush1.xpose.msra.mxu0 0.0
        %2117 = vmatprep.subr.mxu0 0.0
        %2118 = vmatpush1.xpose.msra.mxu0 0.0
        %2119 = vmatprep.subr.mxu0 0.0
        %2120 = vmatpush1.xpose.msra.mxu0 0.0
        %2121 = vmatprep.subr.mxu0 0.0
        %2122 = vmatpush1.xpose.msra.mxu0 0.0
        %2123 = vmatprep.subr.mxu0 0.0
        %2124 = vmatpush1.xpose.msra.mxu0 0.0
        %2125 = vmatprep.subr.mxu0 0.0
        %2126 = vmatpush1.xpose.msra.mxu0 0.0
        %2127 = vmatprep.subr.mxu0 0.0
        %2128 = vmatpush1.xpose.msra.mxu0 0.0
        %2129 = vmatprep.subr.mxu0 0.0
        %2130 = vmatpush1.xpose.msra.mxu0 0.0
        %2131 = vmatprep.subr.mxu0 0.0
        %2132 = vmatpush1.xpose.msra.mxu0 0.0
        %2133 = vmatprep.subr.mxu0 0.0
        %2134 = vmatpush1.xpose.msra.mxu0 0.0
        %2135 = vmatprep.subr.mxu0 0.0
        %2136 = vmatpush1.xpose.msra.mxu0 0.0
        %2137 = vmatprep.subr.mxu0 0.0
        %2138 = vmatpush1.xpose.msra.mxu0 0.0
        %2139 = vmatprep.subr.mxu0 0.0
        %2140 = vmatpush1.xpose.msra.mxu0 0.0
        %2141 = vmatprep.subr.mxu0 0.0
        %2142 = vmatpush1.xpose.msra.mxu0 0.0
        %2143 = vmatprep.subr.mxu0 0.0
        %2144 = vmatpush1.xpose.msra.mxu0 0.0
        %2145 = vmatprep.subr.mxu0 0.0
        %2146 = vmatpush1.xpose.msra.mxu0 0.0
        %2147 = vmatprep.subr.mxu0 0.0
        %2148 = vmatpush1.xpose.msra.mxu0 0.0
        %2149 = vmatprep.subr.mxu0 0.0
        %2150 = vmatpush1.xpose.msra.mxu0 0.0
        %2151 = vmatprep.subr.mxu0 0.0
        %2152 = vmatpush1.xpose.msra.mxu0 0.0
        %2153 = vmatprep.subr.mxu0 0.0
        %2154 = vmatpush1.xpose.msra.mxu0 0.0
        %2155 = vmatprep.subr.mxu0 0.0
        %2156 = vmatpush1.xpose.msra.mxu0 0.0
        %2157 = vmatprep.subr.mxu0 0.0
        %2158 = vmatpush1.xpose.msra.mxu0 0.0
        %2159 = vmatprep.subr.mxu0 0.0
        %2160 = vmatpush1.xpose.msra.mxu0 0.0
        %2161 = vmatprep.subr.mxu0 0.0
        %2162 = vmatpush1.xpose.msra.mxu0 0.0
        %2163 = vmatprep.subr.mxu0 0.0
        %2164 = vmatpush1.xpose.msra.mxu0 0.0
        %2165 = vmatprep.subr.mxu0 0.0
        %2166 = vmatpush1.xpose.msra.mxu0 0.0
        %2167 = vmatprep.subr.mxu0 0.0
        %2168 = vmatpush1.xpose.msra.mxu0 0.0
        %2169 = vmatprep.subr.mxu0 0.0
        %2170 = vmatpush1.xpose.msra.mxu0 0.0
        %2171 = vmatprep.subr.mxu0 0.0
        %2172 = vmatpush1.xpose.msra.mxu0 0.0
        %2173 = vmatprep.subr.mxu0 0.0
        %2174 = vmatpush1.xpose.msra.mxu0 0.0
        %2175 = vmatprep.mubr.f32.mxu0 0.0
        %2176 = vmatmul.mubr.f32.gmra.mrb[0].mxu0 %v2100
        %v2177 = vpop.f32.mrb[0].mxu0
        %v2178 = vadd.f32 0.0, %v2177
        %v2179 = vpop.f32.mrb[0].mxu0
        %2180 = vmatprep.mubr.f32.mxu0 0.0
        %2181 = vmatmul.mubr.f32.gmra.mrb[0].mxu0 %v2103
        %v2182 = vpop.f32.mrb[0].mxu0
        %v2183 = vadd.f32 0.0, %v2182
        %v2184 = vpop.f32.mrb[0].mxu0
        %2185 = vdwg.mxu0
        %v2187 = vsel %vm2011, %v1357, 0
        %v2190 = vsel %vm2011, %v1425, 0
        %v2193 = vsel %vm2011, %v1649, 0
        %v2196 = vsel %vm2011, %v1717, 0
        %2198 = vmatprep.subr.mxu0 0.0
        %2199 = vmatpush1.xpose.msra.mxu0 %v2193
        %2200 = vmatprep.subr.mxu0 0.0
        %2201 = vmatpush1.xpose.msra.mxu0 %v2196
        %2202 = vmatprep.subr.mxu0 0.0
        %2203 = vmatpush1.xpose.msra.mxu0 0.0
        %2204 = vmatprep.subr.mxu0 0.0
        %2205 = vmatpush1.xpose.msra.mxu0 0.0
        %2206 = vmatprep.subr.mxu0 0.0
        %2207 = vmatpush1.xpose.msra.mxu0 0.0
        %2208 = vmatprep.subr.mxu0 0.0
        %2209 = vmatpush1.xpose.msra.mxu0 0.0
        %2210 = vmatprep.subr.mxu0 0.0
        %2211 = vmatpush1.xpose.msra.mxu0 0.0
        %2212 = vmatprep.subr.mxu0 0.0
        %2213 = vmatpush1.xpose.msra.mxu0 0.0
        %2214 = vmatprep.subr.mxu0 0.0
        %2215 = vmatpush1.xpose.msra.mxu0 0.0
        %2216 = vmatprep.subr.mxu0 0.0
        %2217 = vmatpush1.xpose.msra.mxu0 0.0
        %2218 = vmatprep.subr.mxu0 0.0
        %2219 = vmatpush1.xpose.msra.mxu0 0.0
        %2220 = vmatprep.subr.mxu0 0.0
        %2221 = vmatpush1.xpose.msra.mxu0 0.0
        %2222 = vmatprep.subr.mxu0 0.0
        %2223 = vmatpush1.xpose.msra.mxu0 0.0
        %2224 = vmatprep.subr.mxu0 0.0
        %2225 = vmatpush1.xpose.msra.mxu0 0.0
        %2226 = vmatprep.subr.mxu0 0.0
        %2227 = vmatpush1.xpose.msra.mxu0 0.0
        %2228 = vmatprep.subr.mxu0 0.0
        %2229 = vmatpush1.xpose.msra.mxu0 0.0
        %2230 = vmatprep.subr.mxu0 0.0
        %2231 = vmatpush1.xpose.msra.mxu0 0.0
        %2232 = vmatprep.subr.mxu0 0.0
        %2233 = vmatpush1.xpose.msra.mxu0 0.0
        %2234 = vmatprep.subr.mxu0 0.0
        %2235 = vmatpush1.xpose.msra.mxu0 0.0
        %2236 = vmatprep.subr.mxu0 0.0
        %2237 = vmatpush1.xpose.msra.mxu0 0.0
        %2238 = vmatprep.subr.mxu0 0.0
        %2239 = vmatpush1.xpose.msra.mxu0 0.0
        %2240 = vmatprep.subr.mxu0 0.0
        %2241 = vmatpush1.xpose.msra.mxu0 0.0
        %2242 = vmatprep.subr.mxu0 0.0
        %2243 = vmatpush1.xpose.msra.mxu0 0.0
        %2244 = vmatprep.subr.mxu0 0.0
        %2245 = vmatpush1.xpose.msra.mxu0 0.0
        %2246 = vmatprep.subr.mxu0 0.0
        %2247 = vmatpush1.xpose.msra.mxu0 0.0
        %2248 = vmatprep.subr.mxu0 0.0
        %2249 = vmatpush1.xpose.msra.mxu0 0.0
        %2250 = vmatprep.subr.mxu0 0.0
        %2251 = vmatpush1.xpose.msra.mxu0 0.0
        %2252 = vmatprep.subr.mxu0 0.0
        %2253 = vmatpush1.xpose.msra.mxu0 0.0
        %2254 = vmatprep.subr.mxu0 0.0
        %2255 = vmatpush1.xpose.msra.mxu0 0.0
        %2256 = vmatprep.subr.mxu0 0.0
        %2257 = vmatpush1.xpose.msra.mxu0 0.0
        %2258 = vmatprep.subr.mxu0 0.0
        %2259 = vmatpush1.xpose.msra.mxu0 0.0
        %2260 = vmatprep.subr.mxu0 0.0
        %2261 = vmatpush1.xpose.msra.mxu0 0.0
        %2262 = vmatprep.mubr.f32.mxu0 0.0
        %2263 = vmatmul.mubr.f32.gmra.mrb[0].mxu0 %v2187
        %v2264 = vpop.f32.mrb[0].mxu0
        %v2265 = vadd.f32 0.0, %v2264
        %v2266 = vpop.f32.mrb[0].mxu0
        %2267 = vmatprep.mubr.f32.mxu0 0.0
        %2268 = vmatmul.mubr.f32.gmra.mrb[0].mxu0 %v2190
        %v2269 = vpop.f32.mrb[0].mxu0
        %v2270 = vadd.f32 0.0, %v2269
        %v2271 = vpop.f32.mrb[0].mxu0
        %2272 = vdwg.mxu0
        %v2274 = vsel %vm2011, %v1358, 0
        %v2277 = vsel %vm2011, %v1426, 0
        %v2280 = vsel %vm2011, %v1650, 0
        %v2283 = vsel %vm2011, %v1718, 0
        %2285 = vmatprep.subr.mxu0 0.0
        %2286 = vmatpush1.xpose.msra.mxu0 %v2280
        %2287 = vmatprep.subr.mxu0 0.0
        %2288 = vmatpush1.xpose.msra.mxu0 %v2283
        %2289 = vmatprep.subr.mxu0 0.0
        %2290 = vmatpush1.xpose.msra.mxu0 0.0
        %2291 = vmatprep.subr.mxu0 0.0
        %2292 = vmatpush1.xpose.msra.mxu0 0.0
        %2293 = vmatprep.subr.mxu0 0.0
        %2294 = vmatpush1.xpose.msra.mxu0 0.0
        %2295 = vmatprep.subr.mxu0 0.0
        %2296 = vmatpush1.xpose.msra.mxu0 0.0
        %2297 = vmatprep.subr.mxu0 0.0
        %2298 = vmatpush1.xpose.msra.mxu0 0.0
        %2299 = vmatprep.subr.mxu0 0.0
        %2300 = vmatpush1.xpose.msra.mxu0 0.0
        %2301 = vmatprep.subr.mxu0 0.0
        %2302 = vmatpush1.xpose.msra.mxu0 0.0
        %2303 = vmatprep.subr.mxu0 0.0
        %2304 = vmatpush1.xpose.msra.mxu0 0.0
        %2305 = vmatprep.subr.mxu0 0.0
        %2306 = vmatpush1.xpose.msra.mxu0 0.0
        %2307 = vmatprep.subr.mxu0 0.0
        %2308 = vmatpush1.xpose.msra.mxu0 0.0
        %2309 = vmatprep.subr.mxu0 0.0
        %2310 = vmatpush1.xpose.msra.mxu0 0.0
        %2311 = vmatprep.subr.mxu0 0.0
        %2312 = vmatpush1.xpose.msra.mxu0 0.0
        %2313 = vmatprep.subr.mxu0 0.0
        %2314 = vmatpush1.xpose.msra.mxu0 0.0
        %2315 = vmatprep.subr.mxu0 0.0
        %2316 = vmatpush1.xpose.msra.mxu0 0.0
        %2317 = vmatprep.subr.mxu0 0.0
        %2318 = vmatpush1.xpose.msra.mxu0 0.0
        %2319 = vmatprep.subr.mxu0 0.0
        %2320 = vmatpush1.xpose.msra.mxu0 0.0
        %2321 = vmatprep.subr.mxu0 0.0
        %2322 = vmatpush1.xpose.msra.mxu0 0.0
        %2323 = vmatprep.subr.mxu0 0.0
        %2324 = vmatpush1.xpose.msra.mxu0 0.0
        %2325 = vmatprep.subr.mxu0 0.0
        %2326 = vmatpush1.xpose.msra.mxu0 0.0
        %2327 = vmatprep.subr.mxu0 0.0
        %2328 = vmatpush1.xpose.msra.mxu0 0.0
        %2329 = vmatprep.subr.mxu0 0.0
        %2330 = vmatpush1.xpose.msra.mxu0 0.0
        %2331 = vmatprep.subr.mxu0 0.0
        %2332 = vmatpush1.xpose.msra.mxu0 0.0
        %2333 = vmatprep.subr.mxu0 0.0
        %2334 = vmatpush1.xpose.msra.mxu0 0.0
        %2335 = vmatprep.subr.mxu0 0.0
        %2336 = vmatpush1.xpose.msra.mxu0 0.0
        %2337 = vmatprep.subr.mxu0 0.0
        %2338 = vmatpush1.xpose.msra.mxu0 0.0
        %2339 = vmatprep.subr.mxu0 0.0
        %2340 = vmatpush1.xpose.msra.mxu0 0.0
        %2341 = vmatprep.subr.mxu0 0.0
        %2342 = vmatpush1.xpose.msra.mxu0 0.0
        %2343 = vmatprep.subr.mxu0 0.0
        %2344 = vmatpush1.xpose.msra.mxu0 0.0
        %2345 = vmatprep.subr.mxu0 0.0
        %2346 = vmatpush1.xpose.msra.mxu0 0.0
        %2347 = vmatprep.subr.mxu0 0.0
        %2348 = vmatpush1.xpose.msra.mxu0 0.0
        %2349 = vmatprep.mubr.f32.mxu0 0.0
        %2350 = vmatmul.mubr.f32.gmra.mrb[0].mxu0 %v2274
        %v2351 = vpop.f32.mrb[0].mxu0
        %v2352 = vadd.f32 0.0, %v2351
        %v2353 = vpop.f32.mrb[0].mxu0
        %2354 = vmatprep.mubr.f32.mxu0 0.0
        %2355 = vmatmul.mubr.f32.gmra.mrb[0].mxu0 %v2277
        %v2356 = vpop.f32.mrb[0].mxu0
        %v2357 = vadd.f32 0.0, %v2356
        %v2358 = vpop.f32.mrb[0].mxu0
        %2359 = vdwg.mxu0
        %v2360 = vmul.f32 %v2091, 0.17677669
        %v2361 = vmul.f32 %v2096, 0.17677669
        %v2362 = vmul.f32 %v2178, 0.17677669
        %v2363 = vmul.f32 %v2183, 0.17677669
        %v2364 = vmul.f32 %v2265, 0.17677669
        %v2365 = vmul.f32 %v2270, 0.17677669
        %v2366 = vmul.f32 %v2352, 0.17677669
        %v2367 = vmul.f32 %v2357, 0.17677669
        %v2368 = vsel %vm857, 1, 0
        %v2369 = vsel %vm858, 1, 0
        %vm2370 = vcmp.eq.s32.totalorder %v2368, 1
        %vm2371 = vcmp.eq.s32.totalorder %v2369, 1
        %v2372 = vsel %vm2370, %v2360, -1e+09
        %v2373 = vsel %vm2371, %v2361, -1e+09
        %v2374 = vsel %vm2370, %v2362, -1e+09
        %v2375 = vsel %vm2371, %v2363, -1e+09
        %v2376 = vsel %vm2370, %v2364, -1e+09
        %v2377 = vsel %vm2371, %v2365, -1e+09
        %v2378 = vsel %vm2370, %v2366, -1e+09
        %v2379 = vsel %vm2371, %v2367, -1e+09
        %vm2380 = vcmask 130048
        %v2381 = vsel %vm2380, %v2372, -inf
        %2382 = vmax.xlane.f32.xlu0 %v2381
        %v2383 = vpop.xlane.xlu0 %2382
        %v2384 = vsel %vm2380, %v2373, -inf
        %2385 = vmax.xlane.f32.xlu0 %v2384
        %v2386 = vpop.xlane.xlu0 %2385
        %v2387 = vsel %vm2380, %v2374, -inf
        %2388 = vmax.xlane.f32.xlu0 %v2387
        %v2389 = vpop.xlane.xlu0 %2388
        %v2390 = vsel %vm2380, %v2375, -inf
        %2391 = vmax.xlane.f32.xlu0 %v2390
        %v2392 = vpop.xlane.xlu0 %2391
        %v2393 = vsel %vm2380, %v2376, -inf
        %2394 = vmax.xlane.f32.xlu0 %v2393
        %v2395 = vpop.xlane.xlu0 %2394
        %v2396 = vsel %vm2380, %v2377, -inf
        %2397 = vmax.xlane.f32.xlu0 %v2396
        %v2398 = vpop.xlane.xlu0 %2397
        %v2399 = vsel %vm2380, %v2378, -inf
        %2400 = vmax.xlane.f32.xlu0 %v2399
        %v2401 = vpop.xlane.xlu0 %2400
        %v2402 = vsel %vm2380, %v2379, -inf
        %2403 = vmax.xlane.f32.xlu0 %v2402
        %v2404 = vpop.xlane.xlu0 %2403
        %v2405 = vsub.f32 %v2372, %v2383
        %v2406 = vsub.f32 %v2373, %v2386
        %v2407 = vsub.f32 %v2374, %v2389
        %v2408 = vsub.f32 %v2375, %v2392
        %v2409 = vsub.f32 %v2376, %v2395
        %v2410 = vsub.f32 %v2377, %v2398
        %v2411 = vsub.f32 %v2378, %v2401
        %v2412 = vsub.f32 %v2379, %v2404
        %v2413 = vmul.f32 %v2405, 1.442695
        %v2414 = vpow.pop %v2413
        %v2415 = vmul.f32 %v2406, 1.442695
        %v2416 = vpow.pop %v2415
        %v2417 = vmul.f32 %v2407, 1.442695
        %v2418 = vpow.pop %v2417
        %v2419 = vmul.f32 %v2408, 1.442695
        %v2420 = vpow.pop %v2419
        %v2421 = vmul.f32 %v2409, 1.442695
        %v2422 = vpow.pop %v2421
        %v2423 = vmul.f32 %v2410, 1.442695
        %v2424 = vpow.pop %v2423
        %v2425 = vmul.f32 %v2411, 1.442695
        %v2426 = vpow.pop %v2425
        %v2427 = vmul.f32 %v2412, 1.442695
        %v2428 = vpow.pop %v2427
        %v2429 = vsel %vm2380, %v2414, 0.0
        %2430 = vadd.xlane.f32.xlu0 %v2429
        %v2431 = vpop.xlane.xlu0 %2430
        %v2432 = vsel %vm2380, %v2416, 0.0
        %2433 = vadd.xlane.f32.xlu0 %v2432
        %v2434 = vpop.xlane.xlu0 %2433
        %v2435 = vsel %vm2380, %v2418, 0.0
        %2436 = vadd.xlane.f32.xlu0 %v2435
        %v2437 = vpop.xlane.xlu0 %2436
        %v2438 = vsel %vm2380, %v2420, 0.0
        %2439 = vadd.xlane.f32.xlu0 %v2438
        %v2440 = vpop.xlane.xlu0 %2439
        %v2441 = vsel %vm2380, %v2422, 0.0
        %2442 = vadd.xlane.f32.xlu0 %v2441
        %v2443 = vpop.xlane.xlu0 %2442
        %v2444 = vsel %vm2380, %v2424, 0.0
        %2445 = vadd.xlane.f32.xlu0 %v2444
        %v2446 = vpop.xlane.xlu0 %2445
        %v2447 = vsel %vm2380, %v2426, 0.0
        %2448 = vadd.xlane.f32.xlu0 %v2447
        %v2449 = vpop.xlane.xlu0 %2448
        %v2450 = vsel %vm2380, %v2428, 0.0
        %2451 = vadd.xlane.f32.xlu0 %v2450
        %v2452 = vpop.xlane.xlu0 %2451
        %v2453 = vrcp.pop %v2431
        %v2454 = vrcp.pop %v2434
        %v2455 = vrcp.pop %v2437
        %v2456 = vrcp.pop %v2440
        %v2457 = vrcp.pop %v2443
        %v2458 = vrcp.pop %v2446
        %v2459 = vrcp.pop %v2449
        %v2460 = vrcp.pop %v2452
        %v2461 = vmul.f32 %v2414, %v2453
        %v2462 = vmul.f32 %v2416, %v2454
        %v2463 = vmul.f32 %v2418, %v2455
        %v2464 = vmul.f32 %v2420, %v2456
        %v2465 = vmul.f32 %v2422, %v2457
        %v2466 = vmul.f32 %v2424, %v2458
        %v2467 = vmul.f32 %v2426, %v2459
        %v2468 = vmul.f32 %v2428, %v2460
        %v2470 = vsel %vm2380, %v2461, 0
        %v2473 = vsel %vm2380, %v2462, 0
        %2475 = vmatprep.subr.mxu0 0.0
        %2476 = vmatpush1.msra.mxu0 %v1939
        %2477 = vmatprep.subr.mxu0 0.0
        %2478 = vmatpush1.msra.mxu0 %v2007
        %2479 = vmatprep.subr.mxu0 0.0
        %2480 = vmatpush1.msra.mxu0 0.0
        %2481 = vmatprep.subr.mxu0 0.0
        %2482 = vmatpush1.msra.mxu0 0.0
        %2483 = vmatprep.subr.mxu0 0.0
        %2484 = vmatpush1.msra.mxu0 0.0
        %2485 = vmatprep.subr.mxu0 0.0
        %2486 = vmatpush1.msra.mxu0 0.0
        %2487 = vmatprep.subr.mxu0 0.0
        %2488 = vmatpush1.msra.mxu0 0.0
        %2489 = vmatprep.subr.mxu0 0.0
        %2490 = vmatpush1.msra.mxu0 0.0
        %2491 = vmatprep.subr.mxu0 0.0
        %2492 = vmatpush1.msra.mxu0 0.0
        %2493 = vmatprep.subr.mxu0 0.0
        %2494 = vmatpush1.msra.mxu0 0.0
        %2495 = vmatprep.subr.mxu0 0.0
        %2496 = vmatpush1.msra.mxu0 0.0
        %2497 = vmatprep.subr.mxu0 0.0
        %2498 = vmatpush1.msra.mxu0 0.0
        %2499 = vmatprep.subr.mxu0 0.0
        %2500 = vmatpush1.msra.mxu0 0.0
        %2501 = vmatprep.subr.mxu0 0.0
        %2502 = vmatpush1.msra.mxu0 0.0
        %2503 = vmatprep.subr.mxu0 0.0
        %2504 = vmatpush1.msra.mxu0 0.0
        %2505 = vmatprep.subr.mxu0 0.0
        %2506 = vmatpush1.msra.mxu0 0.0
        %2507 = vmatprep.subr.mxu0 0.0
        %2508 = vmatpush1.msra.mxu0 0.0
        %2509 = vmatprep.subr.mxu0 0.0
        %2510 = vmatpush1.msra.mxu0 0.0
        %2511 = vmatprep.subr.mxu0 0.0
        %2512 = vmatpush1.msra.mxu0 0.0
        %2513 = vmatprep.subr.mxu0 0.0
        %2514 = vmatpush1.msra.mxu0 0.0
        %2515 = vmatprep.subr.mxu0 0.0
        %2516 = vmatpush1.msra.mxu0 0.0
        %2517 = vmatprep.subr.mxu0 0.0
        %2518 = vmatpush1.msra.mxu0 0.0
        %2519 = vmatprep.subr.mxu0 0.0
        %2520 = vmatpush1.msra.mxu0 0.0
        %2521 = vmatprep.subr.mxu0 0.0
        %2522 = vmatpush1.msra.mxu0 0.0
        %2523 = vmatprep.subr.mxu0 0.0
        %2524 = vmatpush1.msra.mxu0 0.0
        %2525 = vmatprep.subr.mxu0 0.0
        %2526 = vmatpush1.msra.mxu0 0.0
        %2527 = vmatprep.subr.mxu0 0.0
        %2528 = vmatpush1.msra.mxu0 0.0
        %2529 = vmatprep.subr.mxu0 0.0
        %2530 = vmatpush1.msra.mxu0 0.0
        %2531 = vmatprep.subr.mxu0 0.0
        %2532 = vmatpush1.msra.mxu0 0.0
        %2533 = vmatprep.subr.mxu0 0.0
        %2534 = vmatpush1.msra.mxu0 0.0
        %2535 = vmatprep.subr.mxu0 0.0
        %2536 = vmatpush1.msra.mxu0 0.0
        %2537 = vmatprep.subr.mxu0 0.0
        %2538 = vmatpush1.msra.mxu0 0.0
        %2539 = vmatprep.mubr.f32.mxu0 0.0
        %2540 = vmatmul.mubr.f32.gmra.mrb[0].mxu0 %v2470
        %v2541 = vpop.f32.mrb[0].mxu0
        %v2542 = vadd.f32 0.0, %v2541
        %v2543 = vpop.f32.mrb[0].mxu0
        %2544 = vmatprep.mubr.f32.mxu0 0.0
        %2545 = vmatmul.mubr.f32.gmra.mrb[0].mxu0 %v2473
        %v2546 = vpop.f32.mrb[0].mxu0
        %v2547 = vadd.f32 0.0, %v2546
        %v2548 = vpop.f32.mrb[0].mxu0
        %2549 = vdwg.mxu0
        %v2551 = vsel %vm2380, %v2463, 0
        %v2554 = vsel %vm2380, %v2464, 0
        %2556 = vmatprep.subr.mxu0 0.0
        %2557 = vmatpush1.msra.mxu0 %v1940
        %2558 = vmatprep.subr.mxu0 0.0
        %2559 = vmatpush1.msra.mxu0 %v2008
        %2560 = vmatprep.subr.mxu0 0.0
        %2561 = vmatpush1.msra.mxu0 0.0
        %2562 = vmatprep.subr.mxu0 0.0
        %2563 = vmatpush1.msra.mxu0 0.0
        %2564 = vmatprep.subr.mxu0 0.0
        %2565 = vmatpush1.msra.mxu0 0.0
        %2566 = vmatprep.subr.mxu0 0.0
        %2567 = vmatpush1.msra.mxu0 0.0
        %2568 = vmatprep.subr.mxu0 0.0
        %2569 = vmatpush1.msra.mxu0 0.0
        %2570 = vmatprep.subr.mxu0 0.0
        %2571 = vmatpush1.msra.mxu0 0.0
        %2572 = vmatprep.subr.mxu0 0.0
        %2573 = vmatpush1.msra.mxu0 0.0
        %2574 = vmatprep.subr.mxu0 0.0
        %2575 = vmatpush1.msra.mxu0 0.0
        %2576 = vmatprep.subr.mxu0 0.0
        %2577 = vmatpush1.msra.mxu0 0.0
        %2578 = vmatprep.subr.mxu0 0.0
        %2579 = vmatpush1.msra.mxu0 0.0
        %2580 = vmatprep.subr.mxu0 0.0
        %2581 = vmatpush1.msra.mxu0 0.0
        %2582 = vmatprep.subr.mxu0 0.0
        %2583 = vmatpush1.msra.mxu0 0.0
        %2584 = vmatprep.subr.mxu0 0.0
        %2585 = vmatpush1.msra.mxu0 0.0
        %2586 = vmatprep.subr.mxu0 0.0
        %2587 = vmatpush1.msra.mxu0 0.0
        %2588 = vmatprep.subr.mxu0 0.0
        %2589 = vmatpush1.msra.mxu0 0.0
        %2590 = vmatprep.subr.mxu0 0.0
        %2591 = vmatpush1.msra.mxu0 0.0
        %2592 = vmatprep.subr.mxu0 0.0
        %2593 = vmatpush1.msra.mxu0 0.0
        %2594 = vmatprep.subr.mxu0 0.0
        %2595 = vmatpush1.msra.mxu0 0.0
        %2596 = vmatprep.subr.mxu0 0.0
        %2597 = vmatpush1.msra.mxu0 0.0
        %2598 = vmatprep.subr.mxu0 0.0
        %2599 = vmatpush1.msra.mxu0 0.0
        %2600 = vmatprep.subr.mxu0 0.0
        %2601 = vmatpush1.msra.mxu0 0.0
        %2602 = vmatprep.subr.mxu0 0.0
        %2603 = vmatpush1.msra.mxu0 0.0
        %2604 = vmatprep.subr.mxu0 0.0
        %2605 = vmatpush1.msra.mxu0 0.0
        %2606 = vmatprep.subr.mxu0 0.0
        %2607 = vmatpush1.msra.mxu0 0.0
        %2608 = vmatprep.subr.mxu0 0.0
        %2609 = vmatpush1.msra.mxu0 0.0
        %2610 = vmatprep.subr.mxu0 0.0
        %2611 = vmatpush1.msra.mxu0 0.0
        %2612 = vmatprep.subr.mxu0 0.0
        %2613 = vmatpush1.msra.mxu0 0.0
        %2614 = vmatprep.subr.mxu0 0.0
        %2615 = vmatpush1.msra.mxu0 0.0
        %2616 = vmatprep.subr.mxu0 0.0
        %2617 = vmatpush1.msra.mxu0 0.0
        %2618 = vmatprep.subr.mxu0 0.0
        %2619 = vmatpush1.msra.mxu0 0.0
        %2620 = vmatprep.mubr.f32.mxu0 0.0
        %2621 = vmatmul.mubr.f32.gmra.mrb[0].mxu0 %v2551
        %v2622 = vpop.f32.mrb[0].mxu0
        %v2623 = vadd.f32 0.0, %v2622
        %v2624 = vpop.f32.mrb[0].mxu0
        %2625 = vmatprep.mubr.f32.mxu0 0.0
        %2626 = vmatmul.mubr.f32.gmra.mrb[0].mxu0 %v2554
        %v2627 = vpop.f32.mrb[0].mxu0
        %v2628 = vadd.f32 0.0, %v2627
        %v2629 = vpop.f32.mrb[0].mxu0
        %2630 = vdwg.mxu0
        %v2632 = vsel %vm2380, %v2465, 0
        %v2635 = vsel %vm2380, %v2466, 0
        %2637 = vmatprep.subr.mxu0 0.0
        %2638 = vmatpush1.msra.mxu0 %v1941
        %2639 = vmatprep.subr.mxu0 0.0
        %2640 = vmatpush1.msra.mxu0 %v2009
        %2641 = vmatprep.subr.mxu0 0.0
        %2642 = vmatpush1.msra.mxu0 0.0
        %2643 = vmatprep.subr.mxu0 0.0
        %2644 = vmatpush1.msra.mxu0 0.0
        %2645 = vmatprep.subr.mxu0 0.0
        %2646 = vmatpush1.msra.mxu0 0.0
        %2647 = vmatprep.subr.mxu0 0.0
        %2648 = vmatpush1.msra.mxu0 0.0
        %2649 = vmatprep.subr.mxu0 0.0
        %2650 = vmatpush1.msra.mxu0 0.0
        %2651 = vmatprep.subr.mxu0 0.0
        %2652 = vmatpush1.msra.mxu0 0.0
        %2653 = vmatprep.subr.mxu0 0.0
        %2654 = vmatpush1.msra.mxu0 0.0
        %2655 = vmatprep.subr.mxu0 0.0
        %2656 = vmatpush1.msra.mxu0 0.0
        %2657 = vmatprep.subr.mxu0 0.0
        %2658 = vmatpush1.msra.mxu0 0.0
        %2659 = vmatprep.subr.mxu0 0.0
        %2660 = vmatpush1.msra.mxu0 0.0
        %2661 = vmatprep.subr.mxu0 0.0
        %2662 = vmatpush1.msra.mxu0 0.0
        %2663 = vmatprep.subr.mxu0 0.0
        %2664 = vmatpush1.msra.mxu0 0.0
        %2665 = vmatprep.subr.mxu0 0.0
        %2666 = vmatpush1.msra.mxu0 0.0
        %2667 = vmatprep.subr.mxu0 0.0
        %2668 = vmatpush1.msra.mxu0 0.0
        %2669 = vmatprep.subr.mxu0 0.0
        %2670 = vmatpush1.msra.mxu0 0.0
        %2671 = vmatprep.subr.mxu0 0.0
        %2672 = vmatpush1.msra.mxu0 0.0
        %2673 = vmatprep.subr.mxu0 0.0
        %2674 = vmatpush1.msra.mxu0 0.0
        %2675 = vmatprep.subr.mxu0 0.0
        %2676 = vmatpush1.msra.mxu0 0.0
        %2677 = vmatprep.subr.mxu0 0.0
        %2678 = vmatpush1.msra.mxu0 0.0
        %2679 = vmatprep.subr.mxu0 0.0
        %2680 = vmatpush1.msra.mxu0 0.0
        %2681 = vmatprep.subr.mxu0 0.0
        %2682 = vmatpush1.msra.mxu0 0.0
        %2683 = vmatprep.subr.mxu0 0.0
        %2684 = vmatpush1.msra.mxu0 0.0
        %2685 = vmatprep.subr.mxu0 0.0
        %2686 = vmatpush1.msra.mxu0 0.0
        %2687 = vmatprep.subr.mxu0 0.0
        %2688 = vmatpush1.msra.mxu0 0.0
        %2689 = vmatprep.subr.mxu0 0.0
        %2690 = vmatpush1.msra.mxu0 0.0
        %2691 = vmatprep.subr.mxu0 0.0
        %2692 = vmatpush1.msra.mxu0 0.0
        %2693 = vmatprep.subr.mxu0 0.0
        %2694 = vmatpush1.msra.mxu0 0.0
        %2695 = vmatprep.subr.mxu0 0.0
        %2696 = vmatpush1.msra.mxu0 0.0
        %2697 = vmatprep.subr.mxu0 0.0
        %2698 = vmatpush1.msra.mxu0 0.0
        %2699 = vmatprep.subr.mxu0 0.0
        %2700 = vmatpush1.msra.mxu0 0.0
        %2701 = vmatprep.mubr.f32.mxu0 0.0
        %2702 = vmatmul.mubr.f32.gmra.mrb[0].mxu0 %v2632
        %v2703 = vpop.f32.mrb[0].mxu0
        %v2704 = vadd.f32 0.0, %v2703
        %v2705 = vpop.f32.mrb[0].mxu0
        %2706 = vmatprep.mubr.f32.mxu0 0.0
        %2707 = vmatmul.mubr.f32.gmra.mrb[0].mxu0 %v2635
        %v2708 = vpop.f32.mrb[0].mxu0
        %v2709 = vadd.f32 0.0, %v2708
        %v2710 = vpop.f32.mrb[0].mxu0
        %2711 = vdwg.mxu0
        %v2713 = vsel %vm2380, %v2467, 0
        %v2716 = vsel %vm2380, %v2468, 0
        %2718 = vmatprep.subr.mxu0 0.0
        %2719 = vmatpush1.msra.mxu0 %v1942
        %2720 = vmatprep.subr.mxu0 0.0
        %2721 = vmatpush1.msra.mxu0 %v2010
        %2722 = vmatprep.subr.mxu0 0.0
        %2723 = vmatpush1.msra.mxu0 0.0
        %2724 = vmatprep.subr.mxu0 0.0
        %2725 = vmatpush1.msra.mxu0 0.0
        %2726 = vmatprep.subr.mxu0 0.0
        %2727 = vmatpush1.msra.mxu0 0.0
        %2728 = vmatprep.subr.mxu0 0.0
        %2729 = vmatpush1.msra.mxu0 0.0
        %2730 = vmatprep.subr.mxu0 0.0
        %2731 = vmatpush1.msra.mxu0 0.0
        %2732 = vmatprep.subr.mxu0 0.0
        %2733 = vmatpush1.msra.mxu0 0.0
        %2734 = vmatprep.subr.mxu0 0.0
        %2735 = vmatpush1.msra.mxu0 0.0
        %2736 = vmatprep.subr.mxu0 0.0
        %2737 = vmatpush1.msra.mxu0 0.0
        %2738 = vmatprep.subr.mxu0 0.0
        %2739 = vmatpush1.msra.mxu0 0.0
        %2740 = vmatprep.subr.mxu0 0.0
        %2741 = vmatpush1.msra.mxu0 0.0
        %2742 = vmatprep.subr.mxu0 0.0
        %2743 = vmatpush1.msra.mxu0 0.0
        %2744 = vmatprep.subr.mxu0 0.0
        %2745 = vmatpush1.msra.mxu0 0.0
        %2746 = vmatprep.subr.mxu0 0.0
        %2747 = vmatpush1.msra.mxu0 0.0
        %2748 = vmatprep.subr.mxu0 0.0
        %2749 = vmatpush1.msra.mxu0 0.0
        %2750 = vmatprep.subr.mxu0 0.0
        %2751 = vmatpush1.msra.mxu0 0.0
        %2752 = vmatprep.subr.mxu0 0.0
        %2753 = vmatpush1.msra.mxu0 0.0
        %2754 = vmatprep.subr.mxu0 0.0
        %2755 = vmatpush1.msra.mxu0 0.0
        %2756 = vmatprep.subr.mxu0 0.0
        %2757 = vmatpush1.msra.mxu0 0.0
        %2758 = vmatprep.subr.mxu0 0.0
        %2759 = vmatpush1.msra.mxu0 0.0
        %2760 = vmatprep.subr.mxu0 0.0
        %2761 = vmatpush1.msra.mxu0 0.0
        %2762 = vmatprep.subr.mxu0 0.0
        %2763 = vmatpush1.msra.mxu0 0.0
        %2764 = vmatprep.subr.mxu0 0.0
        %2765 = vmatpush1.msra.mxu0 0.0
        %2766 = vmatprep.subr.mxu0 0.0
        %2767 = vmatpush1.msra.mxu0 0.0
        %2768 = vmatprep.subr.mxu0 0.0
        %2769 = vmatpush1.msra.mxu0 0.0
        %2770 = vmatprep.subr.mxu0 0.0
        %2771 = vmatpush1.msra.mxu0 0.0
        %2772 = vmatprep.subr.mxu0 0.0
        %2773 = vmatpush1.msra.mxu0 0.0
        %2774 = vmatprep.subr.mxu0 0.0
        %2775 = vmatpush1.msra.mxu0 0.0
        %2776 = vmatprep.subr.mxu0 0.0
        %2777 = vmatpush1.msra.mxu0 0.0
        %2778 = vmatprep.subr.mxu0 0.0
        %2779 = vmatpush1.msra.mxu0 0.0
        %2780 = vmatprep.subr.mxu0 0.0
        %2781 = vmatpush1.msra.mxu0 0.0
        %2782 = vmatprep.mubr.f32.mxu0 0.0
        %2783 = vmatmul.mubr.f32.gmra.mrb[0].mxu0 %v2713
        %v2784 = vpop.f32.mrb[0].mxu0
        %v2785 = vadd.f32 0.0, %v2784
        %v2786 = vpop.f32.mrb[0].mxu0
        %2787 = vmatprep.mubr.f32.mxu0 0.0
        %2788 = vmatmul.mubr.f32.gmra.mrb[0].mxu0 %v2716
        %v2789 = vpop.f32.mrb[0].mxu0
        %v2790 = vadd.f32 0.0, %v2789
        %v2791 = vpop.f32.mrb[0].mxu0
        %2792 = vdwg.mxu0
        %v2793 = vcombine.low %v2542, %v2704
        %v2794 = vcombine.high %v2542, %v2704
        %v2796 = vunpack.c.l.s4 1983009808
        %v2797 = vunpack.c.0.s8 %v2796
        %v2798 = vlaneseq
        %v2799 = vshrl.u32 %v2798, 7
        %v2800 = vsub.s32 %v2797, %v2799
        %v2801 = vrot.slane %v2793, %v2800
        %v2803 = vunpack.c.l.s4 1983009808
        %v2804 = vunpack.c.0.s8 %v2803
        %v2805 = vlaneseq
        %v2806 = vshrl.u32 %v2805, 7
        %v2807 = vsub.s32 %v2804, %v2806
        %v2808 = vrot.slane %v2794, %v2807
        %v2809 = vcombine.low %v2623, %v2785
        %v2810 = vcombine.high %v2623, %v2785
        %v2812 = vunpack.c.l.s4 1983009808
        %v2813 = vunpack.c.0.s8 %v2812
        %v2814 = vlaneseq
        %v2815 = vshrl.u32 %v2814, 7
        %v2816 = vsub.s32 %v2813, %v2815
        %v2817 = vrot.slane %v2809, %v2816
        %v2819 = vunpack.c.l.s4 1983009808
        %v2820 = vunpack.c.0.s8 %v2819
        %v2821 = vlaneseq
        %v2822 = vshrl.u32 %v2821, 7
        %v2823 = vsub.s32 %v2820, %v2822
        %v2824 = vrot.slane %v2810, %v2823
        %v2825 = vcombine.low %v2801, %v2817
        %v2826 = vcombine.high %v2801, %v2817
        %v2828 = vunpack.c.l.s4 1934713408
        %v2829 = vunpack.c.0.s8 %v2828
        %v2830 = vlaneseq
        %v2831 = vshrl.u32 %v2830, 7
        %v2832 = vsub.s32 %v2829, %v2831
        %v2833 = vrot.slane %v2825, %v2832
        %v2835 = vunpack.c.l.s4 1934713408
        %v2836 = vunpack.c.0.s8 %v2835
        %v2837 = vlaneseq
        %v2838 = vshrl.u32 %v2837, 7
        %v2839 = vsub.s32 %v2836, %v2838
        %v2840 = vrot.slane %v2826, %v2839
        %v2841 = vcombine.low %v2808, %v2824
        %v2842 = vcombine.high %v2808, %v2824
        %v2844 = vunpack.c.l.s4 1934713408
        %v2845 = vunpack.c.0.s8 %v2844
        %v2846 = vlaneseq
        %v2847 = vshrl.u32 %v2846, 7
        %v2848 = vsub.s32 %v2845, %v2847
        %v2849 = vrot.slane %v2841, %v2848
        %v2851 = vunpack.c.l.s4 1934713408
        %v2852 = vunpack.c.0.s8 %v2851
        %v2853 = vlaneseq
        %v2854 = vshrl.u32 %v2853, 7
        %v2855 = vsub.s32 %v2852, %v2854
        %v2856 = vrot.slane %v2842, %v2855
        %v2857 = vcombine.high %v2833, 0.0
        %v2858 = vcombine.high %v2840, 0.0
        %v2859 = vcombine.high %v2849, 0.0
        %v2860 = vcombine.high %v2856, 0.0
        %v2861 = vcombine.low %v2547, %v2709
        %v2862 = vcombine.high %v2547, %v2709
        %v2864 = vunpack.c.l.s4 1983009808
        %v2865 = vunpack.c.0.s8 %v2864
        %v2866 = vlaneseq
        %v2867 = vshrl.u32 %v2866, 7
        %v2868 = vsub.s32 %v2865, %v2867
        %v2869 = vrot.slane %v2861, %v2868
        %v2871 = vunpack.c.l.s4 1983009808
        %v2872 = vunpack.c.0.s8 %v2871
        %v2873 = vlaneseq
        %v2874 = vshrl.u32 %v2873, 7
        %v2875 = vsub.s32 %v2872, %v2874
        %v2876 = vrot.slane %v2862, %v2875
        %v2877 = vcombine.low %v2628, %v2790
        %v2878 = vcombine.high %v2628, %v2790
        %v2880 = vunpack.c.l.s4 1983009808
        %v2881 = vunpack.c.0.s8 %v2880
        %v2882 = vlaneseq
        %v2883 = vshrl.u32 %v2882, 7
        %v2884 = vsub.s32 %v2881, %v2883
        %v2885 = vrot.slane %v2877, %v2884
        %v2887 = vunpack.c.l.s4 1983009808
        %v2888 = vunpack.c.0.s8 %v2887
        %v2889 = vlaneseq
        %v2890 = vshrl.u32 %v2889, 7
        %v2891 = vsub.s32 %v2888, %v2890
        %v2892 = vrot.slane %v2878, %v2891
        %v2893 = vcombine.low %v2869, %v2885
        %v2894 = vcombine.high %v2869, %v2885
        %v2896 = vunpack.c.l.s4 1934713408
        %v2897 = vunpack.c.0.s8 %v2896
        %v2898 = vlaneseq
        %v2899 = vshrl.u32 %v2898, 7
        %v2900 = vsub.s32 %v2897, %v2899
        %v2901 = vrot.slane %v2893, %v2900
        %v2903 = vunpack.c.l.s4 1934713408
        %v2904 = vunpack.c.0.s8 %v2903
        %v2905 = vlaneseq
        %v2906 = vshrl.u32 %v2905, 7
        %v2907 = vsub.s32 %v2904, %v2906
        %v2908 = vrot.slane %v2894, %v2907
        %v2909 = vcombine.low %v2876, %v2892
        %v2910 = vcombine.high %v2876, %v2892
        %v2912 = vunpack.c.l.s4 1934713408
        %v2913 = vunpack.c.0.s8 %v2912
        %v2914 = vlaneseq
        %v2915 = vshrl.u32 %v2914, 7
        %v2916 = vsub.s32 %v2913, %v2915
        %v2917 = vrot.slane %v2909, %v2916
        %v2919 = vunpack.c.l.s4 1934713408
        %v2920 = vunpack.c.0.s8 %v2919
        %v2921 = vlaneseq
        %v2922 = vshrl.u32 %v2921, 7
        %v2923 = vsub.s32 %v2920, %v2922
        %v2924 = vrot.slane %v2910, %v2923
        %v2925 = vcombine.high %v2901, 0.0
        %v2926 = vcombine.high %v2908, 0.0
        %v2927 = vcombine.high %v2917, 0.0
        %v2928 = vcombine.high %v2924, 0.0
        %v2929 = vcombine.low %v2833, %v2840
        %v2931 = vunpack.c.l.s4 1983009808
        %v2932 = vunpack.c.0.s8 %v2931
        %v2933 = vlaneseq
        %v2934 = vshrl.u32 %v2933, 7
        %v2935 = vsub.s32 %v2932, %v2934
        %v2936 = vrot.slane %v2929, %v2935
        %v2937 = vcombine.low %v2857, %v2858
        %v2939 = vunpack.c.l.s4 1983009808
        %v2940 = vunpack.c.0.s8 %v2939
        %v2941 = vlaneseq
        %v2942 = vshrl.u32 %v2941, 7
        %v2943 = vsub.s32 %v2940, %v2942
        %v2944 = vrot.slane %v2937, %v2943
        %v2945 = vcombine.low %v2849, %v2856
        %v2947 = vunpack.c.l.s4 1983009808
        %v2948 = vunpack.c.0.s8 %v2947
        %v2949 = vlaneseq
        %v2950 = vshrl.u32 %v2949, 7
        %v2951 = vsub.s32 %v2948, %v2950
        %v2952 = vrot.slane %v2945, %v2951
        %v2953 = vcombine.low %v2859, %v2860
        %v2955 = vunpack.c.l.s4 1983009808
        %v2956 = vunpack.c.0.s8 %v2955
        %v2957 = vlaneseq
        %v2958 = vshrl.u32 %v2957, 7
        %v2959 = vsub.s32 %v2956, %v2958
        %v2960 = vrot.slane %v2953, %v2959
        %v2961 = vcombine.low %v2936, %v2944
        %v2962 = vcombine.high %v2936, %v2944
        %v2964 = vunpack.c.l.s4 1934713408
        %v2965 = vunpack.c.0.s8 %v2964
        %v2966 = vlaneseq
        %v2967 = vshrl.u32 %v2966, 7
        %v2968 = vsub.s32 %v2965, %v2967
        %v2969 = vrot.slane %v2961, %v2968
        %v2971 = vunpack.c.l.s4 1934713408
        %v2972 = vunpack.c.0.s8 %v2971
        %v2973 = vlaneseq
        %v2974 = vshrl.u32 %v2973, 7
        %v2975 = vsub.s32 %v2972, %v2974
        %v2976 = vrot.slane %v2962, %v2975
        %v2977 = vcombine.low %v2952, %v2960
        %v2978 = vcombine.high %v2952, %v2960
        %v2980 = vunpack.c.l.s4 1934713408
        %v2981 = vunpack.c.0.s8 %v2980
        %v2982 = vlaneseq
        %v2983 = vshrl.u32 %v2982, 7
        %v2984 = vsub.s32 %v2981, %v2983
        %v2985 = vrot.slane %v2977, %v2984
        %v2987 = vunpack.c.l.s4 1934713408
        %v2988 = vunpack.c.0.s8 %v2987
        %v2989 = vlaneseq
        %v2990 = vshrl.u32 %v2989, 7
        %v2991 = vsub.s32 %v2988, %v2990
        %v2992 = vrot.slane %v2978, %v2991
        %v2993 = vcombine.low %v2969, %v2985
        %v2994 = vcombine.high %v2969, %v2985
        %v2995 = vcombine.low %v2976, %v2992
        %v2996 = vcombine.high %v2976, %v2992
        %v2997 = vcombine.low %v2901, %v2908
        %v2999 = vunpack.c.l.s4 1983009808
        %v3000 = vunpack.c.0.s8 %v2999
        %v3001 = vlaneseq
        %v3002 = vshrl.u32 %v3001, 7
        %v3003 = vsub.s32 %v3000, %v3002
        %v3004 = vrot.slane %v2997, %v3003
        %v3005 = vcombine.low %v2925, %v2926
        %v3007 = vunpack.c.l.s4 1983009808
        %v3008 = vunpack.c.0.s8 %v3007
        %v3009 = vlaneseq
        %v3010 = vshrl.u32 %v3009, 7
        %v3011 = vsub.s32 %v3008, %v3010
        %v3012 = vrot.slane %v3005, %v3011
        %v3013 = vcombine.low %v2917, %v2924
        %v3015 = vunpack.c.l.s4 1983009808
        %v3016 = vunpack.c.0.s8 %v3015
        %v3017 = vlaneseq
        %v3018 = vshrl.u32 %v3017, 7
        %v3019 = vsub.s32 %v3016, %v3018
        %v3020 = vrot.slane %v3013, %v3019
        %v3021 = vcombine.low %v2927, %v2928
        %v3023 = vunpack.c.l.s4 1983009808
        %v3024 = vunpack.c.0.s8 %v3023
        %v3025 = vlaneseq
        %v3026 = vshrl.u32 %v3025, 7
        %v3027 = vsub.s32 %v3024, %v3026
        %v3028 = vrot.slane %v3021, %v3027
        %v3029 = vcombine.low %v3004, %v3012
        %v3030 = vcombine.high %v3004, %v3012
        %v3032 = vunpack.c.l.s4 1934713408
        %v3033 = vunpack.c.0.s8 %v3032
        %v3034 = vlaneseq
        %v3035 = vshrl.u32 %v3034, 7
        %v3036 = vsub.s32 %v3033, %v3035
        %v3037 = vrot.slane %v3029, %v3036
        %v3039 = vunpack.c.l.s4 1934713408
        %v3040 = vunpack.c.0.s8 %v3039
        %v3041 = vlaneseq
        %v3042 = vshrl.u32 %v3041, 7
        %v3043 = vsub.s32 %v3040, %v3042
        %v3044 = vrot.slane %v3030, %v3043
        %v3045 = vcombine.low %v3020, %v3028
        %v3046 = vcombine.high %v3020, %v3028
        %v3048 = vunpack.c.l.s4 1934713408
        %v3049 = vunpack.c.0.s8 %v3048
        %v3050 = vlaneseq
        %v3051 = vshrl.u32 %v3050, 7
        %v3052 = vsub.s32 %v3049, %v3051
        %v3053 = vrot.slane %v3045, %v3052
        %v3055 = vunpack.c.l.s4 1934713408
        %v3056 = vunpack.c.0.s8 %v3055
        %v3057 = vlaneseq
        %v3058 = vshrl.u32 %v3057, 7
        %v3059 = vsub.s32 %v3056, %v3058
        %v3060 = vrot.slane %v3046, %v3059
        %v3061 = vcombine.low %v3037, %v3053
        %v3062 = vcombine.high %v3037, %v3053
        %v3063 = vcombine.low %v3044, %v3060
        %v3064 = vcombine.high %v3044, %v3060
        %3067 = vrot.lane.b32.xlu0 %v2994, 32
        %v3068 = vpop.permute.xlu0 %3067
        %3069 = vrot.lane.b32.xlu0 %v3062, 32
        %v3070 = vpop.permute.xlu0 %3069
        %3075 = vrot.lane.b32.xlu0 %v2995, 64
        %v3076 = vpop.permute.xlu0 %3075
        %3077 = vrot.lane.b32.xlu0 %v3063, 64
        %v3078 = vpop.permute.xlu0 %3077
        %3083 = vrot.lane.b32.xlu0 %v2996, 96
        %v3084 = vpop.permute.xlu0 %3083
        %3085 = vrot.lane.b32.xlu0 %v3064, 96
        %v3086 = vpop.permute.xlu0 %3085
        %v3089 = vsel %vm2011, %v2993, %v3068
        %v3090 = vsel %vm2011, %v3061, %v3070
        %vm3091 = vcmask 523264
        %v3092 = vsel %vm3091, %v3089, %v3076
        %v3093 = vsel %vm3091, %v3090, %v3078
        %vm3094 = vcmask 785408
        %v3095 = vsel %vm3094, %v3092, %v3084
        %v3096 = vsel %vm3094, %v3093, %v3086
        %v3097 = vld [vmem:[#allocation10] sm:$0xff]
        %v3098 = vld [vmem:[#allocation10 + $0x8] sm:$0xff]
        %v3099 = vld [vmem:[#allocation10 + $0x10] sm:$0xff]
        %v3100 = vld [vmem:[#allocation10 + $0x18] sm:$0xff]
        %v3101 = vld [vmem:[#allocation10 + $0x20] sm:$0xff]
        %v3102 = vld [vmem:[#allocation10 + $0x28] sm:$0xff]
        %v3103 = vld [vmem:[#allocation10 + $0x30] sm:$0xff]
        %v3104 = vld [vmem:[#allocation10 + $0x38] sm:$0xff]
        %v3105 = vld [vmem:[#allocation10 + $0x40] sm:$0xff]
        %v3106 = vld [vmem:[#allocation10 + $0x48] sm:$0xff]
        %v3107 = vld [vmem:[#allocation10 + $0x50] sm:$0xff]
        %v3108 = vld [vmem:[#allocation10 + $0x58] sm:$0xff]
        %v3109 = vld [vmem:[#allocation10 + $0x60] sm:$0xff]
        %v3110 = vld [vmem:[#allocation10 + $0x68] sm:$0xff]
        %v3111 = vld [vmem:[#allocation10 + $0x70] sm:$0xff]
        %v3112 = vld [vmem:[#allocation10 + $0x78] sm:$0xff]
        %v3113 = vld [vmem:[%s6] sm:$0x1]
        %v3115 = vlaneseq
        %v3116 = vshrl.u32 %v3115, 7
        %v3117 = vsub.s32 0, %v3116
        %v3118 = vrot.slane %v3113, %v3117
        %3120 = vmatprep.subr.mxu0 0.0
        %3121 = vmatpush1.msra.mxu0 %v3097
        %3122 = vmatprep.subr.mxu0 0.0
        %3123 = vmatpush1.msra.mxu0 %v3098
        %3124 = vmatprep.subr.mxu0 0.0
        %3125 = vmatpush1.msra.mxu0 %v3099
        %3126 = vmatprep.subr.mxu0 0.0
        %3127 = vmatpush1.msra.mxu0 %v3100
        %3128 = vmatprep.subr.mxu0 0.0
        %3129 = vmatpush1.msra.mxu0 %v3101
        %3130 = vmatprep.subr.mxu0 0.0
        %3131 = vmatpush1.msra.mxu0 %v3102
        %3132 = vmatprep.subr.mxu0 0.0
        %3133 = vmatpush1.msra.mxu0 %v3103
        %3134 = vmatprep.subr.mxu0 0.0
        %3135 = vmatpush1.msra.mxu0 %v3104
        %3136 = vmatprep.subr.mxu0 0.0
        %3137 = vmatpush1.msra.mxu0 %v3105
        %3138 = vmatprep.subr.mxu0 0.0
        %3139 = vmatpush1.msra.mxu0 %v3106
        %3140 = vmatprep.subr.mxu0 0.0
        %3141 = vmatpush1.msra.mxu0 %v3107
        %3142 = vmatprep.subr.mxu0 0.0
        %3143 = vmatpush1.msra.mxu0 %v3108
        %3144 = vmatprep.subr.mxu0 0.0
        %3145 = vmatpush1.msra.mxu0 %v3109
        %3146 = vmatprep.subr.mxu0 0.0
        %3147 = vmatpush1.msra.mxu0 %v3110
        %3148 = vmatprep.subr.mxu0 0.0
        %3149 = vmatpush1.msra.mxu0 %v3111
        %3150 = vmatprep.subr.mxu0 0.0
        %3151 = vmatpush1.msra.mxu0 %v3112
        %3152 = vmatprep.subr.mxu0 0.0
        %3153 = vmatpush1.msra.mxu0 0.0
        %3154 = vmatprep.subr.mxu0 0.0
        %3155 = vmatpush1.msra.mxu0 0.0
        %3156 = vmatprep.subr.mxu0 0.0
        %3157 = vmatpush1.msra.mxu0 0.0
        %3158 = vmatprep.subr.mxu0 0.0
        %3159 = vmatpush1.msra.mxu0 0.0
        %3160 = vmatprep.subr.mxu0 0.0
        %3161 = vmatpush1.msra.mxu0 0.0
        %3162 = vmatprep.subr.mxu0 0.0
        %3163 = vmatpush1.msra.mxu0 0.0
        %3164 = vmatprep.subr.mxu0 0.0
        %3165 = vmatpush1.msra.mxu0 0.0
        %3166 = vmatprep.subr.mxu0 0.0
        %3167 = vmatpush1.msra.mxu0 0.0
        %3168 = vmatprep.subr.mxu0 0.0
        %3169 = vmatpush1.msra.mxu0 0.0
        %3170 = vmatprep.subr.mxu0 0.0
        %3171 = vmatpush1.msra.mxu0 0.0
        %3172 = vmatprep.subr.mxu0 0.0
        %3173 = vmatpush1.msra.mxu0 0.0
        %3174 = vmatprep.subr.mxu0 0.0
        %3175 = vmatpush1.msra.mxu0 0.0
        %3176 = vmatprep.subr.mxu0 0.0
        %3177 = vmatpush1.msra.mxu0 0.0
        %3178 = vmatprep.subr.mxu0 0.0
        %3179 = vmatpush1.msra.mxu0 0.0
        %3180 = vmatprep.subr.mxu0 0.0
        %3181 = vmatpush1.msra.mxu0 0.0
        %3182 = vmatprep.subr.mxu0 0.0
        %3183 = vmatpush1.msra.mxu0 0.0
        %3184 = vmatprep.mubr.f32.mxu0 0.0
        %3185 = vmatmul.mubr.f32.gmra.mrb[0].mxu0 %v3095
        %v3186 = vpop.f32.mrb[0].mxu0
        %v3187 = vadd.f32 %v3118, %v3186
        %v3188 = vpop.f32.mrb[0].mxu0
        %3189 = vmatprep.mubr.f32.mxu0 0.0
        %3190 = vmatmul.mubr.f32.gmra.mrb[0].mxu0 %v3096
        %v3191 = vpop.f32.mrb[0].mxu0
        %v3192 = vadd.f32 %v3118, %v3191
        %v3193 = vpop.f32.mrb[0].mxu0
        %3194 = vdwg.mxu0
        %v3195 = vadd.f32 %v848, %v3187
        %v3196 = vadd.f32 %v849, %v3192
        %3197 = vadd.xlane.f32.xlu0 %v3195
        %v3198 = vpop.xlane.xlu0 %3197
        %3199 = vadd.xlane.f32.xlu0 %v3196
        %v3200 = vpop.xlane.xlu0 %3199
        %v3201 = vmul.f32 %v3198, %v866
        %v3202 = vmul.f32 %v3200, %v866
        %v3203 = vsub.f32 %v3195, %v3201
        %v3204 = vsub.f32 %v3196, %v3202
        %v3205 = vmul.f32 %v3203, %v3203
        %v3206 = vmul.f32 %v3204, %v3204
        %3207 = vadd.xlane.f32.xlu0 %v3205
        %v3208 = vpop.xlane.xlu0 %3207
        %3209 = vadd.xlane.f32.xlu0 %v3206
        %v3210 = vpop.xlane.xlu0 %3209
        %v3211 = vmul.f32 %v3208, %v877
        %v3212 = vmul.f32 %v3210, %v877
        %v3213 = vrsqrt.pop %v3211
        %v3214 = vmul.f32 %v3211, %v3213
        %vm3215 = vcmp.eq.f32.partialorder %v3211, inf
        %v3216 = vsel %vm3215, %v3211, %v3214
        %vm3217 = vcmp.eq.f32.partialorder %v3211, 0.0
        %v3218 = vand.u32 %v3211, 2147483648
        %v3219 = vsel %vm3217, %v3218, %v3216
        %v3220 = vrsqrt.pop %v3212
        %v3221 = vmul.f32 %v3212, %v3220
        %vm3222 = vcmp.eq.f32.partialorder %v3212, inf
        %v3223 = vsel %vm3222, %v3212, %v3221
        %vm3224 = vcmp.eq.f32.partialorder %v3212, 0.0
        %v3225 = vand.u32 %v3212, 2147483648
        %v3226 = vsel %vm3224, %v3225, %v3223
        %v3227 = vadd.f32 %v3219, 1e-06
        %v3228 = vadd.f32 %v3226, 1e-06
        %v3229 = vrcp.pop %v3227
        %v3230 = vrcp.pop %v3228
        %v3231 = vld [vmem:[%s19] sm:$0x1]
        %v3233 = vlaneseq
        %v3234 = vshrl.u32 %v3233, 7
        %v3235 = vsub.s32 0, %v3234
        %v3236 = vrot.slane %v3231, %v3235
        %v3238 = vmul.f32 %v3236, %v3203
        %v3239 = vmul.f32 %v3236, %v3204
        %v3240 = vmul.f32 %v3238, %v3229
        %v3241 = vmul.f32 %v3239, %v3230
        %v3242 = vld [vmem:[%s20] sm:$0x1]
        %v3244 = vlaneseq
        %v3245 = vshrl.u32 %v3244, 7
        %v3246 = vsub.s32 0, %v3245
        %v3247 = vrot.slane %v3242, %v3246
        %v3249 = vadd.f32 %v3240, %v3247
        %v3250 = vadd.f32 %v3241, %v3247
        %v3251 = vld [vmem:[#allocation12] sm:$0xff]
        %v3252 = vld [vmem:[#allocation12 + $0x8] sm:$0xff]
        %v3253 = vld [vmem:[#allocation12 + $0x10] sm:$0xff]
        %v3254 = vld [vmem:[#allocation12 + $0x18] sm:$0xff]
        %v3255 = vld [vmem:[#allocation12 + $0x20] sm:$0xff]
        %v3256 = vld [vmem:[#allocation12 + $0x28] sm:$0xff]
        %v3257 = vld [vmem:[#allocation12 + $0x30] sm:$0xff]
        %v3258 = vld [vmem:[#allocation12 + $0x38] sm:$0xff]
        %v3259 = vld [vmem:[#allocation12 + $0x40] sm:$0xff]
        %v3260 = vld [vmem:[#allocation12 + $0x48] sm:$0xff]
        %v3261 = vld [vmem:[#allocation12 + $0x50] sm:$0xff]
        %v3262 = vld [vmem:[#allocation12 + $0x58] sm:$0xff]
        %v3263 = vld [vmem:[#allocation12 + $0x60] sm:$0xff]
        %v3264 = vld [vmem:[#allocation12 + $0x68] sm:$0xff]
        %v3265 = vld [vmem:[#allocation12 + $0x70] sm:$0xff]
        %v3266 = vld [vmem:[#allocation12 + $0x78] sm:$0xff]
        %v3267 = vld [vmem:[%s8] sm:$0x1]
        %v3269 = vlaneseq
        %v3270 = vshrl.u32 %v3269, 7
        %v3271 = vsub.s32 0, %v3270
        %v3272 = vrot.slane %v3267, %v3271
        %3274 = vmatprep.subr.mxu0 0.0
        %3275 = vmatpush1.msra.mxu0 %v3251
        %3276 = vmatprep.subr.mxu0 0.0
        %3277 = vmatpush1.msra.mxu0 %v3252
        %3278 = vmatprep.subr.mxu0 0.0
        %3279 = vmatpush1.msra.mxu0 %v3253
        %3280 = vmatprep.subr.mxu0 0.0
        %3281 = vmatpush1.msra.mxu0 %v3254
        %3282 = vmatprep.subr.mxu0 0.0
        %3283 = vmatpush1.msra.mxu0 %v3255
        %3284 = vmatprep.subr.mxu0 0.0
        %3285 = vmatpush1.msra.mxu0 %v3256
        %3286 = vmatprep.subr.mxu0 0.0
        %3287 = vmatpush1.msra.mxu0 %v3257
        %3288 = vmatprep.subr.mxu0 0.0
        %3289 = vmatpush1.msra.mxu0 %v3258
        %3290 = vmatprep.subr.mxu0 0.0
        %3291 = vmatpush1.msra.mxu0 %v3259
        %3292 = vmatprep.subr.mxu0 0.0
        %3293 = vmatpush1.msra.mxu0 %v3260
        %3294 = vmatprep.subr.mxu0 0.0
        %3295 = vmatpush1.msra.mxu0 %v3261
        %3296 = vmatprep.subr.mxu0 0.0
        %3297 = vmatpush1.msra.mxu0 %v3262
        %3298 = vmatprep.subr.mxu0 0.0
        %3299 = vmatpush1.msra.mxu0 %v3263
        %3300 = vmatprep.subr.mxu0 0.0
        %3301 = vmatpush1.msra.mxu0 %v3264
        %3302 = vmatprep.subr.mxu0 0.0
        %3303 = vmatpush1.msra.mxu0 %v3265
        %3304 = vmatprep.subr.mxu0 0.0
        %3305 = vmatpush1.msra.mxu0 %v3266
        %3306 = vmatprep.subr.mxu0 0.0
        %3307 = vmatpush1.msra.mxu0 0.0
        %3308 = vmatprep.subr.mxu0 0.0
        %3309 = vmatpush1.msra.mxu0 0.0
        %3310 = vmatprep.subr.mxu0 0.0
        %3311 = vmatpush1.msra.mxu0 0.0
        %3312 = vmatprep.subr.mxu0 0.0
        %3313 = vmatpush1.msra.mxu0 0.0
        %3314 = vmatprep.subr.mxu0 0.0
        %3315 = vmatpush1.msra.mxu0 0.0
        %3316 = vmatprep.subr.mxu0 0.0
        %3317 = vmatpush1.msra.mxu0 0.0
        %3318 = vmatprep.subr.mxu0 0.0
        %3319 = vmatpush1.msra.mxu0 0.0
        %3320 = vmatprep.subr.mxu0 0.0
        %3321 = vmatpush1.msra.mxu0 0.0
        %3322 = vmatprep.subr.mxu0 0.0
        %3323 = vmatpush1.msra.mxu0 0.0
        %3324 = vmatprep.subr.mxu0 0.0
        %3325 = vmatpush1.msra.mxu0 0.0
        %3326 = vmatprep.subr.mxu0 0.0
        %3327 = vmatpush1.msra.mxu0 0.0
        %3328 = vmatprep.subr.mxu0 0.0
        %3329 = vmatpush1.msra.mxu0 0.0
        %3330 = vmatprep.subr.mxu0 0.0
        %3331 = vmatpush1.msra.mxu0 0.0
        %3332 = vmatprep.subr.mxu0 0.0
        %3333 = vmatpush1.msra.mxu0 0.0
        %3334 = vmatprep.subr.mxu0 0.0
        %3335 = vmatpush1.msra.mxu0 0.0
        %3336 = vmatprep.subr.mxu0 0.0
        %3337 = vmatpush1.msra.mxu0 0.0
        %3338 = vmatprep.mubr.f32.mxu0 0.0
        %3339 = vmatmul.mubr.f32.gmra.mrb[0].mxu0 %v3249
        %v3340 = vpop.f32.mrb[0].mxu0
        %v3341 = vadd.f32 %v3272, %v3340
        %v3342 = vpop.f32.mrb[0].mxu0
        %3343 = vmatprep.mubr.f32.mxu0 0.0
        %3344 = vmatmul.mubr.f32.gmra.mrb[0].mxu0 %v3250
        %v3345 = vpop.f32.mrb[0].mxu0
        %v3346 = vadd.f32 %v3272, %v3345
        %v3347 = vpop.f32.mrb[0].mxu0
        %3348 = vdwg.mxu0
        %v3349 = vld [vmem:[#allocation13] sm:$0xff]
        %v3350 = vld [vmem:[#allocation13 + $0x8] sm:$0xff]
        %v3351 = vld [vmem:[#allocation13 + $0x10] sm:$0xff]
        %v3352 = vld [vmem:[#allocation13 + $0x18] sm:$0xff]
        %v3353 = vld [vmem:[#allocation13 + $0x20] sm:$0xff]
        %v3354 = vld [vmem:[#allocation13 + $0x28] sm:$0xff]
        %v3355 = vld [vmem:[#allocation13 + $0x30] sm:$0xff]
        %v3356 = vld [vmem:[#allocation13 + $0x38] sm:$0xff]
        %v3357 = vld [vmem:[#allocation13 + $0x40] sm:$0xff]
        %v3358 = vld [vmem:[#allocation13 + $0x48] sm:$0xff]
        %v3359 = vld [vmem:[#allocation13 + $0x50] sm:$0xff]
        %v3360 = vld [vmem:[#allocation13 + $0x58] sm:$0xff]
        %v3361 = vld [vmem:[#allocation13 + $0x60] sm:$0xff]
        %v3362 = vld [vmem:[#allocation13 + $0x68] sm:$0xff]
        %v3363 = vld [vmem:[#allocation13 + $0x70] sm:$0xff]
        %v3364 = vld [vmem:[#allocation13 + $0x78] sm:$0xff]
        %v3365 = vld [vmem:[#allocation13 + $0x80] sm:$0xff]
        %v3366 = vld [vmem:[#allocation13 + $0x88] sm:$0xff]
        %v3367 = vld [vmem:[#allocation13 + $0x90] sm:$0xff]
        %v3368 = vld [vmem:[#allocation13 + $0x98] sm:$0xff]
        %v3369 = vld [vmem:[#allocation13 + $0xa0] sm:$0xff]
        %v3370 = vld [vmem:[#allocation13 + $0xa8] sm:$0xff]
        %v3371 = vld [vmem:[#allocation13 + $0xb0] sm:$0xff]
        %v3372 = vld [vmem:[#allocation13 + $0xb8] sm:$0xff]
        %v3373 = vld [vmem:[#allocation13 + $0xc0] sm:$0xff]
        %v3374 = vld [vmem:[#allocation13 + $0xc8] sm:$0xff]
        %v3375 = vld [vmem:[#allocation13 + $0xd0] sm:$0xff]
        %v3376 = vld [vmem:[#allocation13 + $0xd8] sm:$0xff]
        %v3377 = vld [vmem:[#allocation13 + $0xe0] sm:$0xff]
        %v3378 = vld [vmem:[#allocation13 + $0xe8] sm:$0xff]
        %v3379 = vld [vmem:[#allocation13 + $0xf0] sm:$0xff]
        %v3380 = vld [vmem:[#allocation13 + $0xf8] sm:$0xff]
        %v3381 = vld [vmem:[%s10] sm:$0x3]
        %v3383 = vlaneseq
        %v3384 = vshrl.u32 %v3383, 7
        %v3385 = vsub.s32 0, %v3384
        %v3386 = vrot.slane %v3381, %v3385
        %v3387 = vlaneseq
        %v3388 = vshrl.u32 %v3387, 7
        %v3389 = vsub.s32 1, %v3388
        %v3390 = vrot.slane %v3381, %v3389
        %3393 = vmatprep.subr.mxu0 %v3350
        %3394 = vmatpush1.msra.mxu0 %v3349
        %3395 = vmatprep.subr.mxu0 %v3352
        %3396 = vmatpush1.msra.mxu0 %v3351
        %3397 = vmatprep.subr.mxu0 %v3354
        %3398 = vmatpush1.msra.mxu0 %v3353
        %3399 = vmatprep.subr.mxu0 %v3356
        %3400 = vmatpush1.msra.mxu0 %v3355
        %3401 = vmatprep.subr.mxu0 %v3358
        %3402 = vmatpush1.msra.mxu0 %v3357
        %3403 = vmatprep.subr.mxu0 %v3360
        %3404 = vmatpush1.msra.mxu0 %v3359
        %3405 = vmatprep.subr.mxu0 %v3362
        %3406 = vmatpush1.msra.mxu0 %v3361
        %3407 = vmatprep.subr.mxu0 %v3364
        %3408 = vmatpush1.msra.mxu0 %v3363
        %3409 = vmatprep.subr.mxu0 %v3366
        %3410 = vmatpush1.msra.mxu0 %v3365
        %3411 = vmatprep.subr.mxu0 %v3368
        %3412 = vmatpush1.msra.mxu0 %v3367
        %3413 = vmatprep.subr.mxu0 %v3370
        %3414 = vmatpush1.msra.mxu0 %v3369
        %3415 = vmatprep.subr.mxu0 %v3372
        %3416 = vmatpush1.msra.mxu0 %v3371
        %3417 = vmatprep.subr.mxu0 %v3374
        %3418 = vmatpush1.msra.mxu0 %v3373
        %3419 = vmatprep.subr.mxu0 %v3376
        %3420 = vmatpush1.msra.mxu0 %v3375
        %3421 = vmatprep.subr.mxu0 %v3378
        %3422 = vmatpush1.msra.mxu0 %v3377
        %3423 = vmatprep.subr.mxu0 %v3380
        %3424 = vmatpush1.msra.mxu0 %v3379
        %3425 = vmatprep.subr.mxu0 0.0
        %3426 = vmatpush1.msra.mxu0 0.0
        %3427 = vmatprep.subr.mxu0 0.0
        %3428 = vmatpush1.msra.mxu0 0.0
        %3429 = vmatprep.subr.mxu0 0.0
        %3430 = vmatpush1.msra.mxu0 0.0
        %3431 = vmatprep.subr.mxu0 0.0
        %3432 = vmatpush1.msra.mxu0 0.0
        %3433 = vmatprep.subr.mxu0 0.0
        %3434 = vmatpush1.msra.mxu0 0.0
        %3435 = vmatprep.subr.mxu0 0.0
        %3436 = vmatpush1.msra.mxu0 0.0
        %3437 = vmatprep.subr.mxu0 0.0
        %3438 = vmatpush1.msra.mxu0 0.0
        %3439 = vmatprep.subr.mxu0 0.0
        %3440 = vmatpush1.msra.mxu0 0.0
        %3441 = vmatprep.subr.mxu0 0.0
        %3442 = vmatpush1.msra.mxu0 0.0
        %3443 = vmatprep.subr.mxu0 0.0
        %3444 = vmatpush1.msra.mxu0 0.0
        %3445 = vmatprep.subr.mxu0 0.0
        %3446 = vmatpush1.msra.mxu0 0.0
        %3447 = vmatprep.subr.mxu0 0.0
        %3448 = vmatpush1.msra.mxu0 0.0
        %3449 = vmatprep.subr.mxu0 0.0
        %3450 = vmatpush1.msra.mxu0 0.0
        %3451 = vmatprep.subr.mxu0 0.0
        %3452 = vmatpush1.msra.mxu0 0.0
        %3453 = vmatprep.subr.mxu0 0.0
        %3454 = vmatpush1.msra.mxu0 0.0
        %3455 = vmatprep.subr.mxu0 0.0
        %3456 = vmatpush1.msra.mxu0 0.0
        %3457 = vmatprep.mubr.f32.mxu0 0.0
        %3458 = vmatmul.mubr.f32.gmra.mrb[0].mxu0 %v850
        %v3459 = vpop.f32.mrb[0].mxu0
        %v3460 = vadd.f32 %v3386, %v3459
        %v3461 = vpop.f32.mrb[0].mxu0
        %v3462 = vadd.f32 %v3390, %v3461
        %3463 = vmatprep.mubr.f32.mxu0 0.0
        %3464 = vmatmul.mubr.f32.gmra.mrb[0].mxu0 %v851
        %v3465 = vpop.f32.mrb[0].mxu0
        %v3466 = vadd.f32 %v3386, %v3465
        %v3467 = vpop.f32.mrb[0].mxu0
        %v3468 = vadd.f32 %v3390, %v3467
        %3469 = vdwg.mxu0
        %3472 = vrot.lane.b32.xlu0 %v3341, 96
        %v3473 = vpop.permute.xlu0 %3472
        %3474 = vrot.lane.b32.xlu0 %v3346, 96
        %v3475 = vpop.permute.xlu0 %3474
        %3478 = vrot.lane.b32.xlu0 %v3341, 64
        %v3479 = vpop.permute.xlu0 %3478
        %3480 = vrot.lane.b32.xlu0 %v3346, 64
        %v3481 = vpop.permute.xlu0 %3480
        %3484 = vrot.lane.b32.xlu0 %v3341, 32
        %v3485 = vpop.permute.xlu0 %3484
        %3486 = vrot.lane.b32.xlu0 %v3346, 32
        %v3487 = vpop.permute.xlu0 %3486
        %v3490 = vcombine.low %v3341, %v3479
        %v3491 = vcombine.high %v3341, %v3479
        %v3493 = vunpack.c.l.s4 1983009808
        %v3494 = vunpack.c.0.s8 %v3493
        %v3495 = vlaneseq
        %v3496 = vshrl.u32 %v3495, 7
        %v3497 = vsub.s32 %v3494, %v3496
        %v3498 = vrot.slane %v3490, %v3497
        %v3500 = vunpack.c.l.s4 1983009808
        %v3501 = vunpack.c.0.s8 %v3500
        %v3502 = vlaneseq
        %v3503 = vshrl.u32 %v3502, 7
        %v3504 = vsub.s32 %v3501, %v3503
        %v3505 = vrot.slane %v3491, %v3504
        %v3506 = vcombine.low %v3473, %v3485
        %v3507 = vcombine.high %v3473, %v3485
        %v3509 = vunpack.c.l.s4 1983009808
        %v3510 = vunpack.c.0.s8 %v3509
        %v3511 = vlaneseq
        %v3512 = vshrl.u32 %v3511, 7
        %v3513 = vsub.s32 %v3510, %v3512
        %v3514 = vrot.slane %v3506, %v3513
        %v3516 = vunpack.c.l.s4 1983009808
        %v3517 = vunpack.c.0.s8 %v3516
        %v3518 = vlaneseq
        %v3519 = vshrl.u32 %v3518, 7
        %v3520 = vsub.s32 %v3517, %v3519
        %v3521 = vrot.slane %v3507, %v3520
        %v3522 = vcombine.low %v3498, %v3514
        %v3523 = vcombine.high %v3498, %v3514
        %v3525 = vunpack.c.l.s4 1934713408
        %v3526 = vunpack.c.0.s8 %v3525
        %v3527 = vlaneseq
        %v3528 = vshrl.u32 %v3527, 7
        %v3529 = vsub.s32 %v3526, %v3528
        %v3530 = vrot.slane %v3522, %v3529
        %v3532 = vunpack.c.l.s4 1934713408
        %v3533 = vunpack.c.0.s8 %v3532
        %v3534 = vlaneseq
        %v3535 = vshrl.u32 %v3534, 7
        %v3536 = vsub.s32 %v3533, %v3535
        %v3537 = vrot.slane %v3523, %v3536
        %v3538 = vcombine.low %v3505, %v3521
        %v3539 = vcombine.high %v3505, %v3521
        %v3541 = vunpack.c.l.s4 1934713408
        %v3542 = vunpack.c.0.s8 %v3541
        %v3543 = vlaneseq
        %v3544 = vshrl.u32 %v3543, 7
        %v3545 = vsub.s32 %v3542, %v3544
        %v3546 = vrot.slane %v3538, %v3545
        %v3548 = vunpack.c.l.s4 1934713408
        %v3549 = vunpack.c.0.s8 %v3548
        %v3550 = vlaneseq
        %v3551 = vshrl.u32 %v3550, 7
        %v3552 = vsub.s32 %v3549, %v3551
        %v3553 = vrot.slane %v3539, %v3552
        %v3554 = vcombine.high %v3530, 0.0
        %v3555 = vcombine.high %v3537, 0.0
        %v3556 = vcombine.high %v3546, 0.0
        %v3557 = vcombine.high %v3553, 0.0
        %v3558 = vcombine.low %v3346, %v3481
        %v3559 = vcombine.high %v3346, %v3481
        %v3561 = vunpack.c.l.s4 1983009808
        %v3562 = vunpack.c.0.s8 %v3561
        %v3563 = vlaneseq
        %v3564 = vshrl.u32 %v3563, 7
        %v3565 = vsub.s32 %v3562, %v3564
        %v3566 = vrot.slane %v3558, %v3565
        %v3568 = vunpack.c.l.s4 1983009808
        %v3569 = vunpack.c.0.s8 %v3568
        %v3570 = vlaneseq
        %v3571 = vshrl.u32 %v3570, 7
        %v3572 = vsub.s32 %v3569, %v3571
        %v3573 = vrot.slane %v3559, %v3572
        %v3574 = vcombine.low %v3475, %v3487
        %v3575 = vcombine.high %v3475, %v3487
        %v3577 = vunpack.c.l.s4 1983009808
        %v3578 = vunpack.c.0.s8 %v3577
        %v3579 = vlaneseq
        %v3580 = vshrl.u32 %v3579, 7
        %v3581 = vsub.s32 %v3578, %v3580
        %v3582 = vrot.slane %v3574, %v3581
        %v3584 = vunpack.c.l.s4 1983009808
        %v3585 = vunpack.c.0.s8 %v3584
        %v3586 = vlaneseq
        %v3587 = vshrl.u32 %v3586, 7
        %v3588 = vsub.s32 %v3585, %v3587
        %v3589 = vrot.slane %v3575, %v3588
        %v3590 = vcombine.low %v3566, %v3582
        %v3591 = vcombine.high %v3566, %v3582
        %v3593 = vunpack.c.l.s4 1934713408
        %v3594 = vunpack.c.0.s8 %v3593
        %v3595 = vlaneseq
        %v3596 = vshrl.u32 %v3595, 7
        %v3597 = vsub.s32 %v3594, %v3596
        %v3598 = vrot.slane %v3590, %v3597
        %v3600 = vunpack.c.l.s4 1934713408
        %v3601 = vunpack.c.0.s8 %v3600
        %v3602 = vlaneseq
        %v3603 = vshrl.u32 %v3602, 7
        %v3604 = vsub.s32 %v3601, %v3603
        %v3605 = vrot.slane %v3591, %v3604
        %v3606 = vcombine.low %v3573, %v3589
        %v3607 = vcombine.high %v3573, %v3589
        %v3609 = vunpack.c.l.s4 1934713408
        %v3610 = vunpack.c.0.s8 %v3609
        %v3611 = vlaneseq
        %v3612 = vshrl.u32 %v3611, 7
        %v3613 = vsub.s32 %v3610, %v3612
        %v3614 = vrot.slane %v3606, %v3613
        %v3616 = vunpack.c.l.s4 1934713408
        %v3617 = vunpack.c.0.s8 %v3616
        %v3618 = vlaneseq
        %v3619 = vshrl.u32 %v3618, 7
        %v3620 = vsub.s32 %v3617, %v3619
        %v3621 = vrot.slane %v3607, %v3620
        %v3622 = vcombine.high %v3598, 0.0
        %v3623 = vcombine.high %v3605, 0.0
        %v3624 = vcombine.high %v3614, 0.0
        %v3625 = vcombine.high %v3621, 0.0
        %v3626 = vcombine.low %v3530, %v3537
        %v3628 = vunpack.c.l.s4 1983009808
        %v3629 = vunpack.c.0.s8 %v3628
        %v3630 = vlaneseq
        %v3631 = vshrl.u32 %v3630, 7
        %v3632 = vsub.s32 %v3629, %v3631
        %v3633 = vrot.slane %v3626, %v3632
        %v3634 = vcombine.low %v3554, %v3555
        %v3636 = vunpack.c.l.s4 1983009808
        %v3637 = vunpack.c.0.s8 %v3636
        %v3638 = vlaneseq
        %v3639 = vshrl.u32 %v3638, 7
        %v3640 = vsub.s32 %v3637, %v3639
        %v3641 = vrot.slane %v3634, %v3640
        %v3642 = vcombine.low %v3546, %v3553
        %v3644 = vunpack.c.l.s4 1983009808
        %v3645 = vunpack.c.0.s8 %v3644
        %v3646 = vlaneseq
        %v3647 = vshrl.u32 %v3646, 7
        %v3648 = vsub.s32 %v3645, %v3647
        %v3649 = vrot.slane %v3642, %v3648
        %v3650 = vcombine.low %v3556, %v3557
        %v3652 = vunpack.c.l.s4 1983009808
        %v3653 = vunpack.c.0.s8 %v3652
        %v3654 = vlaneseq
        %v3655 = vshrl.u32 %v3654, 7
        %v3656 = vsub.s32 %v3653, %v3655
        %v3657 = vrot.slane %v3650, %v3656
        %v3658 = vcombine.low %v3633, %v3641
        %v3659 = vcombine.high %v3633, %v3641
        %v3661 = vunpack.c.l.s4 1934713408
        %v3662 = vunpack.c.0.s8 %v3661
        %v3663 = vlaneseq
        %v3664 = vshrl.u32 %v3663, 7
        %v3665 = vsub.s32 %v3662, %v3664
        %v3666 = vrot.slane %v3658, %v3665
        %v3668 = vunpack.c.l.s4 1934713408
        %v3669 = vunpack.c.0.s8 %v3668
        %v3670 = vlaneseq
        %v3671 = vshrl.u32 %v3670, 7
        %v3672 = vsub.s32 %v3669, %v3671
        %v3673 = vrot.slane %v3659, %v3672
        %v3674 = vcombine.low %v3649, %v3657
        %v3675 = vcombine.high %v3649, %v3657
        %v3677 = vunpack.c.l.s4 1934713408
        %v3678 = vunpack.c.0.s8 %v3677
        %v3679 = vlaneseq
        %v3680 = vshrl.u32 %v3679, 7
        %v3681 = vsub.s32 %v3678, %v3680
        %v3682 = vrot.slane %v3674, %v3681
        %v3684 = vunpack.c.l.s4 1934713408
        %v3685 = vunpack.c.0.s8 %v3684
        %v3686 = vlaneseq
        %v3687 = vshrl.u32 %v3686, 7
        %v3688 = vsub.s32 %v3685, %v3687
        %v3689 = vrot.slane %v3675, %v3688
        %v3690 = vcombine.low %v3666, %v3682
        %v3691 = vcombine.high %v3666, %v3682
        %v3692 = vcombine.low %v3673, %v3689
        %v3693 = vcombine.high %v3673, %v3689
        %v3694 = vcombine.low %v3598, %v3605
        %v3696 = vunpack.c.l.s4 1983009808
        %v3697 = vunpack.c.0.s8 %v3696
        %v3698 = vlaneseq
        %v3699 = vshrl.u32 %v3698, 7
        %v3700 = vsub.s32 %v3697, %v3699
        %v3701 = vrot.slane %v3694, %v3700
        %v3702 = vcombine.low %v3622, %v3623
        %v3704 = vunpack.c.l.s4 1983009808
        %v3705 = vunpack.c.0.s8 %v3704
        %v3706 = vlaneseq
        %v3707 = vshrl.u32 %v3706, 7
        %v3708 = vsub.s32 %v3705, %v3707
        %v3709 = vrot.slane %v3702, %v3708
        %v3710 = vcombine.low %v3614, %v3621
        %v3712 = vunpack.c.l.s4 1983009808
        %v3713 = vunpack.c.0.s8 %v3712
        %v3714 = vlaneseq
        %v3715 = vshrl.u32 %v3714, 7
        %v3716 = vsub.s32 %v3713, %v3715
        %v3717 = vrot.slane %v3710, %v3716
        %v3718 = vcombine.low %v3624, %v3625
        %v3720 = vunpack.c.l.s4 1983009808
        %v3721 = vunpack.c.0.s8 %v3720
        %v3722 = vlaneseq
        %v3723 = vshrl.u32 %v3722, 7
        %v3724 = vsub.s32 %v3721, %v3723
        %v3725 = vrot.slane %v3718, %v3724
        %v3726 = vcombine.low %v3701, %v3709
        %v3727 = vcombine.high %v3701, %v3709
        %v3729 = vunpack.c.l.s4 1934713408
        %v3730 = vunpack.c.0.s8 %v3729
        %v3731 = vlaneseq
        %v3732 = vshrl.u32 %v3731, 7
        %v3733 = vsub.s32 %v3730, %v3732
        %v3734 = vrot.slane %v3726, %v3733
        %v3736 = vunpack.c.l.s4 1934713408
        %v3737 = vunpack.c.0.s8 %v3736
        %v3738 = vlaneseq
        %v3739 = vshrl.u32 %v3738, 7
        %v3740 = vsub.s32 %v3737, %v3739
        %v3741 = vrot.slane %v3727, %v3740
        %v3742 = vcombine.low %v3717, %v3725
        %v3743 = vcombine.high %v3717, %v3725
        %v3745 = vunpack.c.l.s4 1934713408
        %v3746 = vunpack.c.0.s8 %v3745
        %v3747 = vlaneseq
        %v3748 = vshrl.u32 %v3747, 7
        %v3749 = vsub.s32 %v3746, %v3748
        %v3750 = vrot.slane %v3742, %v3749
        %v3752 = vunpack.c.l.s4 1934713408
        %v3753 = vunpack.c.0.s8 %v3752
        %v3754 = vlaneseq
        %v3755 = vshrl.u32 %v3754, 7
        %v3756 = vsub.s32 %v3753, %v3755
        %v3757 = vrot.slane %v3743, %v3756
        %v3758 = vcombine.low %v3734, %v3750
        %v3759 = vcombine.high %v3734, %v3750
        %v3760 = vcombine.low %v3741, %v3757
        %v3761 = vcombine.high %v3741, %v3757
        %3764 = vrot.lane.b32.xlu0 %v3460, 96
        %v3765 = vpop.permute.xlu0 %3764
        %3766 = vrot.lane.b32.xlu0 %v3466, 96
        %v3767 = vpop.permute.xlu0 %3766
        %3770 = vrot.lane.b32.xlu0 %v3460, 64
        %v3771 = vpop.permute.xlu0 %3770
        %3772 = vrot.lane.b32.xlu0 %v3466, 64
        %v3773 = vpop.permute.xlu0 %3772
        %3776 = vrot.lane.b32.xlu0 %v3460, 32
        %v3777 = vpop.permute.xlu0 %3776
        %3778 = vrot.lane.b32.xlu0 %v3466, 32
        %v3779 = vpop.permute.xlu0 %3778
        %v3782 = vcombine.low %v3460, %v3771
        %v3783 = vcombine.high %v3460, %v3771
        %v3785 = vunpack.c.l.s4 1983009808
        %v3786 = vunpack.c.0.s8 %v3785
        %v3787 = vlaneseq
        %v3788 = vshrl.u32 %v3787, 7
        %v3789 = vsub.s32 %v3786, %v3788
        %v3790 = vrot.slane %v3782, %v3789
        %v3792 = vunpack.c.l.s4 1983009808
        %v3793 = vunpack.c.0.s8 %v3792
        %v3794 = vlaneseq
        %v3795 = vshrl.u32 %v3794, 7
        %v3796 = vsub.s32 %v3793, %v3795
        %v3797 = vrot.slane %v3783, %v3796
        %v3798 = vcombine.low %v3765, %v3777
        %v3799 = vcombine.high %v3765, %v3777
        %v3801 = vunpack.c.l.s4 1983009808
        %v3802 = vunpack.c.0.s8 %v3801
        %v3803 = vlaneseq
        %v3804 = vshrl.u32 %v3803, 7
        %v3805 = vsub.s32 %v3802, %v3804
        %v3806 = vrot.slane %v3798, %v3805
        %v3808 = vunpack.c.l.s4 1983009808
        %v3809 = vunpack.c.0.s8 %v3808
        %v3810 = vlaneseq
        %v3811 = vshrl.u32 %v3810, 7
        %v3812 = vsub.s32 %v3809, %v3811
        %v3813 = vrot.slane %v3799, %v3812
        %v3814 = vcombine.low %v3790, %v3806
        %v3815 = vcombine.high %v3790, %v3806
        %v3817 = vunpack.c.l.s4 1934713408
        %v3818 = vunpack.c.0.s8 %v3817
        %v3819 = vlaneseq
        %v3820 = vshrl.u32 %v3819, 7
        %v3821 = vsub.s32 %v3818, %v3820
        %v3822 = vrot.slane %v3814, %v3821
        %v3824 = vunpack.c.l.s4 1934713408
        %v3825 = vunpack.c.0.s8 %v3824
        %v3826 = vlaneseq
        %v3827 = vshrl.u32 %v3826, 7
        %v3828 = vsub.s32 %v3825, %v3827
        %v3829 = vrot.slane %v3815, %v3828
        %v3830 = vcombine.low %v3797, %v3813
        %v3831 = vcombine.high %v3797, %v3813
        %v3833 = vunpack.c.l.s4 1934713408
        %v3834 = vunpack.c.0.s8 %v3833
        %v3835 = vlaneseq
        %v3836 = vshrl.u32 %v3835, 7
        %v3837 = vsub.s32 %v3834, %v3836
        %v3838 = vrot.slane %v3830, %v3837
        %v3840 = vunpack.c.l.s4 1934713408
        %v3841 = vunpack.c.0.s8 %v3840
        %v3842 = vlaneseq
        %v3843 = vshrl.u32 %v3842, 7
        %v3844 = vsub.s32 %v3841, %v3843
        %v3845 = vrot.slane %v3831, %v3844
        %v3846 = vcombine.high %v3822, 0.0
        %v3847 = vcombine.high %v3829, 0.0
        %v3848 = vcombine.high %v3838, 0.0
        %v3849 = vcombine.high %v3845, 0.0
        %v3850 = vcombine.low %v3466, %v3773
        %v3851 = vcombine.high %v3466, %v3773
        %v3853 = vunpack.c.l.s4 1983009808
        %v3854 = vunpack.c.0.s8 %v3853
        %v3855 = vlaneseq
        %v3856 = vshrl.u32 %v3855, 7
        %v3857 = vsub.s32 %v3854, %v3856
        %v3858 = vrot.slane %v3850, %v3857
        %v3860 = vunpack.c.l.s4 1983009808
        %v3861 = vunpack.c.0.s8 %v3860
        %v3862 = vlaneseq
        %v3863 = vshrl.u32 %v3862, 7
        %v3864 = vsub.s32 %v3861, %v3863
        %v3865 = vrot.slane %v3851, %v3864
        %v3866 = vcombine.low %v3767, %v3779
        %v3867 = vcombine.high %v3767, %v3779
        %v3869 = vunpack.c.l.s4 1983009808
        %v3870 = vunpack.c.0.s8 %v3869
        %v3871 = vlaneseq
        %v3872 = vshrl.u32 %v3871, 7
        %v3873 = vsub.s32 %v3870, %v3872
        %v3874 = vrot.slane %v3866, %v3873
        %v3876 = vunpack.c.l.s4 1983009808
        %v3877 = vunpack.c.0.s8 %v3876
        %v3878 = vlaneseq
        %v3879 = vshrl.u32 %v3878, 7
        %v3880 = vsub.s32 %v3877, %v3879
        %v3881 = vrot.slane %v3867, %v3880
        %v3882 = vcombine.low %v3858, %v3874
        %v3883 = vcombine.high %v3858, %v3874
        %v3885 = vunpack.c.l.s4 1934713408
        %v3886 = vunpack.c.0.s8 %v3885
        %v3887 = vlaneseq
        %v3888 = vshrl.u32 %v3887, 7
        %v3889 = vsub.s32 %v3886, %v3888
        %v3890 = vrot.slane %v3882, %v3889
        %v3892 = vunpack.c.l.s4 1934713408
        %v3893 = vunpack.c.0.s8 %v3892
        %v3894 = vlaneseq
        %v3895 = vshrl.u32 %v3894, 7
        %v3896 = vsub.s32 %v3893, %v3895
        %v3897 = vrot.slane %v3883, %v3896
        %v3898 = vcombine.low %v3865, %v3881
        %v3899 = vcombine.high %v3865, %v3881
        %v3901 = vunpack.c.l.s4 1934713408
        %v3902 = vunpack.c.0.s8 %v3901
        %v3903 = vlaneseq
        %v3904 = vshrl.u32 %v3903, 7
        %v3905 = vsub.s32 %v3902, %v3904
        %v3906 = vrot.slane %v3898, %v3905
        %v3908 = vunpack.c.l.s4 1934713408
        %v3909 = vunpack.c.0.s8 %v3908
        %v3910 = vlaneseq
        %v3911 = vshrl.u32 %v3910, 7
        %v3912 = vsub.s32 %v3909, %v3911
        %v3913 = vrot.slane %v3899, %v3912
        %v3914 = vcombine.high %v3890, 0.0
        %v3915 = vcombine.high %v3897, 0.0
        %v3916 = vcombine.high %v3906, 0.0
        %v3917 = vcombine.high %v3913, 0.0
        %v3918 = vcombine.low %v3822, %v3829
        %v3920 = vunpack.c.l.s4 1983009808
        %v3921 = vunpack.c.0.s8 %v3920
        %v3922 = vlaneseq
        %v3923 = vshrl.u32 %v3922, 7
        %v3924 = vsub.s32 %v3921, %v3923
        %v3925 = vrot.slane %v3918, %v3924
        %v3926 = vcombine.low %v3846, %v3847
        %v3928 = vunpack.c.l.s4 1983009808
        %v3929 = vunpack.c.0.s8 %v3928
        %v3930 = vlaneseq
        %v3931 = vshrl.u32 %v3930, 7
        %v3932 = vsub.s32 %v3929, %v3931
        %v3933 = vrot.slane %v3926, %v3932
        %v3934 = vcombine.low %v3838, %v3845
        %v3936 = vunpack.c.l.s4 1983009808
        %v3937 = vunpack.c.0.s8 %v3936
        %v3938 = vlaneseq
        %v3939 = vshrl.u32 %v3938, 7
        %v3940 = vsub.s32 %v3937, %v3939
        %v3941 = vrot.slane %v3934, %v3940
        %v3942 = vcombine.low %v3848, %v3849
        %v3944 = vunpack.c.l.s4 1983009808
        %v3945 = vunpack.c.0.s8 %v3944
        %v3946 = vlaneseq
        %v3947 = vshrl.u32 %v3946, 7
        %v3948 = vsub.s32 %v3945, %v3947
        %v3949 = vrot.slane %v3942, %v3948
        %v3950 = vcombine.low %v3925, %v3933
        %v3951 = vcombine.high %v3925, %v3933
        %v3953 = vunpack.c.l.s4 1934713408
        %v3954 = vunpack.c.0.s8 %v3953
        %v3955 = vlaneseq
        %v3956 = vshrl.u32 %v3955, 7
        %v3957 = vsub.s32 %v3954, %v3956
        %v3958 = vrot.slane %v3950, %v3957
        %v3960 = vunpack.c.l.s4 1934713408
        %v3961 = vunpack.c.0.s8 %v3960
        %v3962 = vlaneseq
        %v3963 = vshrl.u32 %v3962, 7
        %v3964 = vsub.s32 %v3961, %v3963
        %v3965 = vrot.slane %v3951, %v3964
        %v3966 = vcombine.low %v3941, %v3949
        %v3967 = vcombine.high %v3941, %v3949
        %v3969 = vunpack.c.l.s4 1934713408
        %v3970 = vunpack.c.0.s8 %v3969
        %v3971 = vlaneseq
        %v3972 = vshrl.u32 %v3971, 7
        %v3973 = vsub.s32 %v3970, %v3972
        %v3974 = vrot.slane %v3966, %v3973
        %v3976 = vunpack.c.l.s4 1934713408
        %v3977 = vunpack.c.0.s8 %v3976
        %v3978 = vlaneseq
        %v3979 = vshrl.u32 %v3978, 7
        %v3980 = vsub.s32 %v3977, %v3979
        %v3981 = vrot.slane %v3967, %v3980
        %v3982 = vcombine.low %v3958, %v3974
        %v3983 = vcombine.high %v3958, %v3974
        %v3984 = vcombine.low %v3965, %v3981
        %v3985 = vcombine.high %v3965, %v3981
        %v3986 = vcombine.low %v3890, %v3897
        %v3988 = vunpack.c.l.s4 1983009808
        %v3989 = vunpack.c.0.s8 %v3988
        %v3990 = vlaneseq
        %v3991 = vshrl.u32 %v3990, 7
        %v3992 = vsub.s32 %v3989, %v3991
        %v3993 = vrot.slane %v3986, %v3992
        %v3994 = vcombine.low %v3914, %v3915
        %v3996 = vunpack.c.l.s4 1983009808
        %v3997 = vunpack.c.0.s8 %v3996
        %v3998 = vlaneseq
        %v3999 = vshrl.u32 %v3998, 7
        %v4000 = vsub.s32 %v3997, %v3999
        %v4001 = vrot.slane %v3994, %v4000
        %v4002 = vcombine.low %v3906, %v3913
        %v4004 = vunpack.c.l.s4 1983009808
        %v4005 = vunpack.c.0.s8 %v4004
        %v4006 = vlaneseq
        %v4007 = vshrl.u32 %v4006, 7
        %v4008 = vsub.s32 %v4005, %v4007
        %v4009 = vrot.slane %v4002, %v4008
        %v4010 = vcombine.low %v3916, %v3917
        %v4012 = vunpack.c.l.s4 1983009808
        %v4013 = vunpack.c.0.s8 %v4012
        %v4014 = vlaneseq
        %v4015 = vshrl.u32 %v4014, 7
        %v4016 = vsub.s32 %v4013, %v4015
        %v4017 = vrot.slane %v4010, %v4016
        %v4018 = vcombine.low %v3993, %v4001
        %v4019 = vcombine.high %v3993, %v4001
        %v4021 = vunpack.c.l.s4 1934713408
        %v4022 = vunpack.c.0.s8 %v4021
        %v4023 = vlaneseq
        %v4024 = vshrl.u32 %v4023, 7
        %v4025 = vsub.s32 %v4022, %v4024
        %v4026 = vrot.slane %v4018, %v4025
        %v4028 = vunpack.c.l.s4 1934713408
        %v4029 = vunpack.c.0.s8 %v4028
        %v4030 = vlaneseq
        %v4031 = vshrl.u32 %v4030, 7
        %v4032 = vsub.s32 %v4029, %v4031
        %v4033 = vrot.slane %v4019, %v4032
        %v4034 = vcombine.low %v4009, %v4017
        %v4035 = vcombine.high %v4009, %v4017
        %v4037 = vunpack.c.l.s4 1934713408
        %v4038 = vunpack.c.0.s8 %v4037
        %v4039 = vlaneseq
        %v4040 = vshrl.u32 %v4039, 7
        %v4041 = vsub.s32 %v4038, %v4040
        %v4042 = vrot.slane %v4034, %v4041
        %v4044 = vunpack.c.l.s4 1934713408
        %v4045 = vunpack.c.0.s8 %v4044
        %v4046 = vlaneseq
        %v4047 = vshrl.u32 %v4046, 7
        %v4048 = vsub.s32 %v4045, %v4047
        %v4049 = vrot.slane %v4035, %v4048
        %v4050 = vcombine.low %v4026, %v4042
        %v4051 = vcombine.high %v4026, %v4042
        %v4052 = vcombine.low %v4033, %v4049
        %v4053 = vcombine.high %v4033, %v4049
        %4056 = vrot.lane.b32.xlu0 %v3462, 96
        %v4057 = vpop.permute.xlu0 %4056
        %4058 = vrot.lane.b32.xlu0 %v3468, 96
        %v4059 = vpop.permute.xlu0 %4058
        %4062 = vrot.lane.b32.xlu0 %v3462, 64
        %v4063 = vpop.permute.xlu0 %4062
        %4064 = vrot.lane.b32.xlu0 %v3468, 64
        %v4065 = vpop.permute.xlu0 %4064
        %4068 = vrot.lane.b32.xlu0 %v3462, 32
        %v4069 = vpop.permute.xlu0 %4068
        %4070 = vrot.lane.b32.xlu0 %v3468, 32
        %v4071 = vpop.permute.xlu0 %4070
        %v4074 = vcombine.low %v3462, %v4063
        %v4075 = vcombine.high %v3462, %v4063
        %v4077 = vunpack.c.l.s4 1983009808
        %v4078 = vunpack.c.0.s8 %v4077
        %v4079 = vlaneseq
        %v4080 = vshrl.u32 %v4079, 7
        %v4081 = vsub.s32 %v4078, %v4080
        %v4082 = vrot.slane %v4074, %v4081
        %v4084 = vunpack.c.l.s4 1983009808
        %v4085 = vunpack.c.0.s8 %v4084
        %v4086 = vlaneseq
        %v4087 = vshrl.u32 %v4086, 7
        %v4088 = vsub.s32 %v4085, %v4087
        %v4089 = vrot.slane %v4075, %v4088
        %v4090 = vcombine.low %v4057, %v4069
        %v4091 = vcombine.high %v4057, %v4069
        %v4093 = vunpack.c.l.s4 1983009808
        %v4094 = vunpack.c.0.s8 %v4093
        %v4095 = vlaneseq
        %v4096 = vshrl.u32 %v4095, 7
        %v4097 = vsub.s32 %v4094, %v4096
        %v4098 = vrot.slane %v4090, %v4097
        %v4100 = vunpack.c.l.s4 1983009808
        %v4101 = vunpack.c.0.s8 %v4100
        %v4102 = vlaneseq
        %v4103 = vshrl.u32 %v4102, 7
        %v4104 = vsub.s32 %v4101, %v4103
        %v4105 = vrot.slane %v4091, %v4104
        %v4106 = vcombine.low %v4082, %v4098
        %v4107 = vcombine.high %v4082, %v4098
        %v4109 = vunpack.c.l.s4 1934713408
        %v4110 = vunpack.c.0.s8 %v4109
        %v4111 = vlaneseq
        %v4112 = vshrl.u32 %v4111, 7
        %v4113 = vsub.s32 %v4110, %v4112
        %v4114 = vrot.slane %v4106, %v4113
        %v4116 = vunpack.c.l.s4 1934713408
        %v4117 = vunpack.c.0.s8 %v4116
        %v4118 = vlaneseq
        %v4119 = vshrl.u32 %v4118, 7
        %v4120 = vsub.s32 %v4117, %v4119
        %v4121 = vrot.slane %v4107, %v4120
        %v4122 = vcombine.low %v4089, %v4105
        %v4123 = vcombine.high %v4089, %v4105
        %v4125 = vunpack.c.l.s4 1934713408
        %v4126 = vunpack.c.0.s8 %v4125
        %v4127 = vlaneseq
        %v4128 = vshrl.u32 %v4127, 7
        %v4129 = vsub.s32 %v4126, %v4128
        %v4130 = vrot.slane %v4122, %v4129
        %v4132 = vunpack.c.l.s4 1934713408
        %v4133 = vunpack.c.0.s8 %v4132
        %v4134 = vlaneseq
        %v4135 = vshrl.u32 %v4134, 7
        %v4136 = vsub.s32 %v4133, %v4135
        %v4137 = vrot.slane %v4123, %v4136
        %v4138 = vcombine.high %v4114, 0.0
        %v4139 = vcombine.high %v4121, 0.0
        %v4140 = vcombine.high %v4130, 0.0
        %v4141 = vcombine.high %v4137, 0.0
        %v4142 = vcombine.low %v3468, %v4065
        %v4143 = vcombine.high %v3468, %v4065
        %v4145 = vunpack.c.l.s4 1983009808
        %v4146 = vunpack.c.0.s8 %v4145
        %v4147 = vlaneseq
        %v4148 = vshrl.u32 %v4147, 7
        %v4149 = vsub.s32 %v4146, %v4148
        %v4150 = vrot.slane %v4142, %v4149
        %v4152 = vunpack.c.l.s4 1983009808
        %v4153 = vunpack.c.0.s8 %v4152
        %v4154 = vlaneseq
        %v4155 = vshrl.u32 %v4154, 7
        %v4156 = vsub.s32 %v4153, %v4155
        %v4157 = vrot.slane %v4143, %v4156
        %v4158 = vcombine.low %v4059, %v4071
        %v4159 = vcombine.high %v4059, %v4071
        %v4161 = vunpack.c.l.s4 1983009808
        %v4162 = vunpack.c.0.s8 %v4161
        %v4163 = vlaneseq
        %v4164 = vshrl.u32 %v4163, 7
        %v4165 = vsub.s32 %v4162, %v4164
        %v4166 = vrot.slane %v4158, %v4165
        %v4168 = vunpack.c.l.s4 1983009808
        %v4169 = vunpack.c.0.s8 %v4168
        %v4170 = vlaneseq
        %v4171 = vshrl.u32 %v4170, 7
        %v4172 = vsub.s32 %v4169, %v4171
        %v4173 = vrot.slane %v4159, %v4172
        %v4174 = vcombine.low %v4150, %v4166
        %v4175 = vcombine.high %v4150, %v4166
        %v4177 = vunpack.c.l.s4 1934713408
        %v4178 = vunpack.c.0.s8 %v4177
        %v4179 = vlaneseq
        %v4180 = vshrl.u32 %v4179, 7
        %v4181 = vsub.s32 %v4178, %v4180
        %v4182 = vrot.slane %v4174, %v4181
        %v4184 = vunpack.c.l.s4 1934713408
        %v4185 = vunpack.c.0.s8 %v4184
        %v4186 = vlaneseq
        %v4187 = vshrl.u32 %v4186, 7
        %v4188 = vsub.s32 %v4185, %v4187
        %v4189 = vrot.slane %v4175, %v4188
        %v4190 = vcombine.low %v4157, %v4173
        %v4191 = vcombine.high %v4157, %v4173
        %v4193 = vunpack.c.l.s4 1934713408
        %v4194 = vunpack.c.0.s8 %v4193
        %v4195 = vlaneseq
        %v4196 = vshrl.u32 %v4195, 7
        %v4197 = vsub.s32 %v4194, %v4196
        %v4198 = vrot.slane %v4190, %v4197
        %v4200 = vunpack.c.l.s4 1934713408
        %v4201 = vunpack.c.0.s8 %v4200
        %v4202 = vlaneseq
        %v4203 = vshrl.u32 %v4202, 7
        %v4204 = vsub.s32 %v4201, %v4203
        %v4205 = vrot.slane %v4191, %v4204
        %v4206 = vcombine.high %v4182, 0.0
        %v4207 = vcombine.high %v4189, 0.0
        %v4208 = vcombine.high %v4198, 0.0
        %v4209 = vcombine.high %v4205, 0.0
        %v4210 = vcombine.low %v4114, %v4121
        %v4212 = vunpack.c.l.s4 1983009808
        %v4213 = vunpack.c.0.s8 %v4212
        %v4214 = vlaneseq
        %v4215 = vshrl.u32 %v4214, 7
        %v4216 = vsub.s32 %v4213, %v4215
        %v4217 = vrot.slane %v4210, %v4216
        %v4218 = vcombine.low %v4138, %v4139
        %v4220 = vunpack.c.l.s4 1983009808
        %v4221 = vunpack.c.0.s8 %v4220
        %v4222 = vlaneseq
        %v4223 = vshrl.u32 %v4222, 7
        %v4224 = vsub.s32 %v4221, %v4223
        %v4225 = vrot.slane %v4218, %v4224
        %v4226 = vcombine.low %v4130, %v4137
        %v4228 = vunpack.c.l.s4 1983009808
        %v4229 = vunpack.c.0.s8 %v4228
        %v4230 = vlaneseq
        %v4231 = vshrl.u32 %v4230, 7
        %v4232 = vsub.s32 %v4229, %v4231
        %v4233 = vrot.slane %v4226, %v4232
        %v4234 = vcombine.low %v4140, %v4141
        %v4236 = vunpack.c.l.s4 1983009808
        %v4237 = vunpack.c.0.s8 %v4236
        %v4238 = vlaneseq
        %v4239 = vshrl.u32 %v4238, 7
        %v4240 = vsub.s32 %v4237, %v4239
        %v4241 = vrot.slane %v4234, %v4240
        %v4242 = vcombine.low %v4217, %v4225
        %v4243 = vcombine.high %v4217, %v4225
        %v4245 = vunpack.c.l.s4 1934713408
        %v4246 = vunpack.c.0.s8 %v4245
        %v4247 = vlaneseq
        %v4248 = vshrl.u32 %v4247, 7
        %v4249 = vsub.s32 %v4246, %v4248
        %v4250 = vrot.slane %v4242, %v4249
        %v4252 = vunpack.c.l.s4 1934713408
        %v4253 = vunpack.c.0.s8 %v4252
        %v4254 = vlaneseq
        %v4255 = vshrl.u32 %v4254, 7
        %v4256 = vsub.s32 %v4253, %v4255
        %v4257 = vrot.slane %v4243, %v4256
        %v4258 = vcombine.low %v4233, %v4241
        %v4259 = vcombine.high %v4233, %v4241
        %v4261 = vunpack.c.l.s4 1934713408
        %v4262 = vunpack.c.0.s8 %v4261
        %v4263 = vlaneseq
        %v4264 = vshrl.u32 %v4263, 7
        %v4265 = vsub.s32 %v4262, %v4264
        %v4266 = vrot.slane %v4258, %v4265
        %v4268 = vunpack.c.l.s4 1934713408
        %v4269 = vunpack.c.0.s8 %v4268
        %v4270 = vlaneseq
        %v4271 = vshrl.u32 %v4270, 7
        %v4272 = vsub.s32 %v4269, %v4271
        %v4273 = vrot.slane %v4259, %v4272
        %v4274 = vcombine.low %v4250, %v4266
        %v4275 = vcombine.high %v4250, %v4266
        %v4276 = vcombine.low %v4257, %v4273
        %v4277 = vcombine.high %v4257, %v4273
        %v4278 = vcombine.low %v4182, %v4189
        %v4280 = vunpack.c.l.s4 1983009808
        %v4281 = vunpack.c.0.s8 %v4280
        %v4282 = vlaneseq
        %v4283 = vshrl.u32 %v4282, 7
        %v4284 = vsub.s32 %v4281, %v4283
        %v4285 = vrot.slane %v4278, %v4284
        %v4286 = vcombine.low %v4206, %v4207
        %v4288 = vunpack.c.l.s4 1983009808
        %v4289 = vunpack.c.0.s8 %v4288
        %v4290 = vlaneseq
        %v4291 = vshrl.u32 %v4290, 7
        %v4292 = vsub.s32 %v4289, %v4291
        %v4293 = vrot.slane %v4286, %v4292
        %v4294 = vcombine.low %v4198, %v4205
        %v4296 = vunpack.c.l.s4 1983009808
        %v4297 = vunpack.c.0.s8 %v4296
        %v4298 = vlaneseq
        %v4299 = vshrl.u32 %v4298, 7
        %v4300 = vsub.s32 %v4297, %v4299
        %v4301 = vrot.slane %v4294, %v4300
        %v4302 = vcombine.low %v4208, %v4209
        %v4304 = vunpack.c.l.s4 1983009808
        %v4305 = vunpack.c.0.s8 %v4304
        %v4306 = vlaneseq
        %v4307 = vshrl.u32 %v4306, 7
        %v4308 = vsub.s32 %v4305, %v4307
        %v4309 = vrot.slane %v4302, %v4308
        %v4310 = vcombine.low %v4285, %v4293
        %v4311 = vcombine.high %v4285, %v4293
        %v4313 = vunpack.c.l.s4 1934713408
        %v4314 = vunpack.c.0.s8 %v4313
        %v4315 = vlaneseq
        %v4316 = vshrl.u32 %v4315, 7
        %v4317 = vsub.s32 %v4314, %v4316
        %v4318 = vrot.slane %v4310, %v4317
        %v4320 = vunpack.c.l.s4 1934713408
        %v4321 = vunpack.c.0.s8 %v4320
        %v4322 = vlaneseq
        %v4323 = vshrl.u32 %v4322, 7
        %v4324 = vsub.s32 %v4321, %v4323
        %v4325 = vrot.slane %v4311, %v4324
        %v4326 = vcombine.low %v4301, %v4309
        %v4327 = vcombine.high %v4301, %v4309
        %v4329 = vunpack.c.l.s4 1934713408
        %v4330 = vunpack.c.0.s8 %v4329
        %v4331 = vlaneseq
        %v4332 = vshrl.u32 %v4331, 7
        %v4333 = vsub.s32 %v4330, %v4332
        %v4334 = vrot.slane %v4326, %v4333
        %v4336 = vunpack.c.l.s4 1934713408
        %v4337 = vunpack.c.0.s8 %v4336
        %v4338 = vlaneseq
        %v4339 = vshrl.u32 %v4338, 7
        %v4340 = vsub.s32 %v4337, %v4339
        %v4341 = vrot.slane %v4327, %v4340
        %v4342 = vcombine.low %v4318, %v4334
        %v4343 = vcombine.high %v4318, %v4334
        %v4344 = vcombine.low %v4325, %v4341
        %v4345 = vcombine.high %v4325, %v4341
        %v4347 = vsel %vm2011, %v3690, 0
        %v4350 = vsel %vm2011, %v3758, 0
        %v4353 = vsel %vm2011, %v3982, 0
        %v4356 = vsel %vm2011, %v4050, 0
        %4358 = vmatprep.subr.mxu0 0.0
        %4359 = vmatpush1.xpose.msra.mxu0 %v4353
        %4360 = vmatprep.subr.mxu0 0.0
        %4361 = vmatpush1.xpose.msra.mxu0 %v4356
        %4362 = vmatprep.subr.mxu0 0.0
        %4363 = vmatpush1.xpose.msra.mxu0 0.0
        %4364 = vmatprep.subr.mxu0 0.0
        %4365 = vmatpush1.xpose.msra.mxu0 0.0
        %4366 = vmatprep.subr.mxu0 0.0
        %4367 = vmatpush1.xpose.msra.mxu0 0.0
        %4368 = vmatprep.subr.mxu0 0.0
        %4369 = vmatpush1.xpose.msra.mxu0 0.0
        %4370 = vmatprep.subr.mxu0 0.0
        %4371 = vmatpush1.xpose.msra.mxu0 0.0
        %4372 = vmatprep.subr.mxu0 0.0
        %4373 = vmatpush1.xpose.msra.mxu0 0.0
        %4374 = vmatprep.subr.mxu0 0.0
        %4375 = vmatpush1.xpose.msra.mxu0 0.0
        %4376 = vmatprep.subr.mxu0 0.0
        %4377 = vmatpush1.xpose.msra.mxu0 0.0
        %4378 = vmatprep.subr.mxu0 0.0
        %4379 = vmatpush1.xpose.msra.mxu0 0.0
        %4380 = vmatprep.subr.mxu0 0.0
        %4381 = vmatpush1.xpose.msra.mxu0 0.0
        %4382 = vmatprep.subr.mxu0 0.0
        %4383 = vmatpush1.xpose.msra.mxu0 0.0
        %4384 = vmatprep.subr.mxu0 0.0
        %4385 = vmatpush1.xpose.msra.mxu0 0.0
        %4386 = vmatprep.subr.mxu0 0.0
        %4387 = vmatpush1.xpose.msra.mxu0 0.0
        %4388 = vmatprep.subr.mxu0 0.0
        %4389 = vmatpush1.xpose.msra.mxu0 0.0
        %4390 = vmatprep.subr.mxu0 0.0
        %4391 = vmatpush1.xpose.msra.mxu0 0.0
        %4392 = vmatprep.subr.mxu0 0.0
        %4393 = vmatpush1.xpose.msra.mxu0 0.0
        %4394 = vmatprep.subr.mxu0 0.0
        %4395 = vmatpush1.xpose.msra.mxu0 0.0
        %4396 = vmatprep.subr.mxu0 0.0
        %4397 = vmatpush1.xpose.msra.mxu0 0.0
        %4398 = vmatprep.subr.mxu0 0.0
        %4399 = vmatpush1.xpose.msra.mxu0 0.0
        %4400 = vmatprep.subr.mxu0 0.0
        %4401 = vmatpush1.xpose.msra.mxu0 0.0
        %4402 = vmatprep.subr.mxu0 0.0
        %4403 = vmatpush1.xpose.msra.mxu0 0.0
        %4404 = vmatprep.subr.mxu0 0.0
        %4405 = vmatpush1.xpose.msra.mxu0 0.0
        %4406 = vmatprep.subr.mxu0 0.0
        %4407 = vmatpush1.xpose.msra.mxu0 0.0
        %4408 = vmatprep.subr.mxu0 0.0
        %4409 = vmatpush1.xpose.msra.mxu0 0.0
        %4410 = vmatprep.subr.mxu0 0.0
        %4411 = vmatpush1.xpose.msra.mxu0 0.0
        %4412 = vmatprep.subr.mxu0 0.0
        %4413 = vmatpush1.xpose.msra.mxu0 0.0
        %4414 = vmatprep.subr.mxu0 0.0
        %4415 = vmatpush1.xpose.msra.mxu0 0.0
        %4416 = vmatprep.subr.mxu0 0.0
        %4417 = vmatpush1.xpose.msra.mxu0 0.0
        %4418 = vmatprep.subr.mxu0 0.0
        %4419 = vmatpush1.xpose.msra.mxu0 0.0
        %4420 = vmatprep.subr.mxu0 0.0
        %4421 = vmatpush1.xpose.msra.mxu0 0.0
        %4422 = vmatprep.mubr.f32.mxu0 0.0
        %4423 = vmatmul.mubr.f32.gmra.mrb[0].mxu0 %v4347
        %v4424 = vpop.f32.mrb[0].mxu0
        %v4425 = vadd.f32 0.0, %v4424
        %v4426 = vpop.f32.mrb[0].mxu0
        %4427 = vmatprep.mubr.f32.mxu0 0.0
        %4428 = vmatmul.mubr.f32.gmra.mrb[0].mxu0 %v4350
        %v4429 = vpop.f32.mrb[0].mxu0
        %v4430 = vadd.f32 0.0, %v4429
        %v4431 = vpop.f32.mrb[0].mxu0
        %4432 = vdwg.mxu0
        %v4434 = vsel %vm2011, %v3691, 0
        %v4437 = vsel %vm2011, %v3759, 0
        %v4440 = vsel %vm2011, %v3983, 0
        %v4443 = vsel %vm2011, %v4051, 0
        %4445 = vmatprep.subr.mxu0 0.0
        %4446 = vmatpush1.xpose.msra.mxu0 %v4440
        %4447 = vmatprep.subr.mxu0 0.0
        %4448 = vmatpush1.xpose.msra.mxu0 %v4443
        %4449 = vmatprep.subr.mxu0 0.0
        %4450 = vmatpush1.xpose.msra.mxu0 0.0
        %4451 = vmatprep.subr.mxu0 0.0
        %4452 = vmatpush1.xpose.msra.mxu0 0.0
        %4453 = vmatprep.subr.mxu0 0.0
        %4454 = vmatpush1.xpose.msra.mxu0 0.0
        %4455 = vmatprep.subr.mxu0 0.0
        %4456 = vmatpush1.xpose.msra.mxu0 0.0
        %4457 = vmatprep.subr.mxu0 0.0
        %4458 = vmatpush1.xpose.msra.mxu0 0.0
        %4459 = vmatprep.subr.mxu0 0.0
        %4460 = vmatpush1.xpose.msra.mxu0 0.0
        %4461 = vmatprep.subr.mxu0 0.0
        %4462 = vmatpush1.xpose.msra.mxu0 0.0
        %4463 = vmatprep.subr.mxu0 0.0
        %4464 = vmatpush1.xpose.msra.mxu0 0.0
        %4465 = vmatprep.subr.mxu0 0.0
        %4466 = vmatpush1.xpose.msra.mxu0 0.0
        %4467 = vmatprep.subr.mxu0 0.0
        %4468 = vmatpush1.xpose.msra.mxu0 0.0
        %4469 = vmatprep.subr.mxu0 0.0
        %4470 = vmatpush1.xpose.msra.mxu0 0.0
        %4471 = vmatprep.subr.mxu0 0.0
        %4472 = vmatpush1.xpose.msra.mxu0 0.0
        %4473 = vmatprep.subr.mxu0 0.0
        %4474 = vmatpush1.xpose.msra.mxu0 0.0
        %4475 = vmatprep.subr.mxu0 0.0
        %4476 = vmatpush1.xpose.msra.mxu0 0.0
        %4477 = vmatprep.subr.mxu0 0.0
        %4478 = vmatpush1.xpose.msra.mxu0 0.0
        %4479 = vmatprep.subr.mxu0 0.0
        %4480 = vmatpush1.xpose.msra.mxu0 0.0
        %4481 = vmatprep.subr.mxu0 0.0
        %4482 = vmatpush1.xpose.msra.mxu0 0.0
        %4483 = vmatprep.subr.mxu0 0.0
        %4484 = vmatpush1.xpose.msra.mxu0 0.0
        %4485 = vmatprep.subr.mxu0 0.0
        %4486 = vmatpush1.xpose.msra.mxu0 0.0
        %4487 = vmatprep.subr.mxu0 0.0
        %4488 = vmatpush1.xpose.msra.mxu0 0.0
        %4489 = vmatprep.subr.mxu0 0.0
        %4490 = vmatpush1.xpose.msra.mxu0 0.0
        %4491 = vmatprep.subr.mxu0 0.0
        %4492 = vmatpush1.xpose.msra.mxu0 0.0
        %4493 = vmatprep.subr.mxu0 0.0
        %4494 = vmatpush1.xpose.msra.mxu0 0.0
        %4495 = vmatprep.subr.mxu0 0.0
        %4496 = vmatpush1.xpose.msra.mxu0 0.0
        %4497 = vmatprep.subr.mxu0 0.0
        %4498 = vmatpush1.xpose.msra.mxu0 0.0
        %4499 = vmatprep.subr.mxu0 0.0
        %4500 = vmatpush1.xpose.msra.mxu0 0.0
        %4501 = vmatprep.subr.mxu0 0.0
        %4502 = vmatpush1.xpose.msra.mxu0 0.0
        %4503 = vmatprep.subr.mxu0 0.0
        %4504 = vmatpush1.xpose.msra.mxu0 0.0
        %4505 = vmatprep.subr.mxu0 0.0
        %4506 = vmatpush1.xpose.msra.mxu0 0.0
        %4507 = vmatprep.subr.mxu0 0.0
        %4508 = vmatpush1.xpose.msra.mxu0 0.0
        %4509 = vmatprep.mubr.f32.mxu0 0.0
        %4510 = vmatmul.mubr.f32.gmra.mrb[0].mxu0 %v4434
        %v4511 = vpop.f32.mrb[0].mxu0
        %v4512 = vadd.f32 0.0, %v4511
        %v4513 = vpop.f32.mrb[0].mxu0
        %4514 = vmatprep.mubr.f32.mxu0 0.0
        %4515 = vmatmul.mubr.f32.gmra.mrb[0].mxu0 %v4437
        %v4516 = vpop.f32.mrb[0].mxu0
        %v4517 = vadd.f32 0.0, %v4516
        %v4518 = vpop.f32.mrb[0].mxu0
        %4519 = vdwg.mxu0
        %v4521 = vsel %vm2011, %v3692, 0
        %v4524 = vsel %vm2011, %v3760, 0
        %v4527 = vsel %vm2011, %v3984, 0
        %v4530 = vsel %vm2011, %v4052, 0
        %4532 = vmatprep.subr.mxu0 0.0
        %4533 = vmatpush1.xpose.msra.mxu0 %v4527
        %4534 = vmatprep.subr.mxu0 0.0
        %4535 = vmatpush1.xpose.msra.mxu0 %v4530
        %4536 = vmatprep.subr.mxu0 0.0
        %4537 = vmatpush1.xpose.msra.mxu0 0.0
        %4538 = vmatprep.subr.mxu0 0.0
        %4539 = vmatpush1.xpose.msra.mxu0 0.0
        %4540 = vmatprep.subr.mxu0 0.0
        %4541 = vmatpush1.xpose.msra.mxu0 0.0
        %4542 = vmatprep.subr.mxu0 0.0
        %4543 = vmatpush1.xpose.msra.mxu0 0.0
        %4544 = vmatprep.subr.mxu0 0.0
        %4545 = vmatpush1.xpose.msra.mxu0 0.0
        %4546 = vmatprep.subr.mxu0 0.0
        %4547 = vmatpush1.xpose.msra.mxu0 0.0
        %4548 = vmatprep.subr.mxu0 0.0
        %4549 = vmatpush1.xpose.msra.mxu0 0.0
        %4550 = vmatprep.subr.mxu0 0.0
        %4551 = vmatpush1.xpose.msra.mxu0 0.0
        %4552 = vmatprep.subr.mxu0 0.0
        %4553 = vmatpush1.xpose.msra.mxu0 0.0
        %4554 = vmatprep.subr.mxu0 0.0
        %4555 = vmatpush1.xpose.msra.mxu0 0.0
        %4556 = vmatprep.subr.mxu0 0.0
        %4557 = vmatpush1.xpose.msra.mxu0 0.0
        %4558 = vmatprep.subr.mxu0 0.0
        %4559 = vmatpush1.xpose.msra.mxu0 0.0
        %4560 = vmatprep.subr.mxu0 0.0
        %4561 = vmatpush1.xpose.msra.mxu0 0.0
        %4562 = vmatprep.subr.mxu0 0.0
        %4563 = vmatpush1.xpose.msra.mxu0 0.0
        %4564 = vmatprep.subr.mxu0 0.0
        %4565 = vmatpush1.xpose.msra.mxu0 0.0
        %4566 = vmatprep.subr.mxu0 0.0
        %4567 = vmatpush1.xpose.msra.mxu0 0.0
        %4568 = vmatprep.subr.mxu0 0.0
        %4569 = vmatpush1.xpose.msra.mxu0 0.0
        %4570 = vmatprep.subr.mxu0 0.0
        %4571 = vmatpush1.xpose.msra.mxu0 0.0
        %4572 = vmatprep.subr.mxu0 0.0
        %4573 = vmatpush1.xpose.msra.mxu0 0.0
        %4574 = vmatprep.subr.mxu0 0.0
        %4575 = vmatpush1.xpose.msra.mxu0 0.0
        %4576 = vmatprep.subr.mxu0 0.0
        %4577 = vmatpush1.xpose.msra.mxu0 0.0
        %4578 = vmatprep.subr.mxu0 0.0
        %4579 = vmatpush1.xpose.msra.mxu0 0.0
        %4580 = vmatprep.subr.mxu0 0.0
        %4581 = vmatpush1.xpose.msra.mxu0 0.0
        %4582 = vmatprep.subr.mxu0 0.0
        %4583 = vmatpush1.xpose.msra.mxu0 0.0
        %4584 = vmatprep.subr.mxu0 0.0
        %4585 = vmatpush1.xpose.msra.mxu0 0.0
        %4586 = vmatprep.subr.mxu0 0.0
        %4587 = vmatpush1.xpose.msra.mxu0 0.0
        %4588 = vmatprep.subr.mxu0 0.0
        %4589 = vmatpush1.xpose.msra.mxu0 0.0
        %4590 = vmatprep.subr.mxu0 0.0
        %4591 = vmatpush1.xpose.msra.mxu0 0.0
        %4592 = vmatprep.subr.mxu0 0.0
        %4593 = vmatpush1.xpose.msra.mxu0 0.0
        %4594 = vmatprep.subr.mxu0 0.0
        %4595 = vmatpush1.xpose.msra.mxu0 0.0
        %4596 = vmatprep.mubr.f32.mxu0 0.0
        %4597 = vmatmul.mubr.f32.gmra.mrb[0].mxu0 %v4521
        %v4598 = vpop.f32.mrb[0].mxu0
        %v4599 = vadd.f32 0.0, %v4598
        %v4600 = vpop.f32.mrb[0].mxu0
        %4601 = vmatprep.mubr.f32.mxu0 0.0
        %4602 = vmatmul.mubr.f32.gmra.mrb[0].mxu0 %v4524
        %v4603 = vpop.f32.mrb[0].mxu0
        %v4604 = vadd.f32 0.0, %v4603
        %v4605 = vpop.f32.mrb[0].mxu0
        %4606 = vdwg.mxu0
        %v4608 = vsel %vm2011, %v3693, 0
        %v4611 = vsel %vm2011, %v3761, 0
        %v4614 = vsel %vm2011, %v3985, 0
        %v4617 = vsel %vm2011, %v4053, 0
        %4619 = vmatprep.subr.mxu0 0.0
        %4620 = vmatpush1.xpose.msra.mxu0 %v4614
        %4621 = vmatprep.subr.mxu0 0.0
        %4622 = vmatpush1.xpose.msra.mxu0 %v4617
        %4623 = vmatprep.subr.mxu0 0.0
        %4624 = vmatpush1.xpose.msra.mxu0 0.0
        %4625 = vmatprep.subr.mxu0 0.0
        %4626 = vmatpush1.xpose.msra.mxu0 0.0
        %4627 = vmatprep.subr.mxu0 0.0
        %4628 = vmatpush1.xpose.msra.mxu0 0.0
        %4629 = vmatprep.subr.mxu0 0.0
        %4630 = vmatpush1.xpose.msra.mxu0 0.0
        %4631 = vmatprep.subr.mxu0 0.0
        %4632 = vmatpush1.xpose.msra.mxu0 0.0
        %4633 = vmatprep.subr.mxu0 0.0
        %4634 = vmatpush1.xpose.msra.mxu0 0.0
        %4635 = vmatprep.subr.mxu0 0.0
        %4636 = vmatpush1.xpose.msra.mxu0 0.0
        %4637 = vmatprep.subr.mxu0 0.0
        %4638 = vmatpush1.xpose.msra.mxu0 0.0
        %4639 = vmatprep.subr.mxu0 0.0
        %4640 = vmatpush1.xpose.msra.mxu0 0.0
        %4641 = vmatprep.subr.mxu0 0.0
        %4642 = vmatpush1.xpose.msra.mxu0 0.0
        %4643 = vmatprep.subr.mxu0 0.0
        %4644 = vmatpush1.xpose.msra.mxu0 0.0
        %4645 = vmatprep.subr.mxu0 0.0
        %4646 = vmatpush1.xpose.msra.mxu0 0.0
        %4647 = vmatprep.subr.mxu0 0.0
        %4648 = vmatpush1.xpose.msra.mxu0 0.0
        %4649 = vmatprep.subr.mxu0 0.0
        %4650 = vmatpush1.xpose.msra.mxu0 0.0
        %4651 = vmatprep.subr.mxu0 0.0
        %4652 = vmatpush1.xpose.msra.mxu0 0.0
        %4653 = vmatprep.subr.mxu0 0.0
        %4654 = vmatpush1.xpose.msra.mxu0 0.0
        %4655 = vmatprep.subr.mxu0 0.0
        %4656 = vmatpush1.xpose.msra.mxu0 0.0
        %4657 = vmatprep.subr.mxu0 0.0
        %4658 = vmatpush1.xpose.msra.mxu0 0.0
        %4659 = vmatprep.subr.mxu0 0.0
        %4660 = vmatpush1.xpose.msra.mxu0 0.0
        %4661 = vmatprep.subr.mxu0 0.0
        %4662 = vmatpush1.xpose.msra.mxu0 0.0
        %4663 = vmatprep.subr.mxu0 0.0
        %4664 = vmatpush1.xpose.msra.mxu0 0.0
        %4665 = vmatprep.subr.mxu0 0.0
        %4666 = vmatpush1.xpose.msra.mxu0 0.0
        %4667 = vmatprep.subr.mxu0 0.0
        %4668 = vmatpush1.xpose.msra.mxu0 0.0
        %4669 = vmatprep.subr.mxu0 0.0
        %4670 = vmatpush1.xpose.msra.mxu0 0.0
        %4671 = vmatprep.subr.mxu0 0.0
        %4672 = vmatpush1.xpose.msra.mxu0 0.0
        %4673 = vmatprep.subr.mxu0 0.0
        %4674 = vmatpush1.xpose.msra.mxu0 0.0
        %4675 = vmatprep.subr.mxu0 0.0
        %4676 = vmatpush1.xpose.msra.mxu0 0.0
        %4677 = vmatprep.subr.mxu0 0.0
        %4678 = vmatpush1.xpose.msra.mxu0 0.0
        %4679 = vmatprep.subr.mxu0 0.0
        %4680 = vmatpush1.xpose.msra.mxu0 0.0
        %4681 = vmatprep.subr.mxu0 0.0
        %4682 = vmatpush1.xpose.msra.mxu0 0.0
        %4683 = vmatprep.mubr.f32.mxu0 0.0
        %4684 = vmatmul.mubr.f32.gmra.mrb[0].mxu0 %v4608
        %v4685 = vpop.f32.mrb[0].mxu0
        %v4686 = vadd.f32 0.0, %v4685
        %v4687 = vpop.f32.mrb[0].mxu0
        %4688 = vmatprep.mubr.f32.mxu0 0.0
        %4689 = vmatmul.mubr.f32.gmra.mrb[0].mxu0 %v4611
        %v4690 = vpop.f32.mrb[0].mxu0
        %v4691 = vadd.f32 0.0, %v4690
        %v4692 = vpop.f32.mrb[0].mxu0
        %4693 = vdwg.mxu0
        %v4694 = vmul.f32 %v4425, 0.17677669
        %v4695 = vmul.f32 %v4430, 0.17677669
        %v4696 = vmul.f32 %v4512, 0.17677669
        %v4697 = vmul.f32 %v4517, 0.17677669
        %v4698 = vmul.f32 %v4599, 0.17677669
        %v4699 = vmul.f32 %v4604, 0.17677669
        %v4700 = vmul.f32 %v4686, 0.17677669
        %v4701 = vmul.f32 %v4691, 0.17677669
        %v4702 = vsel %vm861, 1, 0
        %vm4703 = vcmp.eq.s32.totalorder %v4702, 1
        %v4704 = vsel %vm4703, %v4694, -1e+09
        %v4705 = vsel %vm4703, %v4695, -1e+09
        %v4706 = vsel %vm4703, %v4696, -1e+09
        %v4707 = vsel %vm4703, %v4697, -1e+09
        %v4708 = vsel %vm4703, %v4698, -1e+09
        %v4709 = vsel %vm4703, %v4699, -1e+09
        %v4710 = vsel %vm4703, %v4700, -1e+09
        %v4711 = vsel %vm4703, %v4701, -1e+09
        %v4712 = vsel %vm2380, %v4704, -inf
        %4713 = vmax.xlane.f32.xlu0 %v4712
        %v4714 = vpop.xlane.xlu0 %4713
        %v4715 = vsel %vm2380, %v4705, -inf
        %4716 = vmax.xlane.f32.xlu0 %v4715
        %v4717 = vpop.xlane.xlu0 %4716
        %v4718 = vsel %vm2380, %v4706, -inf
        %4719 = vmax.xlane.f32.xlu0 %v4718
        %v4720 = vpop.xlane.xlu0 %4719
        %v4721 = vsel %vm2380, %v4707, -inf
        %4722 = vmax.xlane.f32.xlu0 %v4721
        %v4723 = vpop.xlane.xlu0 %4722
        %v4724 = vsel %vm2380, %v4708, -inf
        %4725 = vmax.xlane.f32.xlu0 %v4724
        %v4726 = vpop.xlane.xlu0 %4725
        %v4727 = vsel %vm2380, %v4709, -inf
        %4728 = vmax.xlane.f32.xlu0 %v4727
        %v4729 = vpop.xlane.xlu0 %4728
        %v4730 = vsel %vm2380, %v4710, -inf
        %4731 = vmax.xlane.f32.xlu0 %v4730
        %v4732 = vpop.xlane.xlu0 %4731
        %v4733 = vsel %vm2380, %v4711, -inf
        %4734 = vmax.xlane.f32.xlu0 %v4733
        %v4735 = vpop.xlane.xlu0 %4734
        %v4736 = vsub.f32 %v4704, %v4714
        %v4737 = vsub.f32 %v4705, %v4717
        %v4738 = vsub.f32 %v4706, %v4720
        %v4739 = vsub.f32 %v4707, %v4723
        %v4740 = vsub.f32 %v4708, %v4726
        %v4741 = vsub.f32 %v4709, %v4729
        %v4742 = vsub.f32 %v4710, %v4732
        %v4743 = vsub.f32 %v4711, %v4735
        %v4744 = vmul.f32 %v4736, 1.442695
        %v4745 = vpow.pop %v4744
        %v4746 = vmul.f32 %v4737, 1.442695
        %v4747 = vpow.pop %v4746
        %v4748 = vmul.f32 %v4738, 1.442695
        %v4749 = vpow.pop %v4748
        %v4750 = vmul.f32 %v4739, 1.442695
        %v4751 = vpow.pop %v4750
        %v4752 = vmul.f32 %v4740, 1.442695
        %v4753 = vpow.pop %v4752
        %v4754 = vmul.f32 %v4741, 1.442695
        %v4755 = vpow.pop %v4754
        %v4756 = vmul.f32 %v4742, 1.442695
        %v4757 = vpow.pop %v4756
        %v4758 = vmul.f32 %v4743, 1.442695
        %v4759 = vpow.pop %v4758
        %v4760 = vsel %vm2380, %v4745, 0.0
        %4761 = vadd.xlane.f32.xlu0 %v4760
        %v4762 = vpop.xlane.xlu0 %4761
        %v4763 = vsel %vm2380, %v4747, 0.0
        %4764 = vadd.xlane.f32.xlu0 %v4763
        %v4765 = vpop.xlane.xlu0 %4764
        %v4766 = vsel %vm2380, %v4749, 0.0
        %4767 = vadd.xlane.f32.xlu0 %v4766
        %v4768 = vpop.xlane.xlu0 %4767
        %v4769 = vsel %vm2380, %v4751, 0.0
        %4770 = vadd.xlane.f32.xlu0 %v4769
        %v4771 = vpop.xlane.xlu0 %4770
        %v4772 = vsel %vm2380, %v4753, 0.0
        %4773 = vadd.xlane.f32.xlu0 %v4772
        %v4774 = vpop.xlane.xlu0 %4773
        %v4775 = vsel %vm2380, %v4755, 0.0
        %4776 = vadd.xlane.f32.xlu0 %v4775
        %v4777 = vpop.xlane.xlu0 %4776
        %v4778 = vsel %vm2380, %v4757, 0.0
        %4779 = vadd.xlane.f32.xlu0 %v4778
        %v4780 = vpop.xlane.xlu0 %4779
        %v4781 = vsel %vm2380, %v4759, 0.0
        %4782 = vadd.xlane.f32.xlu0 %v4781
        %v4783 = vpop.xlane.xlu0 %4782
        %v4784 = vrcp.pop %v4762
        %v4785 = vrcp.pop %v4765
        %v4786 = vrcp.pop %v4768
        %v4787 = vrcp.pop %v4771
        %v4788 = vrcp.pop %v4774
        %v4789 = vrcp.pop %v4777
        %v4790 = vrcp.pop %v4780
        %v4791 = vrcp.pop %v4783
        %v4792 = vmul.f32 %v4745, %v4784
        %v4793 = vmul.f32 %v4747, %v4785
        %v4794 = vmul.f32 %v4749, %v4786
        %v4795 = vmul.f32 %v4751, %v4787
        %v4796 = vmul.f32 %v4753, %v4788
        %v4797 = vmul.f32 %v4755, %v4789
        %v4798 = vmul.f32 %v4757, %v4790
        %v4799 = vmul.f32 %v4759, %v4791
        %v4801 = vsel %vm2380, %v4792, 0
        %v4804 = vsel %vm2380, %v4793, 0
        %4806 = vmatprep.subr.mxu0 0.0
        %4807 = vmatpush1.msra.mxu0 %v4274
        %4808 = vmatprep.subr.mxu0 0.0
        %4809 = vmatpush1.msra.mxu0 %v4342
        %4810 = vmatprep.subr.mxu0 0.0
        %4811 = vmatpush1.msra.mxu0 0.0
        %4812 = vmatprep.subr.mxu0 0.0
        %4813 = vmatpush1.msra.mxu0 0.0
        %4814 = vmatprep.subr.mxu0 0.0
        %4815 = vmatpush1.msra.mxu0 0.0
        %4816 = vmatprep.subr.mxu0 0.0
        %4817 = vmatpush1.msra.mxu0 0.0
        %4818 = vmatprep.subr.mxu0 0.0
        %4819 = vmatpush1.msra.mxu0 0.0
        %4820 = vmatprep.subr.mxu0 0.0
        %4821 = vmatpush1.msra.mxu0 0.0
        %4822 = vmatprep.subr.mxu0 0.0
        %4823 = vmatpush1.msra.mxu0 0.0
        %4824 = vmatprep.subr.mxu0 0.0
        %4825 = vmatpush1.msra.mxu0 0.0
        %4826 = vmatprep.subr.mxu0 0.0
        %4827 = vmatpush1.msra.mxu0 0.0
        %4828 = vmatprep.subr.mxu0 0.0
        %4829 = vmatpush1.msra.mxu0 0.0
        %4830 = vmatprep.subr.mxu0 0.0
        %4831 = vmatpush1.msra.mxu0 0.0
        %4832 = vmatprep.subr.mxu0 0.0
        %4833 = vmatpush1.msra.mxu0 0.0
        %4834 = vmatprep.subr.mxu0 0.0
        %4835 = vmatpush1.msra.mxu0 0.0
        %4836 = vmatprep.subr.mxu0 0.0
        %4837 = vmatpush1.msra.mxu0 0.0
        %4838 = vmatprep.subr.mxu0 0.0
        %4839 = vmatpush1.msra.mxu0 0.0
        %4840 = vmatprep.subr.mxu0 0.0
        %4841 = vmatpush1.msra.mxu0 0.0
        %4842 = vmatprep.subr.mxu0 0.0
        %4843 = vmatpush1.msra.mxu0 0.0
        %4844 = vmatprep.subr.mxu0 0.0
        %4845 = vmatpush1.msra.mxu0 0.0
        %4846 = vmatprep.subr.mxu0 0.0
        %4847 = vmatpush1.msra.mxu0 0.0
        %4848 = vmatprep.subr.mxu0 0.0
        %4849 = vmatpush1.msra.mxu0 0.0
        %4850 = vmatprep.subr.mxu0 0.0
        %4851 = vmatpush1.msra.mxu0 0.0
        %4852 = vmatprep.subr.mxu0 0.0
        %4853 = vmatpush1.msra.mxu0 0.0
        %4854 = vmatprep.subr.mxu0 0.0
        %4855 = vmatpush1.msra.mxu0 0.0
        %4856 = vmatprep.subr.mxu0 0.0
        %4857 = vmatpush1.msra.mxu0 0.0
        %4858 = vmatprep.subr.mxu0 0.0
        %4859 = vmatpush1.msra.mxu0 0.0
        %4860 = vmatprep.subr.mxu0 0.0
        %4861 = vmatpush1.msra.mxu0 0.0
        %4862 = vmatprep.subr.mxu0 0.0
        %4863 = vmatpush1.msra.mxu0 0.0
        %4864 = vmatprep.subr.mxu0 0.0
        %4865 = vmatpush1.msra.mxu0 0.0
        %4866 = vmatprep.subr.mxu0 0.0
        %4867 = vmatpush1.msra.mxu0 0.0
        %4868 = vmatprep.subr.mxu0 0.0
        %4869 = vmatpush1.msra.mxu0 0.0
        %4870 = vmatprep.mubr.f32.mxu0 0.0
        %4871 = vmatmul.mubr.f32.gmra.mrb[0].mxu0 %v4801
        %v4872 = vpop.f32.mrb[0].mxu0
        %v4873 = vadd.f32 0.0, %v4872
        %v4874 = vpop.f32.mrb[0].mxu0
        %4875 = vmatprep.mubr.f32.mxu0 0.0
        %4876 = vmatmul.mubr.f32.gmra.mrb[0].mxu0 %v4804
        %v4877 = vpop.f32.mrb[0].mxu0
        %v4878 = vadd.f32 0.0, %v4877
        %v4879 = vpop.f32.mrb[0].mxu0
        %4880 = vdwg.mxu0
        %v4882 = vsel %vm2380, %v4794, 0
        %v4885 = vsel %vm2380, %v4795, 0
        %4887 = vmatprep.subr.mxu0 0.0
        %4888 = vmatpush1.msra.mxu0 %v4275
        %4889 = vmatprep.subr.mxu0 0.0
        %4890 = vmatpush1.msra.mxu0 %v4343
        %4891 = vmatprep.subr.mxu0 0.0
        %4892 = vmatpush1.msra.mxu0 0.0
        %4893 = vmatprep.subr.mxu0 0.0
        %4894 = vmatpush1.msra.mxu0 0.0
        %4895 = vmatprep.subr.mxu0 0.0
        %4896 = vmatpush1.msra.mxu0 0.0
        %4897 = vmatprep.subr.mxu0 0.0
        %4898 = vmatpush1.msra.mxu0 0.0
        %4899 = vmatprep.subr.mxu0 0.0
        %4900 = vmatpush1.msra.mxu0 0.0
        %4901 = vmatprep.subr.mxu0 0.0
        %4902 = vmatpush1.msra.mxu0 0.0
        %4903 = vmatprep.subr.mxu0 0.0
        %4904 = vmatpush1.msra.mxu0 0.0
        %4905 = vmatprep.subr.mxu0 0.0
        %4906 = vmatpush1.msra.mxu0 0.0
        %4907 = vmatprep.subr.mxu0 0.0
        %4908 = vmatpush1.msra.mxu0 0.0
        %4909 = vmatprep.subr.mxu0 0.0
        %4910 = vmatpush1.msra.mxu0 0.0
        %4911 = vmatprep.subr.mxu0 0.0
        %4912 = vmatpush1.msra.mxu0 0.0
        %4913 = vmatprep.subr.mxu0 0.0
        %4914 = vmatpush1.msra.mxu0 0.0
        %4915 = vmatprep.subr.mxu0 0.0
        %4916 = vmatpush1.msra.mxu0 0.0
        %4917 = vmatprep.subr.mxu0 0.0
        %4918 = vmatpush1.msra.mxu0 0.0
        %4919 = vmatprep.subr.mxu0 0.0
        %4920 = vmatpush1.msra.mxu0 0.0
        %4921 = vmatprep.subr.mxu0 0.0
        %4922 = vmatpush1.msra.mxu0 0.0
        %4923 = vmatprep.subr.mxu0 0.0
        %4924 = vmatpush1.msra.mxu0 0.0
        %4925 = vmatprep.subr.mxu0 0.0
        %4926 = vmatpush1.msra.mxu0 0.0
        %4927 = vmatprep.subr.mxu0 0.0
        %4928 = vmatpush1.msra.mxu0 0.0
        %4929 = vmatprep.subr.mxu0 0.0
        %4930 = vmatpush1.msra.mxu0 0.0
        %4931 = vmatprep.subr.mxu0 0.0
        %4932 = vmatpush1.msra.mxu0 0.0
        %4933 = vmatprep.subr.mxu0 0.0
        %4934 = vmatpush1.msra.mxu0 0.0
        %4935 = vmatprep.subr.mxu0 0.0
        %4936 = vmatpush1.msra.mxu0 0.0
        %4937 = vmatprep.subr.mxu0 0.0
        %4938 = vmatpush1.msra.mxu0 0.0
        %4939 = vmatprep.subr.mxu0 0.0
        %4940 = vmatpush1.msra.mxu0 0.0
        %4941 = vmatprep.subr.mxu0 0.0
        %4942 = vmatpush1.msra.mxu0 0.0
        %4943 = vmatprep.subr.mxu0 0.0
        %4944 = vmatpush1.msra.mxu0 0.0
        %4945 = vmatprep.subr.mxu0 0.0
        %4946 = vmatpush1.msra.mxu0 0.0
        %4947 = vmatprep.subr.mxu0 0.0
        %4948 = vmatpush1.msra.mxu0 0.0
        %4949 = vmatprep.subr.mxu0 0.0
        %4950 = vmatpush1.msra.mxu0 0.0
        %4951 = vmatprep.mubr.f32.mxu0 0.0
        %4952 = vmatmul.mubr.f32.gmra.mrb[0].mxu0 %v4882
        %v4953 = vpop.f32.mrb[0].mxu0
        %v4954 = vadd.f32 0.0, %v4953
        %v4955 = vpop.f32.mrb[0].mxu0
        %4956 = vmatprep.mubr.f32.mxu0 0.0
        %4957 = vmatmul.mubr.f32.gmra.mrb[0].mxu0 %v4885
        %v4958 = vpop.f32.mrb[0].mxu0
        %v4959 = vadd.f32 0.0, %v4958
        %v4960 = vpop.f32.mrb[0].mxu0
        %4961 = vdwg.mxu0
        %v4963 = vsel %vm2380, %v4796, 0
        %v4966 = vsel %vm2380, %v4797, 0
        %4968 = vmatprep.subr.mxu0 0.0
        %4969 = vmatpush1.msra.mxu0 %v4276
        %4970 = vmatprep.subr.mxu0 0.0
        %4971 = vmatpush1.msra.mxu0 %v4344
        %4972 = vmatprep.subr.mxu0 0.0
        %4973 = vmatpush1.msra.mxu0 0.0
        %4974 = vmatprep.subr.mxu0 0.0
        %4975 = vmatpush1.msra.mxu0 0.0
        %4976 = vmatprep.subr.mxu0 0.0
        %4977 = vmatpush1.msra.mxu0 0.0
        %4978 = vmatprep.subr.mxu0 0.0
        %4979 = vmatpush1.msra.mxu0 0.0
        %4980 = vmatprep.subr.mxu0 0.0
        %4981 = vmatpush1.msra.mxu0 0.0
        %4982 = vmatprep.subr.mxu0 0.0
        %4983 = vmatpush1.msra.mxu0 0.0
        %4984 = vmatprep.subr.mxu0 0.0
        %4985 = vmatpush1.msra.mxu0 0.0
        %4986 = vmatprep.subr.mxu0 0.0
        %4987 = vmatpush1.msra.mxu0 0.0
        %4988 = vmatprep.subr.mxu0 0.0
        %4989 = vmatpush1.msra.mxu0 0.0
        %4990 = vmatprep.subr.mxu0 0.0
        %4991 = vmatpush1.msra.mxu0 0.0
        %4992 = vmatprep.subr.mxu0 0.0
        %4993 = vmatpush1.msra.mxu0 0.0
        %4994 = vmatprep.subr.mxu0 0.0
        %4995 = vmatpush1.msra.mxu0 0.0
        %4996 = vmatprep.subr.mxu0 0.0
        %4997 = vmatpush1.msra.mxu0 0.0
        %4998 = vmatprep.subr.mxu0 0.0
        %4999 = vmatpush1.msra.mxu0 0.0
        %5000 = vmatprep.subr.mxu0 0.0
        %5001 = vmatpush1.msra.mxu0 0.0
        %5002 = vmatprep.subr.mxu0 0.0
        %5003 = vmatpush1.msra.mxu0 0.0
        %5004 = vmatprep.subr.mxu0 0.0
        %5005 = vmatpush1.msra.mxu0 0.0
        %5006 = vmatprep.subr.mxu0 0.0
        %5007 = vmatpush1.msra.mxu0 0.0
        %5008 = vmatprep.subr.mxu0 0.0
        %5009 = vmatpush1.msra.mxu0 0.0
        %5010 = vmatprep.subr.mxu0 0.0
        %5011 = vmatpush1.msra.mxu0 0.0
        %5012 = vmatprep.subr.mxu0 0.0
        %5013 = vmatpush1.msra.mxu0 0.0
        %5014 = vmatprep.subr.mxu0 0.0
        %5015 = vmatpush1.msra.mxu0 0.0
        %5016 = vmatprep.subr.mxu0 0.0
        %5017 = vmatpush1.msra.mxu0 0.0
        %5018 = vmatprep.subr.mxu0 0.0
        %5019 = vmatpush1.msra.mxu0 0.0
        %5020 = vmatprep.subr.mxu0 0.0
        %5021 = vmatpush1.msra.mxu0 0.0
        %5022 = vmatprep.subr.mxu0 0.0
        %5023 = vmatpush1.msra.mxu0 0.0
        %5024 = vmatprep.subr.mxu0 0.0
        %5025 = vmatpush1.msra.mxu0 0.0
        %5026 = vmatprep.subr.mxu0 0.0
        %5027 = vmatpush1.msra.mxu0 0.0
        %5028 = vmatprep.subr.mxu0 0.0
        %5029 = vmatpush1.msra.mxu0 0.0
        %5030 = vmatprep.subr.mxu0 0.0
        %5031 = vmatpush1.msra.mxu0 0.0
        %5032 = vmatprep.mubr.f32.mxu0 0.0
        %5033 = vmatmul.mubr.f32.gmra.mrb[0].mxu0 %v4963
        %v5034 = vpop.f32.mrb[0].mxu0
        %v5035 = vadd.f32 0.0, %v5034
        %v5036 = vpop.f32.mrb[0].mxu0
        %5037 = vmatprep.mubr.f32.mxu0 0.0
        %5038 = vmatmul.mubr.f32.gmra.mrb[0].mxu0 %v4966
        %v5039 = vpop.f32.mrb[0].mxu0
        %v5040 = vadd.f32 0.0, %v5039
        %v5041 = vpop.f32.mrb[0].mxu0
        %5042 = vdwg.mxu0
        %v5044 = vsel %vm2380, %v4798, 0
        %v5047 = vsel %vm2380, %v4799, 0
        %5049 = vmatprep.subr.mxu0 0.0
        %5050 = vmatpush1.msra.mxu0 %v4277
        %5051 = vmatprep.subr.mxu0 0.0
        %5052 = vmatpush1.msra.mxu0 %v4345
        %5053 = vmatprep.subr.mxu0 0.0
        %5054 = vmatpush1.msra.mxu0 0.0
        %5055 = vmatprep.subr.mxu0 0.0
        %5056 = vmatpush1.msra.mxu0 0.0
        %5057 = vmatprep.subr.mxu0 0.0
        %5058 = vmatpush1.msra.mxu0 0.0
        %5059 = vmatprep.subr.mxu0 0.0
        %5060 = vmatpush1.msra.mxu0 0.0
        %5061 = vmatprep.subr.mxu0 0.0
        %5062 = vmatpush1.msra.mxu0 0.0
        %5063 = vmatprep.subr.mxu0 0.0
        %5064 = vmatpush1.msra.mxu0 0.0
        %5065 = vmatprep.subr.mxu0 0.0
        %5066 = vmatpush1.msra.mxu0 0.0
        %5067 = vmatprep.subr.mxu0 0.0
        %5068 = vmatpush1.msra.mxu0 0.0
        %5069 = vmatprep.subr.mxu0 0.0
        %5070 = vmatpush1.msra.mxu0 0.0
        %5071 = vmatprep.subr.mxu0 0.0
        %5072 = vmatpush1.msra.mxu0 0.0
        %5073 = vmatprep.subr.mxu0 0.0
        %5074 = vmatpush1.msra.mxu0 0.0
        %5075 = vmatprep.subr.mxu0 0.0
        %5076 = vmatpush1.msra.mxu0 0.0
        %5077 = vmatprep.subr.mxu0 0.0
        %5078 = vmatpush1.msra.mxu0 0.0
        %5079 = vmatprep.subr.mxu0 0.0
        %5080 = vmatpush1.msra.mxu0 0.0
        %5081 = vmatprep.subr.mxu0 0.0
        %5082 = vmatpush1.msra.mxu0 0.0
        %5083 = vmatprep.subr.mxu0 0.0
        %5084 = vmatpush1.msra.mxu0 0.0
        %5085 = vmatprep.subr.mxu0 0.0
        %5086 = vmatpush1.msra.mxu0 0.0
        %5087 = vmatprep.subr.mxu0 0.0
        %5088 = vmatpush1.msra.mxu0 0.0
        %5089 = vmatprep.subr.mxu0 0.0
        %5090 = vmatpush1.msra.mxu0 0.0
        %5091 = vmatprep.subr.mxu0 0.0
        %5092 = vmatpush1.msra.mxu0 0.0
        %5093 = vmatprep.subr.mxu0 0.0
        %5094 = vmatpush1.msra.mxu0 0.0
        %5095 = vmatprep.subr.mxu0 0.0
        %5096 = vmatpush1.msra.mxu0 0.0
        %5097 = vmatprep.subr.mxu0 0.0
        %5098 = vmatpush1.msra.mxu0 0.0
        %5099 = vmatprep.subr.mxu0 0.0
        %5100 = vmatpush1.msra.mxu0 0.0
        %5101 = vmatprep.subr.mxu0 0.0
        %5102 = vmatpush1.msra.mxu0 0.0
        %5103 = vmatprep.subr.mxu0 0.0
        %5104 = vmatpush1.msra.mxu0 0.0
        %5105 = vmatprep.subr.mxu0 0.0
        %5106 = vmatpush1.msra.mxu0 0.0
        %5107 = vmatprep.subr.mxu0 0.0
        %5108 = vmatpush1.msra.mxu0 0.0
        %5109 = vmatprep.subr.mxu0 0.0
        %5110 = vmatpush1.msra.mxu0 0.0
        %5111 = vmatprep.subr.mxu0 0.0
        %5112 = vmatpush1.msra.mxu0 0.0
        %5113 = vmatprep.mubr.f32.mxu0 0.0
        %5114 = vmatmul.mubr.f32.gmra.mrb[0].mxu0 %v5044
        %v5115 = vpop.f32.mrb[0].mxu0
        %v5116 = vadd.f32 0.0, %v5115
        %v5117 = vpop.f32.mrb[0].mxu0
        %5118 = vmatprep.mubr.f32.mxu0 0.0
        %5119 = vmatmul.mubr.f32.gmra.mrb[0].mxu0 %v5047
        %v5120 = vpop.f32.mrb[0].mxu0
        %v5121 = vadd.f32 0.0, %v5120
        %v5122 = vpop.f32.mrb[0].mxu0
        %5123 = vdwg.mxu0
        %v5124 = vcombine.low %v4873, %v5035
        %v5125 = vcombine.high %v4873, %v5035
        %v5127 = vunpack.c.l.s4 1983009808
        %v5128 = vunpack.c.0.s8 %v5127
        %v5129 = vlaneseq
        %v5130 = vshrl.u32 %v5129, 7
        %v5131 = vsub.s32 %v5128, %v5130
        %v5132 = vrot.slane %v5124, %v5131
        %v5134 = vunpack.c.l.s4 1983009808
        %v5135 = vunpack.c.0.s8 %v5134
        %v5136 = vlaneseq
        %v5137 = vshrl.u32 %v5136, 7
        %v5138 = vsub.s32 %v5135, %v5137
        %v5139 = vrot.slane %v5125, %v5138
        %v5140 = vcombine.low %v4954, %v5116
        %v5141 = vcombine.high %v4954, %v5116
        %v5143 = vunpack.c.l.s4 1983009808
        %v5144 = vunpack.c.0.s8 %v5143
        %v5145 = vlaneseq
        %v5146 = vshrl.u32 %v5145, 7
        %v5147 = vsub.s32 %v5144, %v5146
        %v5148 = vrot.slane %v5140, %v5147
        %v5150 = vunpack.c.l.s4 1983009808
        %v5151 = vunpack.c.0.s8 %v5150
        %v5152 = vlaneseq
        %v5153 = vshrl.u32 %v5152, 7
        %v5154 = vsub.s32 %v5151, %v5153
        %v5155 = vrot.slane %v5141, %v5154
        %v5156 = vcombine.low %v5132, %v5148
        %v5157 = vcombine.high %v5132, %v5148
        %v5159 = vunpack.c.l.s4 1934713408
        %v5160 = vunpack.c.0.s8 %v5159
        %v5161 = vlaneseq
        %v5162 = vshrl.u32 %v5161, 7
        %v5163 = vsub.s32 %v5160, %v5162
        %v5164 = vrot.slane %v5156, %v5163
        %v5166 = vunpack.c.l.s4 1934713408
        %v5167 = vunpack.c.0.s8 %v5166
        %v5168 = vlaneseq
        %v5169 = vshrl.u32 %v5168, 7
        %v5170 = vsub.s32 %v5167, %v5169
        %v5171 = vrot.slane %v5157, %v5170
        %v5172 = vcombine.low %v5139, %v5155
        %v5173 = vcombine.high %v5139, %v5155
        %v5175 = vunpack.c.l.s4 1934713408
        %v5176 = vunpack.c.0.s8 %v5175
        %v5177 = vlaneseq
        %v5178 = vshrl.u32 %v5177, 7
        %v5179 = vsub.s32 %v5176, %v5178
        %v5180 = vrot.slane %v5172, %v5179
        %v5182 = vunpack.c.l.s4 1934713408
        %v5183 = vunpack.c.0.s8 %v5182
        %v5184 = vlaneseq
        %v5185 = vshrl.u32 %v5184, 7
        %v5186 = vsub.s32 %v5183, %v5185
        %v5187 = vrot.slane %v5173, %v5186
        %v5188 = vcombine.high %v5164, 0.0
        %v5189 = vcombine.high %v5171, 0.0
        %v5190 = vcombine.high %v5180, 0.0
        %v5191 = vcombine.high %v5187, 0.0
        %v5192 = vcombine.low %v4878, %v5040
        %v5193 = vcombine.high %v4878, %v5040
        %v5195 = vunpack.c.l.s4 1983009808
        %v5196 = vunpack.c.0.s8 %v5195
        %v5197 = vlaneseq
        %v5198 = vshrl.u32 %v5197, 7
        %v5199 = vsub.s32 %v5196, %v5198
        %v5200 = vrot.slane %v5192, %v5199
        %v5202 = vunpack.c.l.s4 1983009808
        %v5203 = vunpack.c.0.s8 %v5202
        %v5204 = vlaneseq
        %v5205 = vshrl.u32 %v5204, 7
        %v5206 = vsub.s32 %v5203, %v5205
        %v5207 = vrot.slane %v5193, %v5206
        %v5208 = vcombine.low %v4959, %v5121
        %v5209 = vcombine.high %v4959, %v5121
        %v5211 = vunpack.c.l.s4 1983009808
        %v5212 = vunpack.c.0.s8 %v5211
        %v5213 = vlaneseq
        %v5214 = vshrl.u32 %v5213, 7
        %v5215 = vsub.s32 %v5212, %v5214
        %v5216 = vrot.slane %v5208, %v5215
        %v5218 = vunpack.c.l.s4 1983009808
        %v5219 = vunpack.c.0.s8 %v5218
        %v5220 = vlaneseq
        %v5221 = vshrl.u32 %v5220, 7
        %v5222 = vsub.s32 %v5219, %v5221
        %v5223 = vrot.slane %v5209, %v5222
        %v5224 = vcombine.low %v5200, %v5216
        %v5225 = vcombine.high %v5200, %v5216
        %v5227 = vunpack.c.l.s4 1934713408
        %v5228 = vunpack.c.0.s8 %v5227
        %v5229 = vlaneseq
        %v5230 = vshrl.u32 %v5229, 7
        %v5231 = vsub.s32 %v5228, %v5230
        %v5232 = vrot.slane %v5224, %v5231
        %v5234 = vunpack.c.l.s4 1934713408
        %v5235 = vunpack.c.0.s8 %v5234
        %v5236 = vlaneseq
        %v5237 = vshrl.u32 %v5236, 7
        %v5238 = vsub.s32 %v5235, %v5237
        %v5239 = vrot.slane %v5225, %v5238
        %v5240 = vcombine.low %v5207, %v5223
        %v5241 = vcombine.high %v5207, %v5223
        %v5243 = vunpack.c.l.s4 1934713408
        %v5244 = vunpack.c.0.s8 %v5243
        %v5245 = vlaneseq
        %v5246 = vshrl.u32 %v5245, 7
        %v5247 = vsub.s32 %v5244, %v5246
        %v5248 = vrot.slane %v5240, %v5247
        %v5250 = vunpack.c.l.s4 1934713408
        %v5251 = vunpack.c.0.s8 %v5250
        %v5252 = vlaneseq
        %v5253 = vshrl.u32 %v5252, 7
        %v5254 = vsub.s32 %v5251, %v5253
        %v5255 = vrot.slane %v5241, %v5254
        %v5256 = vcombine.high %v5232, 0.0
        %v5257 = vcombine.high %v5239, 0.0
        %v5258 = vcombine.high %v5248, 0.0
        %v5259 = vcombine.high %v5255, 0.0
        %v5260 = vcombine.low %v5164, %v5171
        %v5262 = vunpack.c.l.s4 1983009808
        %v5263 = vunpack.c.0.s8 %v5262
        %v5264 = vlaneseq
        %v5265 = vshrl.u32 %v5264, 7
        %v5266 = vsub.s32 %v5263, %v5265
        %v5267 = vrot.slane %v5260, %v5266
        %v5268 = vcombine.low %v5188, %v5189
        %v5270 = vunpack.c.l.s4 1983009808
        %v5271 = vunpack.c.0.s8 %v5270
        %v5272 = vlaneseq
        %v5273 = vshrl.u32 %v5272, 7
        %v5274 = vsub.s32 %v5271, %v5273
        %v5275 = vrot.slane %v5268, %v5274
        %v5276 = vcombine.low %v5180, %v5187
        %v5278 = vunpack.c.l.s4 1983009808
        %v5279 = vunpack.c.0.s8 %v5278
        %v5280 = vlaneseq
        %v5281 = vshrl.u32 %v5280, 7
        %v5282 = vsub.s32 %v5279, %v5281
        %v5283 = vrot.slane %v5276, %v5282
        %v5284 = vcombine.low %v5190, %v5191
        %v5286 = vunpack.c.l.s4 1983009808
        %v5287 = vunpack.c.0.s8 %v5286
        %v5288 = vlaneseq
        %v5289 = vshrl.u32 %v5288, 7
        %v5290 = vsub.s32 %v5287, %v5289
        %v5291 = vrot.slane %v5284, %v5290
        %v5292 = vcombine.low %v5267, %v5275
        %v5293 = vcombine.high %v5267, %v5275
        %v5295 = vunpack.c.l.s4 1934713408
        %v5296 = vunpack.c.0.s8 %v5295
        %v5297 = vlaneseq
        %v5298 = vshrl.u32 %v5297, 7
        %v5299 = vsub.s32 %v5296, %v5298
        %v5300 = vrot.slane %v5292, %v5299
        %v5302 = vunpack.c.l.s4 1934713408
        %v5303 = vunpack.c.0.s8 %v5302
        %v5304 = vlaneseq
        %v5305 = vshrl.u32 %v5304, 7
        %v5306 = vsub.s32 %v5303, %v5305
        %v5307 = vrot.slane %v5293, %v5306
        %v5308 = vcombine.low %v5283, %v5291
        %v5309 = vcombine.high %v5283, %v5291
        %v5311 = vunpack.c.l.s4 1934713408
        %v5312 = vunpack.c.0.s8 %v5311
        %v5313 = vlaneseq
        %v5314 = vshrl.u32 %v5313, 7
        %v5315 = vsub.s32 %v5312, %v5314
        %v5316 = vrot.slane %v5308, %v5315
        %v5318 = vunpack.c.l.s4 1934713408
        %v5319 = vunpack.c.0.s8 %v5318
        %v5320 = vlaneseq
        %v5321 = vshrl.u32 %v5320, 7
        %v5322 = vsub.s32 %v5319, %v5321
        %v5323 = vrot.slane %v5309, %v5322
        %v5324 = vcombine.low %v5300, %v5316
        %v5325 = vcombine.high %v5300, %v5316
        %v5326 = vcombine.low %v5307, %v5323
        %v5327 = vcombine.high %v5307, %v5323
        %v5328 = vcombine.low %v5232, %v5239
        %v5330 = vunpack.c.l.s4 1983009808
        %v5331 = vunpack.c.0.s8 %v5330
        %v5332 = vlaneseq
        %v5333 = vshrl.u32 %v5332, 7
        %v5334 = vsub.s32 %v5331, %v5333
        %v5335 = vrot.slane %v5328, %v5334
        %v5336 = vcombine.low %v5256, %v5257
        %v5338 = vunpack.c.l.s4 1983009808
        %v5339 = vunpack.c.0.s8 %v5338
        %v5340 = vlaneseq
        %v5341 = vshrl.u32 %v5340, 7
        %v5342 = vsub.s32 %v5339, %v5341
        %v5343 = vrot.slane %v5336, %v5342
        %v5344 = vcombine.low %v5248, %v5255
        %v5346 = vunpack.c.l.s4 1983009808
        %v5347 = vunpack.c.0.s8 %v5346
        %v5348 = vlaneseq
        %v5349 = vshrl.u32 %v5348, 7
        %v5350 = vsub.s32 %v5347, %v5349
        %v5351 = vrot.slane %v5344, %v5350
        %v5352 = vcombine.low %v5258, %v5259
        %v5354 = vunpack.c.l.s4 1983009808
        %v5355 = vunpack.c.0.s8 %v5354
        %v5356 = vlaneseq
        %v5357 = vshrl.u32 %v5356, 7
        %v5358 = vsub.s32 %v5355, %v5357
        %v5359 = vrot.slane %v5352, %v5358
        %v5360 = vcombine.low %v5335, %v5343
        %v5361 = vcombine.high %v5335, %v5343
        %v5363 = vunpack.c.l.s4 1934713408
        %v5364 = vunpack.c.0.s8 %v5363
        %v5365 = vlaneseq
        %v5366 = vshrl.u32 %v5365, 7
        %v5367 = vsub.s32 %v5364, %v5366
        %v5368 = vrot.slane %v5360, %v5367
        %v5370 = vunpack.c.l.s4 1934713408
        %v5371 = vunpack.c.0.s8 %v5370
        %v5372 = vlaneseq
        %v5373 = vshrl.u32 %v5372, 7
        %v5374 = vsub.s32 %v5371, %v5373
        %v5375 = vrot.slane %v5361, %v5374
        %v5376 = vcombine.low %v5351, %v5359
        %v5377 = vcombine.high %v5351, %v5359
        %v5379 = vunpack.c.l.s4 1934713408
        %v5380 = vunpack.c.0.s8 %v5379
        %v5381 = vlaneseq
        %v5382 = vshrl.u32 %v5381, 7
        %v5383 = vsub.s32 %v5380, %v5382
        %v5384 = vrot.slane %v5376, %v5383
        %v5386 = vunpack.c.l.s4 1934713408
        %v5387 = vunpack.c.0.s8 %v5386
        %v5388 = vlaneseq
        %v5389 = vshrl.u32 %v5388, 7
        %v5390 = vsub.s32 %v5387, %v5389
        %v5391 = vrot.slane %v5377, %v5390
        %v5392 = vcombine.low %v5368, %v5384
        %v5393 = vcombine.high %v5368, %v5384
        %v5394 = vcombine.low %v5375, %v5391
        %v5395 = vcombine.high %v5375, %v5391
        %5398 = vrot.lane.b32.xlu0 %v5325, 32
        %v5399 = vpop.permute.xlu0 %5398
        %5400 = vrot.lane.b32.xlu0 %v5393, 32
        %v5401 = vpop.permute.xlu0 %5400
        %5406 = vrot.lane.b32.xlu0 %v5326, 64
        %v5407 = vpop.permute.xlu0 %5406
        %5408 = vrot.lane.b32.xlu0 %v5394, 64
        %v5409 = vpop.permute.xlu0 %5408
        %5414 = vrot.lane.b32.xlu0 %v5327, 96
        %v5415 = vpop.permute.xlu0 %5414
        %5416 = vrot.lane.b32.xlu0 %v5395, 96
        %v5417 = vpop.permute.xlu0 %5416
        %v5420 = vsel %vm2011, %v5324, %v5399
        %v5421 = vsel %vm2011, %v5392, %v5401
        %v5422 = vsel %vm3091, %v5420, %v5407
        %v5423 = vsel %vm3091, %v5421, %v5409
        %v5424 = vsel %vm3094, %v5422, %v5415
        %v5425 = vsel %vm3094, %v5423, %v5417
        %v5426 = vld [vmem:[#allocation15] sm:$0xff]
        %v5427 = vld [vmem:[#allocation15 + $0x8] sm:$0xff]
        %v5428 = vld [vmem:[#allocation15 + $0x10] sm:$0xff]
        %v5429 = vld [vmem:[#allocation15 + $0x18] sm:$0xff]
        %v5430 = vld [vmem:[#allocation15 + $0x20] sm:$0xff]
        %v5431 = vld [vmem:[#allocation15 + $0x28] sm:$0xff]
        %v5432 = vld [vmem:[#allocation15 + $0x30] sm:$0xff]
        %v5433 = vld [vmem:[#allocation15 + $0x38] sm:$0xff]
        %v5434 = vld [vmem:[#allocation15 + $0x40] sm:$0xff]
        %v5435 = vld [vmem:[#allocation15 + $0x48] sm:$0xff]
        %v5436 = vld [vmem:[#allocation15 + $0x50] sm:$0xff]
        %v5437 = vld [vmem:[#allocation15 + $0x58] sm:$0xff]
        %v5438 = vld [vmem:[#allocation15 + $0x60] sm:$0xff]
        %v5439 = vld [vmem:[#allocation15 + $0x68] sm:$0xff]
        %v5440 = vld [vmem:[#allocation15 + $0x70] sm:$0xff]
        %v5441 = vld [vmem:[#allocation15 + $0x78] sm:$0xff]
        %v5442 = vld [vmem:[%s12] sm:$0x1]
        %v5444 = vlaneseq
        %v5445 = vshrl.u32 %v5444, 7
        %v5446 = vsub.s32 0, %v5445
        %v5447 = vrot.slane %v5442, %v5446
        %5449 = vmatprep.subr.mxu0 0.0
        %5450 = vmatpush1.msra.mxu0 %v5426
        %5451 = vmatprep.subr.mxu0 0.0
        %5452 = vmatpush1.msra.mxu0 %v5427
        %5453 = vmatprep.subr.mxu0 0.0
        %5454 = vmatpush1.msra.mxu0 %v5428
        %5455 = vmatprep.subr.mxu0 0.0
        %5456 = vmatpush1.msra.mxu0 %v5429
        %5457 = vmatprep.subr.mxu0 0.0
        %5458 = vmatpush1.msra.mxu0 %v5430
        %5459 = vmatprep.subr.mxu0 0.0
        %5460 = vmatpush1.msra.mxu0 %v5431
        %5461 = vmatprep.subr.mxu0 0.0
        %5462 = vmatpush1.msra.mxu0 %v5432
        %5463 = vmatprep.subr.mxu0 0.0
        %5464 = vmatpush1.msra.mxu0 %v5433
        %5465 = vmatprep.subr.mxu0 0.0
        %5466 = vmatpush1.msra.mxu0 %v5434
        %5467 = vmatprep.subr.mxu0 0.0
        %5468 = vmatpush1.msra.mxu0 %v5435
        %5469 = vmatprep.subr.mxu0 0.0
        %5470 = vmatpush1.msra.mxu0 %v5436
        %5471 = vmatprep.subr.mxu0 0.0
        %5472 = vmatpush1.msra.mxu0 %v5437
        %5473 = vmatprep.subr.mxu0 0.0
        %5474 = vmatpush1.msra.mxu0 %v5438
        %5475 = vmatprep.subr.mxu0 0.0
        %5476 = vmatpush1.msra.mxu0 %v5439
        %5477 = vmatprep.subr.mxu0 0.0
        %5478 = vmatpush1.msra.mxu0 %v5440
        %5479 = vmatprep.subr.mxu0 0.0
        %5480 = vmatpush1.msra.mxu0 %v5441
        %5481 = vmatprep.subr.mxu0 0.0
        %5482 = vmatpush1.msra.mxu0 0.0
        %5483 = vmatprep.subr.mxu0 0.0
        %5484 = vmatpush1.msra.mxu0 0.0
        %5485 = vmatprep.subr.mxu0 0.0
        %5486 = vmatpush1.msra.mxu0 0.0
        %5487 = vmatprep.subr.mxu0 0.0
        %5488 = vmatpush1.msra.mxu0 0.0
        %5489 = vmatprep.subr.mxu0 0.0
        %5490 = vmatpush1.msra.mxu0 0.0
        %5491 = vmatprep.subr.mxu0 0.0
        %5492 = vmatpush1.msra.mxu0 0.0
        %5493 = vmatprep.subr.mxu0 0.0
        %5494 = vmatpush1.msra.mxu0 0.0
        %5495 = vmatprep.subr.mxu0 0.0
        %5496 = vmatpush1.msra.mxu0 0.0
        %5497 = vmatprep.subr.mxu0 0.0
        %5498 = vmatpush1.msra.mxu0 0.0
        %5499 = vmatprep.subr.mxu0 0.0
        %5500 = vmatpush1.msra.mxu0 0.0
        %5501 = vmatprep.subr.mxu0 0.0
        %5502 = vmatpush1.msra.mxu0 0.0
        %5503 = vmatprep.subr.mxu0 0.0
        %5504 = vmatpush1.msra.mxu0 0.0
        %5505 = vmatprep.subr.mxu0 0.0
        %5506 = vmatpush1.msra.mxu0 0.0
        %5507 = vmatprep.subr.mxu0 0.0
        %5508 = vmatpush1.msra.mxu0 0.0
        %5509 = vmatprep.subr.mxu0 0.0
        %5510 = vmatpush1.msra.mxu0 0.0
        %5511 = vmatprep.subr.mxu0 0.0
        %5512 = vmatpush1.msra.mxu0 0.0
        %5513 = vmatprep.mubr.f32.mxu0 0.0
        %5514 = vmatmul.mubr.f32.gmra.mrb[0].mxu0 %v5424
        %v5515 = vpop.f32.mrb[0].mxu0
        %v5516 = vadd.f32 %v5447, %v5515
        %v5517 = vpop.f32.mrb[0].mxu0
        %5518 = vmatprep.mubr.f32.mxu0 0.0
        %5519 = vmatmul.mubr.f32.gmra.mrb[0].mxu0 %v5425
        %v5520 = vpop.f32.mrb[0].mxu0
        %v5521 = vadd.f32 %v5447, %v5520
        %v5522 = vpop.f32.mrb[0].mxu0
        %5523 = vdwg.mxu0
        %v5524 = vadd.f32 %v3195, %v5516
        %v5525 = vadd.f32 %v3196, %v5521
        %5526 = vadd.xlane.f32.xlu0 %v5524
        %v5527 = vpop.xlane.xlu0 %5526
        %5528 = vadd.xlane.f32.xlu0 %v5525
        %v5529 = vpop.xlane.xlu0 %5528
        %v5530 = vmul.f32 %v5527, %v866
        %v5531 = vmul.f32 %v5529, %v866
        %v5532 = vsub.f32 %v5524, %v5530
        %v5533 = vsub.f32 %v5525, %v5531
        %v5534 = vmul.f32 %v5532, %v5532
        %v5535 = vmul.f32 %v5533, %v5533
        %5536 = vadd.xlane.f32.xlu0 %v5534
        %v5537 = vpop.xlane.xlu0 %5536
        %5538 = vadd.xlane.f32.xlu0 %v5535
        %v5539 = vpop.xlane.xlu0 %5538
        %v5540 = vmul.f32 %v5537, %v877
        %v5541 = vmul.f32 %v5539, %v877
        %v5542 = vrsqrt.pop %v5540
        %v5543 = vmul.f32 %v5540, %v5542
        %vm5544 = vcmp.eq.f32.partialorder %v5540, inf
        %v5545 = vsel %vm5544, %v5540, %v5543
        %vm5546 = vcmp.eq.f32.partialorder %v5540, 0.0
        %v5547 = vand.u32 %v5540, 2147483648
        %v5548 = vsel %vm5546, %v5547, %v5545
        %v5549 = vrsqrt.pop %v5541
        %v5550 = vmul.f32 %v5541, %v5549
        %vm5551 = vcmp.eq.f32.partialorder %v5541, inf
        %v5552 = vsel %vm5551, %v5541, %v5550
        %vm5553 = vcmp.eq.f32.partialorder %v5541, 0.0
        %v5554 = vand.u32 %v5541, 2147483648
        %v5555 = vsel %vm5553, %v5554, %v5552
        %v5556 = vadd.f32 %v5548, 1e-06
        %v5557 = vadd.f32 %v5555, 1e-06
        %v5558 = vrcp.pop %v5556
        %v5559 = vrcp.pop %v5557
        %v5560 = vld [vmem:[%s21] sm:$0x1]
        %v5562 = vlaneseq
        %v5563 = vshrl.u32 %v5562, 7
        %v5564 = vsub.s32 0, %v5563
        %v5565 = vrot.slane %v5560, %v5564
        %v5567 = vmul.f32 %v5565, %v5532
        %v5568 = vmul.f32 %v5565, %v5533
        %v5569 = vmul.f32 %v5567, %v5558
        %v5570 = vmul.f32 %v5568, %v5559
        %v5571 = vld [vmem:[%s22] sm:$0x1]
        %v5573 = vlaneseq
        %v5574 = vshrl.u32 %v5573, 7
        %v5575 = vsub.s32 0, %v5574
        %v5576 = vrot.slane %v5571, %v5575
        %v5578 = vadd.f32 %v5569, %v5576
        %v5579 = vadd.f32 %v5570, %v5576
        %v5580 = vld [vmem:[#allocation16] sm:$0xff]
        %v5581 = vld [vmem:[#allocation16 + $0x10] sm:$0xff]
        %v5582 = vld [vmem:[#allocation16 + $0x20] sm:$0xff]
        %v5583 = vld [vmem:[#allocation16 + $0x30] sm:$0xff]
        %v5584 = vld [vmem:[#allocation16 + $0x40] sm:$0xff]
        %v5585 = vld [vmem:[#allocation16 + $0x50] sm:$0xff]
        %v5586 = vld [vmem:[#allocation16 + $0x60] sm:$0xff]
        %v5587 = vld [vmem:[#allocation16 + $0x70] sm:$0xff]
        %v5588 = vld [vmem:[#allocation16 + $0x80] sm:$0xff]
        %v5589 = vld [vmem:[#allocation16 + $0x90] sm:$0xff]
        %v5590 = vld [vmem:[#allocation16 + $0xa0] sm:$0xff]
        %v5591 = vld [vmem:[#allocation16 + $0xb0] sm:$0xff]
        %v5592 = vld [vmem:[#allocation16 + $0xc0] sm:$0xff]
        %v5593 = vld [vmem:[#allocation16 + $0xd0] sm:$0xff]
        %v5594 = vld [vmem:[#allocation16 + $0xe0] sm:$0xff]
        %v5595 = vld [vmem:[#allocation16 + $0xf0] sm:$0xff]
        %v5596 = vld [vmem:[%s14] sm:$0x1]
        %v5598 = vlaneseq
        %v5599 = vshrl.u32 %v5598, 7
        %v5600 = vsub.s32 0, %v5599
        %v5601 = vrot.slane %v5596, %v5600
        %5603 = vmatprep.subr.mxu0 0.0
        %5604 = vmatpush1.msra.mxu0 %v5580
        %5605 = vmatprep.subr.mxu0 0.0
        %5606 = vmatpush1.msra.mxu0 %v5581
        %5607 = vmatprep.subr.mxu0 0.0
        %5608 = vmatpush1.msra.mxu0 %v5582
        %5609 = vmatprep.subr.mxu0 0.0
        %5610 = vmatpush1.msra.mxu0 %v5583
        %5611 = vmatprep.subr.mxu0 0.0
        %5612 = vmatpush1.msra.mxu0 %v5584
        %5613 = vmatprep.subr.mxu0 0.0
        %5614 = vmatpush1.msra.mxu0 %v5585
        %5615 = vmatprep.subr.mxu0 0.0
        %5616 = vmatpush1.msra.mxu0 %v5586
        %5617 = vmatprep.subr.mxu0 0.0
        %5618 = vmatpush1.msra.mxu0 %v5587
        %5619 = vmatprep.subr.mxu0 0.0
        %5620 = vmatpush1.msra.mxu0 %v5588
        %5621 = vmatprep.subr.mxu0 0.0
        %5622 = vmatpush1.msra.mxu0 %v5589
        %5623 = vmatprep.subr.mxu0 0.0
        %5624 = vmatpush1.msra.mxu0 %v5590
        %5625 = vmatprep.subr.mxu0 0.0
        %5626 = vmatpush1.msra.mxu0 %v5591
        %5627 = vmatprep.subr.mxu0 0.0
        %5628 = vmatpush1.msra.mxu0 %v5592
        %5629 = vmatprep.subr.mxu0 0.0
        %5630 = vmatpush1.msra.mxu0 %v5593
        %5631 = vmatprep.subr.mxu0 0.0
        %5632 = vmatpush1.msra.mxu0 %v5594
        %5633 = vmatprep.subr.mxu0 0.0
        %5634 = vmatpush1.msra.mxu0 %v5595
        %5635 = vmatprep.subr.mxu0 0.0
        %5636 = vmatpush1.msra.mxu0 0.0
        %5637 = vmatprep.subr.mxu0 0.0
        %5638 = vmatpush1.msra.mxu0 0.0
        %5639 = vmatprep.subr.mxu0 0.0
        %5640 = vmatpush1.msra.mxu0 0.0
        %5641 = vmatprep.subr.mxu0 0.0
        %5642 = vmatpush1.msra.mxu0 0.0
        %5643 = vmatprep.subr.mxu0 0.0
        %5644 = vmatpush1.msra.mxu0 0.0
        %5645 = vmatprep.subr.mxu0 0.0
        %5646 = vmatpush1.msra.mxu0 0.0
        %5647 = vmatprep.subr.mxu0 0.0
        %5648 = vmatpush1.msra.mxu0 0.0
        %5649 = vmatprep.subr.mxu0 0.0
        %5650 = vmatpush1.msra.mxu0 0.0
        %5651 = vmatprep.subr.mxu0 0.0
        %5652 = vmatpush1.msra.mxu0 0.0
        %5653 = vmatprep.subr.mxu0 0.0
        %5654 = vmatpush1.msra.mxu0 0.0
        %5655 = vmatprep.subr.mxu0 0.0
        %5656 = vmatpush1.msra.mxu0 0.0
        %5657 = vmatprep.subr.mxu0 0.0
        %5658 = vmatpush1.msra.mxu0 0.0
        %5659 = vmatprep.subr.mxu0 0.0
        %5660 = vmatpush1.msra.mxu0 0.0
        %5661 = vmatprep.subr.mxu0 0.0
        %5662 = vmatpush1.msra.mxu0 0.0
        %5663 = vmatprep.subr.mxu0 0.0
        %5664 = vmatpush1.msra.mxu0 0.0
        %5665 = vmatprep.subr.mxu0 0.0
        %5666 = vmatpush1.msra.mxu0 0.0
        %5667 = vmatprep.mubr.f32.mxu0 0.0
        %5668 = vmatmul.mubr.f32.gmra.mrb[0].mxu0 %v5578
        %v5669 = vpop.f32.mrb[0].mxu0
        %v5670 = vadd.f32 %v5601, %v5669
        %v5671 = vpop.f32.mrb[0].mxu0
        %5672 = vmatprep.mubr.f32.mxu0 0.0
        %5673 = vmatmul.mubr.f32.gmra.mrb[0].mxu0 %v5579
        %v5674 = vpop.f32.mrb[0].mxu0
        %v5675 = vadd.f32 %v5601, %v5674
        %v5676 = vpop.f32.mrb[0].mxu0
        %5677 = vdwg.mxu0
        %v5678 = vmax.f32 %v5670, 0.0
        %v5679 = vmax.f32 %v5675, 0.0
        %v5680 = vld [vmem:[#allocation18] sm:$0xff]
        %v5681 = vld [vmem:[#allocation18 + $0x8] sm:$0xff]
        %v5682 = vld [vmem:[#allocation18 + $0x10] sm:$0xff]
        %v5683 = vld [vmem:[#allocation18 + $0x18] sm:$0xff]
        %v5684 = vld [vmem:[#allocation18 + $0x20] sm:$0xff]
        %v5685 = vld [vmem:[#allocation18 + $0x28] sm:$0xff]
        %v5686 = vld [vmem:[#allocation18 + $0x30] sm:$0xff]
        %v5687 = vld [vmem:[#allocation18 + $0x38] sm:$0xff]
        %v5688 = vld [vmem:[#allocation18 + $0x40] sm:$0xff]
        %v5689 = vld [vmem:[#allocation18 + $0x48] sm:$0xff]
        %v5690 = vld [vmem:[#allocation18 + $0x50] sm:$0xff]
        %v5691 = vld [vmem:[#allocation18 + $0x58] sm:$0xff]
        %v5692 = vld [vmem:[#allocation18 + $0x60] sm:$0xff]
        %v5693 = vld [vmem:[#allocation18 + $0x68] sm:$0xff]
        %v5694 = vld [vmem:[#allocation18 + $0x70] sm:$0xff]
        %v5695 = vld [vmem:[#allocation18 + $0x78] sm:$0xff]
        %v5696 = vld [vmem:[#allocation16 + $0x8] sm:$0xff]
        %v5697 = vld [vmem:[#allocation16 + $0x18] sm:$0xff]
        %v5698 = vld [vmem:[#allocation16 + $0x28] sm:$0xff]
        %v5699 = vld [vmem:[#allocation16 + $0x38] sm:$0xff]
        %v5700 = vld [vmem:[#allocation16 + $0x48] sm:$0xff]
        %v5701 = vld [vmem:[#allocation16 + $0x58] sm:$0xff]
        %v5702 = vld [vmem:[#allocation16 + $0x68] sm:$0xff]
        %v5703 = vld [vmem:[#allocation16 + $0x78] sm:$0xff]
        %v5704 = vld [vmem:[#allocation16 + $0x88] sm:$0xff]
        %v5705 = vld [vmem:[#allocation16 + $0x98] sm:$0xff]
        %v5706 = vld [vmem:[#allocation16 + $0xa8] sm:$0xff]
        %v5707 = vld [vmem:[#allocation16 + $0xb8] sm:$0xff]
        %v5708 = vld [vmem:[#allocation16 + $0xc8] sm:$0xff]
        %v5709 = vld [vmem:[#allocation16 + $0xd8] sm:$0xff]
        %v5710 = vld [vmem:[#allocation16 + $0xe8] sm:$0xff]
        %v5711 = vld [vmem:[#allocation16 + $0xf8] sm:$0xff]
        %v5712 = vld [vmem:[%s14 + $0x1] sm:$0x1]
        %v5714 = vlaneseq
        %v5715 = vshrl.u32 %v5714, 7
        %v5716 = vsub.s32 0, %v5715
        %v5717 = vrot.slane %v5712, %v5716
        %5719 = vmatprep.subr.mxu0 0.0
        %5720 = vmatpush1.msra.mxu0 %v5696
        %5721 = vmatprep.subr.mxu0 0.0
        %5722 = vmatpush1.msra.mxu0 %v5697
        %5723 = vmatprep.subr.mxu0 0.0
        %5724 = vmatpush1.msra.mxu0 %v5698
        %5725 = vmatprep.subr.mxu0 0.0
        %5726 = vmatpush1.msra.mxu0 %v5699
        %5727 = vmatprep.subr.mxu0 0.0
        %5728 = vmatpush1.msra.mxu0 %v5700
        %5729 = vmatprep.subr.mxu0 0.0
        %5730 = vmatpush1.msra.mxu0 %v5701
        %5731 = vmatprep.subr.mxu0 0.0
        %5732 = vmatpush1.msra.mxu0 %v5702
        %5733 = vmatprep.subr.mxu0 0.0
        %5734 = vmatpush1.msra.mxu0 %v5703
        %5735 = vmatprep.subr.mxu0 0.0
        %5736 = vmatpush1.msra.mxu0 %v5704
        %5737 = vmatprep.subr.mxu0 0.0
        %5738 = vmatpush1.msra.mxu0 %v5705
        %5739 = vmatprep.subr.mxu0 0.0
        %5740 = vmatpush1.msra.mxu0 %v5706
        %5741 = vmatprep.subr.mxu0 0.0
        %5742 = vmatpush1.msra.mxu0 %v5707
        %5743 = vmatprep.subr.mxu0 0.0
        %5744 = vmatpush1.msra.mxu0 %v5708
        %5745 = vmatprep.subr.mxu0 0.0
        %5746 = vmatpush1.msra.mxu0 %v5709
        %5747 = vmatprep.subr.mxu0 0.0
        %5748 = vmatpush1.msra.mxu0 %v5710
        %5749 = vmatprep.subr.mxu0 0.0
        %5750 = vmatpush1.msra.mxu0 %v5711
        %5751 = vmatprep.subr.mxu0 0.0
        %5752 = vmatpush1.msra.mxu0 0.0
        %5753 = vmatprep.subr.mxu0 0.0
        %5754 = vmatpush1.msra.mxu0 0.0
        %5755 = vmatprep.subr.mxu0 0.0
        %5756 = vmatpush1.msra.mxu0 0.0
        %5757 = vmatprep.subr.mxu0 0.0
        %5758 = vmatpush1.msra.mxu0 0.0
        %5759 = vmatprep.subr.mxu0 0.0
        %5760 = vmatpush1.msra.mxu0 0.0
        %5761 = vmatprep.subr.mxu0 0.0
        %5762 = vmatpush1.msra.mxu0 0.0
        %5763 = vmatprep.subr.mxu0 0.0
        %5764 = vmatpush1.msra.mxu0 0.0
        %5765 = vmatprep.subr.mxu0 0.0
        %5766 = vmatpush1.msra.mxu0 0.0
        %5767 = vmatprep.subr.mxu0 0.0
        %5768 = vmatpush1.msra.mxu0 0.0
        %5769 = vmatprep.subr.mxu0 0.0
        %5770 = vmatpush1.msra.mxu0 0.0
        %5771 = vmatprep.subr.mxu0 0.0
        %5772 = vmatpush1.msra.mxu0 0.0
        %5773 = vmatprep.subr.mxu0 0.0
        %5774 = vmatpush1.msra.mxu0 0.0
        %5775 = vmatprep.subr.mxu0 0.0
        %5776 = vmatpush1.msra.mxu0 0.0
        %5777 = vmatprep.subr.mxu0 0.0
        %5778 = vmatpush1.msra.mxu0 0.0
        %5779 = vmatprep.subr.mxu0 0.0
        %5780 = vmatpush1.msra.mxu0 0.0
        %5781 = vmatprep.subr.mxu0 0.0
        %5782 = vmatpush1.msra.mxu0 0.0
        %5783 = vmatprep.mubr.f32.mxu0 0.0
        %5784 = vmatmul.mubr.f32.gmra.mrb[0].mxu0 %v5578
        %v5785 = vpop.f32.mrb[0].mxu0
        %v5786 = vadd.f32 %v5717, %v5785
        %v5787 = vpop.f32.mrb[0].mxu0
        %5788 = vmatprep.mubr.f32.mxu0 0.0
        %5789 = vmatmul.mubr.f32.gmra.mrb[0].mxu0 %v5579
        %v5790 = vpop.f32.mrb[0].mxu0
        %v5791 = vadd.f32 %v5717, %v5790
        %v5792 = vpop.f32.mrb[0].mxu0
        %5793 = vdwg.mxu0
        %v5794 = vmax.f32 %v5786, 0.0
        %v5795 = vmax.f32 %v5791, 0.0
        %v5796 = vld [vmem:[#allocation18 + $0x80] sm:$0xff]
        %v5797 = vld [vmem:[#allocation18 + $0x88] sm:$0xff]
        %v5798 = vld [vmem:[#allocation18 + $0x90] sm:$0xff]
        %v5799 = vld [vmem:[#allocation18 + $0x98] sm:$0xff]
        %v5800 = vld [vmem:[#allocation18 + $0xa0] sm:$0xff]
        %v5801 = vld [vmem:[#allocation18 + $0xa8] sm:$0xff]
        %v5802 = vld [vmem:[#allocation18 + $0xb0] sm:$0xff]
        %v5803 = vld [vmem:[#allocation18 + $0xb8] sm:$0xff]
        %v5804 = vld [vmem:[#allocation18 + $0xc0] sm:$0xff]
        %v5805 = vld [vmem:[#allocation18 + $0xc8] sm:$0xff]
        %v5806 = vld [vmem:[#allocation18 + $0xd0] sm:$0xff]
        %v5807 = vld [vmem:[#allocation18 + $0xd8] sm:$0xff]
        %v5808 = vld [vmem:[#allocation18 + $0xe0] sm:$0xff]
        %v5809 = vld [vmem:[#allocation18 + $0xe8] sm:$0xff]
        %v5810 = vld [vmem:[#allocation18 + $0xf0] sm:$0xff]
        %v5811 = vld [vmem:[#allocation18 + $0xf8] sm:$0xff]
        %5812 = vmatprep.subr.mxu0 0.0
        %5813 = vmatpush1.msra.mxu0 %v5796
        %5814 = vmatprep.subr.mxu0 0.0
        %5815 = vmatpush1.msra.mxu0 %v5797
        %5816 = vmatprep.subr.mxu0 0.0
        %5817 = vmatpush1.msra.mxu0 %v5798
        %5818 = vmatprep.subr.mxu0 0.0
        %5819 = vmatpush1.msra.mxu0 %v5799
        %5820 = vmatprep.subr.mxu0 0.0
        %5821 = vmatpush1.msra.mxu0 %v5800
        %5822 = vmatprep.subr.mxu0 0.0
        %5823 = vmatpush1.msra.mxu0 %v5801
        %5824 = vmatprep.subr.mxu0 0.0
        %5825 = vmatpush1.msra.mxu0 %v5802
        %5826 = vmatprep.subr.mxu0 0.0
        %5827 = vmatpush1.msra.mxu0 %v5803
        %5828 = vmatprep.subr.mxu0 0.0
        %5829 = vmatpush1.msra.mxu0 %v5804
        %5830 = vmatprep.subr.mxu0 0.0
        %5831 = vmatpush1.msra.mxu0 %v5805
        %5832 = vmatprep.subr.mxu0 0.0
        %5833 = vmatpush1.msra.mxu0 %v5806
        %5834 = vmatprep.subr.mxu0 0.0
        %5835 = vmatpush1.msra.mxu0 %v5807
        %5836 = vmatprep.subr.mxu0 0.0
        %5837 = vmatpush1.msra.mxu0 %v5808
        %5838 = vmatprep.subr.mxu0 0.0
        %5839 = vmatpush1.msra.mxu0 %v5809
        %5840 = vmatprep.subr.mxu0 0.0
        %5841 = vmatpush1.msra.mxu0 %v5810
        %5842 = vmatprep.subr.mxu0 0.0
        %5843 = vmatpush1.msra.mxu0 %v5811
        %5844 = vmatprep.subr.mxu0 0.0
        %5845 = vmatpush1.msra.mxu0 0.0
        %5846 = vmatprep.subr.mxu0 0.0
        %5847 = vmatpush1.msra.mxu0 0.0
        %5848 = vmatprep.subr.mxu0 0.0
        %5849 = vmatpush1.msra.mxu0 0.0
        %5850 = vmatprep.subr.mxu0 0.0
        %5851 = vmatpush1.msra.mxu0 0.0
        %5852 = vmatprep.subr.mxu0 0.0
        %5853 = vmatpush1.msra.mxu0 0.0
        %5854 = vmatprep.subr.mxu0 0.0
        %5855 = vmatpush1.msra.mxu0 0.0
        %5856 = vmatprep.subr.mxu0 0.0
        %5857 = vmatpush1.msra.mxu0 0.0
        %5858 = vmatprep.subr.mxu0 0.0
        %5859 = vmatpush1.msra.mxu0 0.0
        %5860 = vmatprep.subr.mxu0 0.0
        %5861 = vmatpush1.msra.mxu0 0.0
        %5862 = vmatprep.subr.mxu0 0.0
        %5863 = vmatpush1.msra.mxu0 0.0
        %5864 = vmatprep.subr.mxu0 0.0
        %5865 = vmatpush1.msra.mxu0 0.0
        %5866 = vmatprep.subr.mxu0 0.0
        %5867 = vmatpush1.msra.mxu0 0.0
        %5868 = vmatprep.subr.mxu0 0.0
        %5869 = vmatpush1.msra.mxu0 0.0
        %5870 = vmatprep.subr.mxu0 0.0
        %5871 = vmatpush1.msra.mxu0 0.0
        %5872 = vmatprep.subr.mxu0 0.0
        %5873 = vmatpush1.msra.mxu0 0.0
        %5874 = vmatprep.subr.mxu0 0.0
        %5875 = vmatpush1.msra.mxu0 0.0
        %5876 = vmatprep.mubr.f32.mxu0 0.0
        %5877 = vmatmul.mubr.f32.gmra.mrb[0].mxu0 %v5794
        %v5878 = vpop.f32.mrb[0].mxu0
        %v5879 = vadd.f32 0.0, %v5878
        %v5880 = vpop.f32.mrb[0].mxu0
        %5881 = vmatprep.mubr.f32.mxu0 0.0
        %5882 = vmatmul.mubr.f32.gmra.mrb[0].mxu0 %v5795
        %v5883 = vpop.f32.mrb[0].mxu0
        %v5884 = vadd.f32 0.0, %v5883
        %v5885 = vpop.f32.mrb[0].mxu0
        %5886 = vdwg.mxu0
        %5887 = vmatprep.subr.mxu0 0.0
        %5888 = vmatpush1.msra.mxu0 %v5680
        %5889 = vmatprep.subr.mxu0 0.0
        %5890 = vmatpush1.msra.mxu0 %v5681
        %5891 = vmatprep.subr.mxu0 0.0
        %5892 = vmatpush1.msra.mxu0 %v5682
        %5893 = vmatprep.subr.mxu0 0.0
        %5894 = vmatpush1.msra.mxu0 %v5683
        %5895 = vmatprep.subr.mxu0 0.0
        %5896 = vmatpush1.msra.mxu0 %v5684
        %5897 = vmatprep.subr.mxu0 0.0
        %5898 = vmatpush1.msra.mxu0 %v5685
        %5899 = vmatprep.subr.mxu0 0.0
        %5900 = vmatpush1.msra.mxu0 %v5686
        %5901 = vmatprep.subr.mxu0 0.0
        %5902 = vmatpush1.msra.mxu0 %v5687
        %5903 = vmatprep.subr.mxu0 0.0
        %5904 = vmatpush1.msra.mxu0 %v5688
        %5905 = vmatprep.subr.mxu0 0.0
        %5906 = vmatpush1.msra.mxu0 %v5689
        %5907 = vmatprep.subr.mxu0 0.0
        %5908 = vmatpush1.msra.mxu0 %v5690
        %5909 = vmatprep.subr.mxu0 0.0
        %5910 = vmatpush1.msra.mxu0 %v5691
        %5911 = vmatprep.subr.mxu0 0.0
        %5912 = vmatpush1.msra.mxu0 %v5692
        %5913 = vmatprep.subr.mxu0 0.0
        %5914 = vmatpush1.msra.mxu0 %v5693
        %5915 = vmatprep.subr.mxu0 0.0
        %5916 = vmatpush1.msra.mxu0 %v5694
        %5917 = vmatprep.subr.mxu0 0.0
        %5918 = vmatpush1.msra.mxu0 %v5695
        %5919 = vmatprep.subr.mxu0 0.0
        %5920 = vmatpush1.msra.mxu0 0.0
        %5921 = vmatprep.subr.mxu0 0.0
        %5922 = vmatpush1.msra.mxu0 0.0
        %5923 = vmatprep.subr.mxu0 0.0
        %5924 = vmatpush1.msra.mxu0 0.0
        %5925 = vmatprep.subr.mxu0 0.0
        %5926 = vmatpush1.msra.mxu0 0.0
        %5927 = vmatprep.subr.mxu0 0.0
        %5928 = vmatpush1.msra.mxu0 0.0
        %5929 = vmatprep.subr.mxu0 0.0
        %5930 = vmatpush1.msra.mxu0 0.0
        %5931 = vmatprep.subr.mxu0 0.0
        %5932 = vmatpush1.msra.mxu0 0.0
        %5933 = vmatprep.subr.mxu0 0.0
        %5934 = vmatpush1.msra.mxu0 0.0
        %5935 = vmatprep.subr.mxu0 0.0
        %5936 = vmatpush1.msra.mxu0 0.0
        %5937 = vmatprep.subr.mxu0 0.0
        %5938 = vmatpush1.msra.mxu0 0.0
        %5939 = vmatprep.subr.mxu0 0.0
        %5940 = vmatpush1.msra.mxu0 0.0
        %5941 = vmatprep.subr.mxu0 0.0
        %5942 = vmatpush1.msra.mxu0 0.0
        %5943 = vmatprep.subr.mxu0 0.0
        %5944 = vmatpush1.msra.mxu0 0.0
        %5945 = vmatprep.subr.mxu0 0.0
        %5946 = vmatpush1.msra.mxu0 0.0
        %5947 = vmatprep.subr.mxu0 0.0
        %5948 = vmatpush1.msra.mxu0 0.0
        %5949 = vmatprep.subr.mxu0 0.0
        %5950 = vmatpush1.msra.mxu0 0.0
        %5951 = vmatprep.mubr.f32.mxu0 0.0
        %5952 = vmatmul.mubr.f32.gmra.mrb[0].mxu0 %v5678
        %v5953 = vpop.f32.mrb[0].mxu0
        %v5954 = vadd.f32 %v5879, %v5953
        %v5955 = vpop.f32.mrb[0].mxu0
        %5956 = vmatprep.mubr.f32.mxu0 0.0
        %5957 = vmatmul.mubr.f32.gmra.mrb[0].mxu0 %v5679
        %v5958 = vpop.f32.mrb[0].mxu0
        %v5959 = vadd.f32 %v5884, %v5958
        %v5960 = vpop.f32.mrb[0].mxu0
        %5961 = vdwg.mxu0
        %v5962 = vld [vmem:[%s16] sm:$0x1]
        %v5964 = vlaneseq
        %v5965 = vshrl.u32 %v5964, 7
        %v5966 = vsub.s32 0, %v5965
        %v5967 = vrot.slane %v5962, %v5966
        %v5969 = vadd.f32 %v5954, %v5967
        %v5970 = vadd.f32 %v5959, %v5967
        %v5971 = vadd.f32 %v5524, %v5969
        %v5972 = vadd.f32 %v5525, %v5970
        %5973 = vst [vmem:[%s847] sm:$0xff] %v5971
        %5974 = vst [vmem:[%s847 + $0x8] sm:$0xff] %v5972
        %s5975 = sand.u32 %s530, 1
        %s5976 = scalar_lea.sflag [#allocation6], %s5975
        %s5977 = sand.u32 %s530, 1
        %s5978 = smul.addr %s5977, 16
        %s5979 = scalar_lea.vmem [#allocation19], %s5978
        // Predicated region
        $region145: #{tpu_custom_call.1} parent=107 // pred_check
          %p5980 = pneg %p540
        $region146: #{tpu_custom_call.1} parent=107 // pred_check_branch
          %5982 = sbr.rel (%p5980) target = $region148
        $region147: #{tpu_custom_call.1} parent=107 // pred_region
          %s5984 = ssub.s32 256, 256
          %5985 = vsyncadd %s5976, %s5984
          %s5986 = smul.addr %s50, 2
          %s5987 = smul.addr %s5986, 128
          %s5988 = scalar_lea.hbm %s23, %s5987
          %s5989 = sshll.u32 %s5979, 4
          %s5990 = int_to_ptr.vmem [resolvable:$true] %s5989
          %5995 = dma.vmem_to_hbm [thread:$0]  %s5990, 256, %s5988, %s5976, 128, 128, 8
        $region148: #{tpu_custom_call.1} parent=107 // pred_fallthru
          _
      $region108: #{tpu_custom_call.1} parent=5 // pred_fallthru
        _
      %p5996 = scmp.le.s32.totalorder 2, %s45
      // Predicated region
      $region149: #{tpu_custom_call.1} parent=5 // pred_check
        %p5997 = pneg %p5996
      $region150: #{tpu_custom_call.1} parent=5 // pred_check_branch
        %5999 = sbr.rel (%p5997) target = $region152
      $region151: #{tpu_custom_call.1} parent=5 // pred_region
        %s6000 = ssub.s32 %s45, 2
        // Predicated region
        $region153: #{tpu_custom_call.1} parent=151 // pred_check
          %p6001 = pneg %p546
        $region154: #{tpu_custom_call.1} parent=151 // pred_check_branch
          %6003 = sbr.rel (%p6001) target = $region156
        $region155: #{tpu_custom_call.1} parent=151 // pred_region
          %s6004 = sand.u32 %s531, 1
          %s6005 = scalar_lea.sflag [#allocation6], %s6004
          %s6006 = sand.u32 %s531, 1
          %s6007 = smul.addr %s6006, 16
          %s6008 = scalar_lea.vmem [#allocation19], %s6007
          %6009 = dma.done %s6005, 256
        $region156: #{tpu_custom_call.1} parent=151 // pred_fallthru
          _
      $region152: #{tpu_custom_call.1} parent=5 // pred_fallthru
        _
    $region6: #{tpu_custom_call.1} parent=1 // loop_footer
      %s49 = sadd.s32 1, %s45
    $region7: #{tpu_custom_call.1} parent=1 // loop_footer_branch
      %44 = sbr.rel target = $region3
    $region8: #{tpu_custom_call.1} parent=1 // loop_exit
      _
    %6010 = vsyncpa [#allocation5], 1
    %s6011 = scalar_lea.sflag [#allocation5], 1
    %6012 = vsyncpa %s6011, 1
    %6013 = vsyncpa [#allocation8], 1
    %s6014 = scalar_lea.sflag [#allocation8], 1
    %6015 = vsyncpa %s6014, 1
    %6016 = vsyncpa [#allocation11], 1
    %6017 = vsyncpa [#allocation14], 1
    %6018 = vsyncpa [#allocation17], 1
    %6019 = vsyncpa [#allocation6], 1
    %s6020 = scalar_lea.sflag [#allocation6], 1
    %6021 = vsyncpa %s6020, 1

</llo_original>
